<compile_context>
chip_gen: v7x
topology: tpu7x:2x2x1
jax: 0.10.0
libtpu: 0.0.40
codegen_flags: <defaults>
</compile_context>

<pallas_src>
import numpy as np
import jax
import jax.numpy as jnp
from jax.experimental import pallas as pl
from jax.experimental.pallas import tpu as pltpu


def _make_kernel(num_layers, max_len, Pp, PL, D_in, H):
    """Single-invocation kernel: person-batched stacked-LSTM recurrence + heads."""
    in_dims = [D_in] + [H] * (num_layers - 1)

    def kernel(*refs):
        it = iter(refs)
        x_ref = next(it)        # (PL, D_in)  padded input, time-major rows (row = t*Pp + person)
        gm_ref = next(it)       # (PL, 2)     col0 = binary-concrete noise logit, col1 = validity mask
        lstm = [(next(it), next(it)) for _ in range(num_layers)]  # (w_ih (4*in,H), w_hh (4H,H))
        bias_ref = next(it)     # (4L, H)     row l*4+g = (b_ih+b_hh) for gate g of layer l (order i,f,g,o)
        w12_ref = next(it)      # (H, D_in+1) [fc1 | fc1∘fc2 folded]
        b12_ref = next(it)      # (1, D_in+1)
        wmlp_ref = next(it)     # (H, 2)      mlp Linear(H,16)∘Linear(16,2) folded
        bmlp_ref = next(it)     # (1, 2)
        final_ref = next(it)    # out (Pp, 2)
        z_ref = next(it)        # out (PL, D_in)

        # ---- stacked LSTM, recurrence batched over the (padded) person axis ----
        layer_in = x_ref[...]                                   # (PL, in_l)
        for l, (wih_ref, whh_ref) in enumerate(lstm):
            in_l = in_dims[l]
            wih = wih_ref[...]
            whh = whh_ref[...]
            # Per-gate weights / biases: sublane-aligned slices, loop-invariant.
            wih_g = [wih[g * in_l:(g + 1) * in_l, :] for g in range(4)]
            whh_g = [whh[g * H:(g + 1) * H, :] for g in range(4)]
            b_g = [bias_ref[l * 4 + g:l * 4 + g + 1, :] for g in range(4)]
            # Input projection hoisted out of the serial loop (off the critical path).
            pre = [jnp.dot(layer_in, wih_g[g], preferred_element_type=jnp.float32) + b_g[g]
                   for g in range(4)]                           # 4 x (PL, H)

            h = jnp.zeros((Pp, H), jnp.float32)
            c = jnp.zeros((Pp, H), jnp.float32)
            hs = []
            # TODO(synk): for max_len beyond a few tens, switch this static unroll to
            # lax.fori_loop(..., unroll=k) with `pre` staged in VMEM to bound vreg pressure.
            for t in range(max_len):
                r0 = t * Pp                                     # sublane-aligned slice start
                i_g = jax.nn.sigmoid(pre[0][r0:r0 + Pp, :]
                                     + jnp.dot(h, whh_g[0], preferred_element_type=jnp.float32))
                f_g = jax.nn.sigmoid(pre[1][r0:r0 + Pp, :]
                                     + jnp.dot(h, whh_g[1], preferred_element_type=jnp.float32))
                g_g = jnp.tanh(pre[2][r0:r0 + Pp, :]
                               + jnp.dot(h, whh_g[2], preferred_element_type=jnp.float32))
                o_g = jax.nn.sigmoid(pre[3][r0:r0 + Pp, :]
                                     + jnp.dot(h, whh_g[3], preferred_element_type=jnp.float32))
                c = f_g * c + i_g * g_g
                h = o_g * jnp.tanh(c)
                hs.append(h)                                    # value-resident, no VMEM store
            layer_in = jnp.concatenate(hs, axis=0)              # (PL, H)

        seq = layer_in                                          # valid rows == lstm_final_output

        # ---- fc1 (passed_Z) and folded fc1∘fc2 (attention logits) in one packed matmul ----
        zlog = jnp.dot(seq, w12_ref[...], preferred_element_type=jnp.float32) + b12_ref[...]   # (PL, D_in+1)
        z_ref[...] = zlog[:, :D_in]                             # padded z; reordered in wrapper
        logits = zlog[:, D_in:D_in + 1]                         # (PL, 1)

        # ---- binary-concrete gate (temperature=1, bias=1e-4); noise logit precomputed host-side ----
        gate = gm_ref[:, 0:1]
        mask = gm_ref[:, 1:2]
        att = jax.nn.sigmoid(gate + logits)                     # (PL, 1)
        rep = seq * (att * mask)                                # pad rows forced to zero

        # ---- per-person sum over valid timesteps: masked sublane-sliced VPU adds ----
        pooled = jnp.zeros((Pp, H), jnp.float32)
        for t in range(max_len):
            pooled = pooled + rep[t * Pp:(t + 1) * Pp, :]

        # TODO(synk): nn.Dropout on the pooled vector is identity in eval mode; train-mode dropout not applied.
        final_ref[...] = (jnp.dot(pooled, wmlp_ref[...], preferred_element_type=jnp.float32)
                          + bmlp_ref[...])                      # (Pp, 2)

    return kernel


def _pack_gates(w, H):
    # (in, 4H) with PyTorch gate order (i,f,g,o) along columns -> (4*in, H), gate blocks on sublanes.
    return jnp.concatenate([w[:, g * H:(g + 1) * H] for g in range(4)], axis=0)


def temporal_attention_net(lstm_input, oneperson_batch_list, params, seed=0):
    lstm_input = jnp.asarray(lstm_input, jnp.float32)
    T, D_in = lstm_input.shape
    lengths = [int(n) for n in oneperson_batch_list]
    P = len(lengths)
    assert sum(lengths) == T
    max_len = max(lengths)
    Pp = ((P + 7) // 8) * 8              # pad person batch to a sublane multiple of 8
    PL = max_len * Pp
    H = params["w_hh"][0].shape[0]
    L = len(params["w_ih"])

    # flat row -> padded row (time-major: row = t * Pp + person)
    pad_idx = np.zeros((T,), np.int32)
    off = 0
    for p, n in enumerate(lengths):
        pad_idx[off:off + n] = np.arange(n, dtype=np.int32) * Pp + p
        off += n
    pad_idx_j = jnp.asarray(pad_idx)

    x_pad = jnp.zeros((PL, D_in), jnp.float32).at[pad_idx_j].set(lstm_input)

    # Binary-concrete noise, host-side, already reduced to its logit (kernel only adds + sigmoids).
    cb = 1e-4
    u = jax.random.uniform(jax.random.PRNGKey(seed), (T, 1), jnp.float32)
    eps = (cb - (1.0 - cb)) * u + (1.0 - cb)
    gate_flat = jnp.log(eps) - jnp.log(1.0 - eps)
    gm = jnp.zeros((PL, 2), jnp.float32)
    gm = gm.at[pad_idx_j, 0].set(gate_flat[:, 0])
    gm = gm.at[pad_idx_j, 1].set(1.0)                 # validity mask

    inputs = [x_pad, gm]
    biases = []
    for l in range(L):
        inputs += [_pack_gates(params["w_ih"][l], H), _pack_gates(params["w_hh"][l], H)]
        biases.append((params["b_ih"][l] + params["b_hh"][l]).reshape(4, H))
    inputs.append(jnp.concatenate(biases, axis=0))     # (4L, H)

    # fc1 kept for passed_Z; fc2 folded through fc1 (no nonlinearity between) for the logits.
    w1 = params["w1"]; b1 = params["b1"].reshape(1, -1)
    w2 = params["w2"]; b2 = params["b2"].reshape(1, -1)
    w12 = jnp.concatenate([w1, jnp.dot(w1, w2)], axis=1)        # (H, D_in+1)
    b12 = jnp.concatenate([b1, jnp.dot(b1, w2) + b2], axis=1)   # (1, D_in+1)
    # mlp = Linear(H,16) ∘ Linear(16,2), no nonlinearity between -> fold host-side.
    w3 = params["w3"]; b3 = params["b3"].reshape(1, -1)
    w4 = params["w4"]; b4 = params["b4"].reshape(1, -1)
    wmlp = jnp.dot(w3, w4)                                      # (H, 2)
    bmlp = jnp.dot(b3, w4) + b4                                 # (1, 2)
    inputs += [w12, b12, wmlp, bmlp]

    vmem = pl.BlockSpec(memory_space=pltpu.MemorySpace.VMEM)
    kernel = _make_kernel(L, max_len, Pp, PL, D_in, H)
    out_shape = (jax.ShapeDtypeStruct((Pp, 2), jnp.float32),
                 jax.ShapeDtypeStruct((PL, D_in), jnp.float32))
    final_pp, z_pad = pl.pallas_call(
        kernel,
        out_shape=out_shape,
        in_specs=[vmem] * len(inputs),
        out_specs=(vmem, vmem),
    )(*inputs)

    final_rep = final_pp[:P]                        # drop person padding
    passed_z = jnp.take(z_pad, pad_idx_j, axis=0)   # padded layout -> original flat row order
    return final_rep, passed_z


def init_params(key, D_in, H, L):
    params = {"w_ih": [], "w_hh": [], "b_ih": [], "b_hh": []}

    def u(k, shape, fan_in):
        s = 1.0 / np.sqrt(fan_in)
        return jax.random.uniform(k, shape, jnp.float32, -s, s)

    keys = iter(jax.random.split(key, 4 * L + 8))
    for l in range(L):
        in_l = D_in if l == 0 else H
        params["w_ih"].append(u(next(keys), (in_l, 4 * H), H))   # transposed (in, 4H), gate order i,f,g,o
        params["w_hh"].append(u(next(keys), (H, 4 * H), H))
        params["b_ih"].append(u(next(keys), (4 * H,), H))
        params["b_hh"].append(u(next(keys), (4 * H,), H))
    params["w1"] = u(next(keys), (H, D_in), H)     # fc1: Linear(H, D_in), transposed
    params["b1"] = u(next(keys), (D_in,), H)
    params["w2"] = u(next(keys), (D_in, 1), D_in)  # fc2: Linear(D_in, 1), transposed
    params["b2"] = u(next(keys), (1,), D_in)
    params["w3"] = u(next(keys), (H, 16), H)       # mlp[0]: Linear(H, 16), transposed
    params["b3"] = u(next(keys), (16,), H)
    params["w4"] = u(next(keys), (16, 2), 16)      # mlp[1]: Linear(16, 2), transposed
    params["b4"] = u(next(keys), (2,), 16)
    return params


if __name__ == "__main__":
    D_in, H, L = 8, 32, 2                   # Tem_attNet_input_size, lstm_hidden_size, lstm_num_layers
    oneperson_batch_list = [3, 5, 4, 4]     # T = 16 total timesteps, P = 4 persons
    T = sum(oneperson_batch_list)

    key = jax.random.PRNGKey(0)
    kx, kp = jax.random.split(key)
    lstm_input = jax.random.normal(kx, (T, D_in), jnp.float32)
    params = init_params(kp, D_in, H, L)

    final_rep, passed_z = temporal_attention_net(lstm_input, oneperson_batch_list, params, seed=0)
    jax.block_until_ready((final_rep, passed_z))

    assert final_rep.shape == (len(oneperson_batch_list), 2)
    assert passed_z.shape == (T, D_in)
    assert bool(jnp.all(jnp.isfinite(final_rep))) and bool(jnp.all(jnp.isfinite(passed_z)))
    print("KERNEL_OK")
</pallas_src>

<mosaic_0001>
module attributes {stable_mosaic.version = 11 : i64} {
  func.func @kernel(%arg0: memref<40x8xf32, #tpu.memory_space<vmem>>, %arg1: memref<40x2xf32, #tpu.memory_space<vmem>>, %arg2: memref<32x32xf32, #tpu.memory_space<vmem>>, %arg3: memref<128x32xf32, #tpu.memory_space<vmem>>, %arg4: memref<128x32xf32, #tpu.memory_space<vmem>>, %arg5: memref<128x32xf32, #tpu.memory_space<vmem>>, %arg6: memref<8x32xf32, #tpu.memory_space<vmem>>, %arg7: memref<32x9xf32, #tpu.memory_space<vmem>>, %arg8: memref<1x9xf32, #tpu.memory_space<vmem>>, %arg9: memref<32x2xf32, #tpu.memory_space<vmem>>, %arg10: memref<1x2xf32, #tpu.memory_space<vmem>>, %arg11: memref<8x2xf32, #tpu.memory_space<vmem>>, %arg12: memref<40x8xf32, #tpu.memory_space<vmem>>) attributes {dimension_semantics = [], scalar_prefetch = 0 : i64, scratch_operands = 0 : i64, tpu.core_type = #tpu.core_type<tc>} {
    %c0 = arith.constant 0 : index
    %c0_0 = arith.constant 0 : index
    %0 = vector.load %arg0[%c0, %c0_0] : memref<40x8xf32, #tpu.memory_space<vmem>>, vector<40x8xf32>
    %c0_1 = arith.constant 0 : index
    %c0_2 = arith.constant 0 : index
    %1 = vector.load %arg2[%c0_1, %c0_2] : memref<32x32xf32, #tpu.memory_space<vmem>>, vector<32x32xf32>
    %c0_3 = arith.constant 0 : index
    %c0_4 = arith.constant 0 : index
    %2 = vector.load %arg3[%c0_3, %c0_4] : memref<128x32xf32, #tpu.memory_space<vmem>>, vector<128x32xf32>
    %3 = vector.extract_strided_slice %1 {offsets = [0, 0], sizes = [8, 32], strides = [1, 1]} : vector<32x32xf32> to vector<8x32xf32>
    %4 = vector.extract_strided_slice %1 {offsets = [8, 0], sizes = [8, 32], strides = [1, 1]} : vector<32x32xf32> to vector<8x32xf32>
    %5 = vector.extract_strided_slice %1 {offsets = [16, 0], sizes = [8, 32], strides = [1, 1]} : vector<32x32xf32> to vector<8x32xf32>
    %6 = vector.extract_strided_slice %1 {offsets = [24, 0], sizes = [8, 32], strides = [1, 1]} : vector<32x32xf32> to vector<8x32xf32>
    %7 = vector.extract_strided_slice %2 {offsets = [0, 0], sizes = [32, 32], strides = [1, 1]} : vector<128x32xf32> to vector<32x32xf32>
    %8 = vector.extract_strided_slice %2 {offsets = [32, 0], sizes = [32, 32], strides = [1, 1]} : vector<128x32xf32> to vector<32x32xf32>
    %9 = vector.extract_strided_slice %2 {offsets = [64, 0], sizes = [32, 32], strides = [1, 1]} : vector<128x32xf32> to vector<32x32xf32>
    %10 = vector.extract_strided_slice %2 {offsets = [96, 0], sizes = [32, 32], strides = [1, 1]} : vector<128x32xf32> to vector<32x32xf32>
    %c0_5 = arith.constant 0 : index
    %c0_6 = arith.constant 0 : index
    %11 = vector.load %arg6[%c0_5, %c0_6] : memref<8x32xf32, #tpu.memory_space<vmem>>, vector<1x32xf32>
    %c1 = arith.constant 1 : index
    %c0_7 = arith.constant 0 : index
    %12 = vector.load %arg6[%c1, %c0_7] : memref<8x32xf32, #tpu.memory_space<vmem>>, vector<1x32xf32>
    %c2 = arith.constant 2 : index
    %c0_8 = arith.constant 0 : index
    %13 = vector.load %arg6[%c2, %c0_8] : memref<8x32xf32, #tpu.memory_space<vmem>>, vector<1x32xf32>
    %c3 = arith.constant 3 : index
    %c0_9 = arith.constant 0 : index
    %14 = vector.load %arg6[%c3, %c0_9] : memref<8x32xf32, #tpu.memory_space<vmem>>, vector<1x32xf32>
    %cst = arith.constant dense<0.000000e+00> : vector<40x32xf32>
    %15 = tpu.matmul %0, %3, %cst {dimension_numbers = #tpu.dot_dimension_numbers<[1], [0], [0], [1], [0, 0, 1, 1], [], []>} : vector<40x8xf32>, vector<8x32xf32>, vector<40x32xf32> -> vector<40x32xf32>
    %16 = vector.broadcast %11 : vector<1x32xf32> to vector<40x32xf32>
    %17 = arith.addf %15, %16 : vector<40x32xf32>
    %cst_10 = arith.constant dense<0.000000e+00> : vector<40x32xf32>
    %18 = tpu.matmul %0, %4, %cst_10 {dimension_numbers = #tpu.dot_dimension_numbers<[1], [0], [0], [1], [0, 0, 1, 1], [], []>} : vector<40x8xf32>, vector<8x32xf32>, vector<40x32xf32> -> vector<40x32xf32>
    %19 = vector.broadcast %12 : vector<1x32xf32> to vector<40x32xf32>
    %20 = arith.addf %18, %19 : vector<40x32xf32>
    %cst_11 = arith.constant dense<0.000000e+00> : vector<40x32xf32>
    %21 = tpu.matmul %0, %5, %cst_11 {dimension_numbers = #tpu.dot_dimension_numbers<[1], [0], [0], [1], [0, 0, 1, 1], [], []>} : vector<40x8xf32>, vector<8x32xf32>, vector<40x32xf32> -> vector<40x32xf32>
    %22 = vector.broadcast %13 : vector<1x32xf32> to vector<40x32xf32>
    %23 = arith.addf %21, %22 : vector<40x32xf32>
    %cst_12 = arith.constant dense<0.000000e+00> : vector<40x32xf32>
    %24 = tpu.matmul %0, %6, %cst_12 {dimension_numbers = #tpu.dot_dimension_numbers<[1], [0], [0], [1], [0, 0, 1, 1], [], []>} : vector<40x8xf32>, vector<8x32xf32>, vector<40x32xf32> -> vector<40x32xf32>
    %25 = vector.broadcast %14 : vector<1x32xf32> to vector<40x32xf32>
    %26 = arith.addf %24, %25 : vector<40x32xf32>
    %cst_13 = arith.constant 0.000000e+00 : f32
    %27 = vector.broadcast %cst_13 : f32 to vector<8x32xf32>
    %cst_14 = arith.constant 0.000000e+00 : f32
    %28 = vector.broadcast %cst_14 : f32 to vector<8x32xf32>
    %29 = vector.extract_strided_slice %17 {offsets = [0, 0], sizes = [8, 32], strides = [1, 1]} : vector<40x32xf32> to vector<8x32xf32>
    %cst_15 = arith.constant dense<0.000000e+00> : vector<8x32xf32>
    %30 = tpu.matmul %27, %7, %cst_15 {dimension_numbers = #tpu.dot_dimension_numbers<[1], [0], [0], [1], [0, 0, 1, 1], [], []>} : vector<8x32xf32>, vector<32x32xf32>, vector<8x32xf32> -> vector<8x32xf32>
    %31 = arith.addf %29, %30 : vector<8x32xf32>
    %32 = arith.negf %31 : vector<8x32xf32>
    %33 = math.exp %32 : vector<8x32xf32>
    %cst_16 = arith.constant 1.000000e+00 : f32
    %34 = vector.broadcast %cst_16 : f32 to vector<8x32xf32>
    %35 = arith.addf %34, %33 : vector<8x32xf32>
    %36 = arith.divf %34, %35 : vector<8x32xf32>
    %37 = vector.extract_strided_slice %20 {offsets = [0, 0], sizes = [8, 32], strides = [1, 1]} : vector<40x32xf32> to vector<8x32xf32>
    %cst_17 = arith.constant dense<0.000000e+00> : vector<8x32xf32>
    %38 = tpu.matmul %27, %8, %cst_17 {dimension_numbers = #tpu.dot_dimension_numbers<[1], [0], [0], [1], [0, 0, 1, 1], [], []>} : vector<8x32xf32>, vector<32x32xf32>, vector<8x32xf32> -> vector<8x32xf32>
    %39 = arith.addf %37, %38 : vector<8x32xf32>
    %40 = arith.negf %39 : vector<8x32xf32>
    %41 = math.exp %40 : vector<8x32xf32>
    %cst_18 = arith.constant 1.000000e+00 : f32
    %42 = vector.broadcast %cst_18 : f32 to vector<8x32xf32>
    %43 = arith.addf %42, %41 : vector<8x32xf32>
    %44 = arith.divf %42, %43 : vector<8x32xf32>
    %45 = vector.extract_strided_slice %23 {offsets = [0, 0], sizes = [8, 32], strides = [1, 1]} : vector<40x32xf32> to vector<8x32xf32>
    %cst_19 = arith.constant dense<0.000000e+00> : vector<8x32xf32>
    %46 = tpu.matmul %27, %9, %cst_19 {dimension_numbers = #tpu.dot_dimension_numbers<[1], [0], [0], [1], [0, 0, 1, 1], [], []>} : vector<8x32xf32>, vector<32x32xf32>, vector<8x32xf32> -> vector<8x32xf32>
    %47 = arith.addf %45, %46 : vector<8x32xf32>
    %48 = math.tanh %47 : vector<8x32xf32>
    %49 = vector.extract_strided_slice %26 {offsets = [0, 0], sizes = [8, 32], strides = [1, 1]} : vector<40x32xf32> to vector<8x32xf32>
    %cst_20 = arith.constant dense<0.000000e+00> : vector<8x32xf32>
    %50 = tpu.matmul %27, %10, %cst_20 {dimension_numbers = #tpu.dot_dimension_numbers<[1], [0], [0], [1], [0, 0, 1, 1], [], []>} : vector<8x32xf32>, vector<32x32xf32>, vector<8x32xf32> -> vector<8x32xf32>
    %51 = arith.addf %49, %50 : vector<8x32xf32>
    %52 = arith.negf %51 : vector<8x32xf32>
    %53 = math.exp %52 : vector<8x32xf32>
    %cst_21 = arith.constant 1.000000e+00 : f32
    %54 = vector.broadcast %cst_21 : f32 to vector<8x32xf32>
    %55 = arith.addf %54, %53 : vector<8x32xf32>
    %56 = arith.divf %54, %55 : vector<8x32xf32>
    %57 = arith.mulf %44, %28 : vector<8x32xf32>
    %58 = arith.mulf %36, %48 : vector<8x32xf32>
    %59 = arith.addf %57, %58 : vector<8x32xf32>
    %60 = math.tanh %59 : vector<8x32xf32>
    %61 = arith.mulf %56, %60 : vector<8x32xf32>
    %62 = vector.extract_strided_slice %17 {offsets = [8, 0], sizes = [8, 32], strides = [1, 1]} : vector<40x32xf32> to vector<8x32xf32>
    %cst_22 = arith.constant dense<0.000000e+00> : vector<8x32xf32>
    %63 = tpu.matmul %61, %7, %cst_22 {dimension_numbers = #tpu.dot_dimension_numbers<[1], [0], [0], [1], [0, 0, 1, 1], [], []>} : vector<8x32xf32>, vector<32x32xf32>, vector<8x32xf32> -> vector<8x32xf32>
    %64 = arith.addf %62, %63 : vector<8x32xf32>
    %65 = arith.negf %64 : vector<8x32xf32>
    %66 = math.exp %65 : vector<8x32xf32>
    %cst_23 = arith.constant 1.000000e+00 : f32
    %67 = vector.broadcast %cst_23 : f32 to vector<8x32xf32>
    %68 = arith.addf %67, %66 : vector<8x32xf32>
    %69 = arith.divf %67, %68 : vector<8x32xf32>
    %70 = vector.extract_strided_slice %20 {offsets = [8, 0], sizes = [8, 32], strides = [1, 1]} : vector<40x32xf32> to vector<8x32xf32>
    %cst_24 = arith.constant dense<0.000000e+00> : vector<8x32xf32>
    %71 = tpu.matmul %61, %8, %cst_24 {dimension_numbers = #tpu.dot_dimension_numbers<[1], [0], [0], [1], [0, 0, 1, 1], [], []>} : vector<8x32xf32>, vector<32x32xf32>, vector<8x32xf32> -> vector<8x32xf32>
    %72 = arith.addf %70, %71 : vector<8x32xf32>
    %73 = arith.negf %72 : vector<8x32xf32>
    %74 = math.exp %73 : vector<8x32xf32>
    %cst_25 = arith.constant 1.000000e+00 : f32
    %75 = vector.broadcast %cst_25 : f32 to vector<8x32xf32>
    %76 = arith.addf %75, %74 : vector<8x32xf32>
    %77 = arith.divf %75, %76 : vector<8x32xf32>
    %78 = vector.extract_strided_slice %23 {offsets = [8, 0], sizes = [8, 32], strides = [1, 1]} : vector<40x32xf32> to vector<8x32xf32>
    %cst_26 = arith.constant dense<0.000000e+00> : vector<8x32xf32>
    %79 = tpu.matmul %61, %9, %cst_26 {dimension_numbers = #tpu.dot_dimension_numbers<[1], [0], [0], [1], [0, 0, 1, 1], [], []>} : vector<8x32xf32>, vector<32x32xf32>, vector<8x32xf32> -> vector<8x32xf32>
    %80 = arith.addf %78, %79 : vector<8x32xf32>
    %81 = math.tanh %80 : vector<8x32xf32>
    %82 = vector.extract_strided_slice %26 {offsets = [8, 0], sizes = [8, 32], strides = [1, 1]} : vector<40x32xf32> to vector<8x32xf32>
    %cst_27 = arith.constant dense<0.000000e+00> : vector<8x32xf32>
    %83 = tpu.matmul %61, %10, %cst_27 {dimension_numbers = #tpu.dot_dimension_numbers<[1], [0], [0], [1], [0, 0, 1, 1], [], []>} : vector<8x32xf32>, vector<32x32xf32>, vector<8x32xf32> -> vector<8x32xf32>
    %84 = arith.addf %82, %83 : vector<8x32xf32>
    %85 = arith.negf %84 : vector<8x32xf32>
    %86 = math.exp %85 : vector<8x32xf32>
    %cst_28 = arith.constant 1.000000e+00 : f32
    %87 = vector.broadcast %cst_28 : f32 to vector<8x32xf32>
    %88 = arith.addf %87, %86 : vector<8x32xf32>
    %89 = arith.divf %87, %88 : vector<8x32xf32>
    %90 = arith.mulf %77, %59 : vector<8x32xf32>
    %91 = arith.mulf %69, %81 : vector<8x32xf32>
    %92 = arith.addf %90, %91 : vector<8x32xf32>
    %93 = math.tanh %92 : vector<8x32xf32>
    %94 = arith.mulf %89, %93 : vector<8x32xf32>
    %95 = vector.extract_strided_slice %17 {offsets = [16, 0], sizes = [8, 32], strides = [1, 1]} : vector<40x32xf32> to vector<8x32xf32>
    %cst_29 = arith.constant dense<0.000000e+00> : vector<8x32xf32>
    %96 = tpu.matmul %94, %7, %cst_29 {dimension_numbers = #tpu.dot_dimension_numbers<[1], [0], [0], [1], [0, 0, 1, 1], [], []>} : vector<8x32xf32>, vector<32x32xf32>, vector<8x32xf32> -> vector<8x32xf32>
    %97 = arith.addf %95, %96 : vector<8x32xf32>
    %98 = arith.negf %97 : vector<8x32xf32>
    %99 = math.exp %98 : vector<8x32xf32>
    %cst_30 = arith.constant 1.000000e+00 : f32
    %100 = vector.broadcast %cst_30 : f32 to vector<8x32xf32>
    %101 = arith.addf %100, %99 : vector<8x32xf32>
    %102 = arith.divf %100, %101 : vector<8x32xf32>
    %103 = vector.extract_strided_slice %20 {offsets = [16, 0], sizes = [8, 32], strides = [1, 1]} : vector<40x32xf32> to vector<8x32xf32>
    %cst_31 = arith.constant dense<0.000000e+00> : vector<8x32xf32>
    %104 = tpu.matmul %94, %8, %cst_31 {dimension_numbers = #tpu.dot_dimension_numbers<[1], [0], [0], [1], [0, 0, 1, 1], [], []>} : vector<8x32xf32>, vector<32x32xf32>, vector<8x32xf32> -> vector<8x32xf32>
    %105 = arith.addf %103, %104 : vector<8x32xf32>
    %106 = arith.negf %105 : vector<8x32xf32>
    %107 = math.exp %106 : vector<8x32xf32>
    %cst_32 = arith.constant 1.000000e+00 : f32
    %108 = vector.broadcast %cst_32 : f32 to vector<8x32xf32>
    %109 = arith.addf %108, %107 : vector<8x32xf32>
    %110 = arith.divf %108, %109 : vector<8x32xf32>
    %111 = vector.extract_strided_slice %23 {offsets = [16, 0], sizes = [8, 32], strides = [1, 1]} : vector<40x32xf32> to vector<8x32xf32>
    %cst_33 = arith.constant dense<0.000000e+00> : vector<8x32xf32>
    %112 = tpu.matmul %94, %9, %cst_33 {dimension_numbers = #tpu.dot_dimension_numbers<[1], [0], [0], [1], [0, 0, 1, 1], [], []>} : vector<8x32xf32>, vector<32x32xf32>, vector<8x32xf32> -> vector<8x32xf32>
    %113 = arith.addf %111, %112 : vector<8x32xf32>
    %114 = math.tanh %113 : vector<8x32xf32>
    %115 = vector.extract_strided_slice %26 {offsets = [16, 0], sizes = [8, 32], strides = [1, 1]} : vector<40x32xf32> to vector<8x32xf32>
    %cst_34 = arith.constant dense<0.000000e+00> : vector<8x32xf32>
    %116 = tpu.matmul %94, %10, %cst_34 {dimension_numbers = #tpu.dot_dimension_numbers<[1], [0], [0], [1], [0, 0, 1, 1], [], []>} : vector<8x32xf32>, vector<32x32xf32>, vector<8x32xf32> -> vector<8x32xf32>
    %117 = arith.addf %115, %116 : vector<8x32xf32>
    %118 = arith.negf %117 : vector<8x32xf32>
    %119 = math.exp %118 : vector<8x32xf32>
    %cst_35 = arith.constant 1.000000e+00 : f32
    %120 = vector.broadcast %cst_35 : f32 to vector<8x32xf32>
    %121 = arith.addf %120, %119 : vector<8x32xf32>
    %122 = arith.divf %120, %121 : vector<8x32xf32>
    %123 = arith.mulf %110, %92 : vector<8x32xf32>
    %124 = arith.mulf %102, %114 : vector<8x32xf32>
    %125 = arith.addf %123, %124 : vector<8x32xf32>
    %126 = math.tanh %125 : vector<8x32xf32>
    %127 = arith.mulf %122, %126 : vector<8x32xf32>
    %128 = vector.extract_strided_slice %17 {offsets = [24, 0], sizes = [8, 32], strides = [1, 1]} : vector<40x32xf32> to vector<8x32xf32>
    %cst_36 = arith.constant dense<0.000000e+00> : vector<8x32xf32>
    %129 = tpu.matmul %127, %7, %cst_36 {dimension_numbers = #tpu.dot_dimension_numbers<[1], [0], [0], [1], [0, 0, 1, 1], [], []>} : vector<8x32xf32>, vector<32x32xf32>, vector<8x32xf32> -> vector<8x32xf32>
    %130 = arith.addf %128, %129 : vector<8x32xf32>
    %131 = arith.negf %130 : vector<8x32xf32>
    %132 = math.exp %131 : vector<8x32xf32>
    %cst_37 = arith.constant 1.000000e+00 : f32
    %133 = vector.broadcast %cst_37 : f32 to vector<8x32xf32>
    %134 = arith.addf %133, %132 : vector<8x32xf32>
    %135 = arith.divf %133, %134 : vector<8x32xf32>
    %136 = vector.extract_strided_slice %20 {offsets = [24, 0], sizes = [8, 32], strides = [1, 1]} : vector<40x32xf32> to vector<8x32xf32>
    %cst_38 = arith.constant dense<0.000000e+00> : vector<8x32xf32>
    %137 = tpu.matmul %127, %8, %cst_38 {dimension_numbers = #tpu.dot_dimension_numbers<[1], [0], [0], [1], [0, 0, 1, 1], [], []>} : vector<8x32xf32>, vector<32x32xf32>, vector<8x32xf32> -> vector<8x32xf32>
    %138 = arith.addf %136, %137 : vector<8x32xf32>
    %139 = arith.negf %138 : vector<8x32xf32>
    %140 = math.exp %139 : vector<8x32xf32>
    %cst_39 = arith.constant 1.000000e+00 : f32
    %141 = vector.broadcast %cst_39 : f32 to vector<8x32xf32>
    %142 = arith.addf %141, %140 : vector<8x32xf32>
    %143 = arith.divf %141, %142 : vector<8x32xf32>
    %144 = vector.extract_strided_slice %23 {offsets = [24, 0], sizes = [8, 32], strides = [1, 1]} : vector<40x32xf32> to vector<8x32xf32>
    %cst_40 = arith.constant dense<0.000000e+00> : vector<8x32xf32>
    %145 = tpu.matmul %127, %9, %cst_40 {dimension_numbers = #tpu.dot_dimension_numbers<[1], [0], [0], [1], [0, 0, 1, 1], [], []>} : vector<8x32xf32>, vector<32x32xf32>, vector<8x32xf32> -> vector<8x32xf32>
    %146 = arith.addf %144, %145 : vector<8x32xf32>
    %147 = math.tanh %146 : vector<8x32xf32>
    %148 = vector.extract_strided_slice %26 {offsets = [24, 0], sizes = [8, 32], strides = [1, 1]} : vector<40x32xf32> to vector<8x32xf32>
    %cst_41 = arith.constant dense<0.000000e+00> : vector<8x32xf32>
    %149 = tpu.matmul %127, %10, %cst_41 {dimension_numbers = #tpu.dot_dimension_numbers<[1], [0], [0], [1], [0, 0, 1, 1], [], []>} : vector<8x32xf32>, vector<32x32xf32>, vector<8x32xf32> -> vector<8x32xf32>
    %150 = arith.addf %148, %149 : vector<8x32xf32>
    %151 = arith.negf %150 : vector<8x32xf32>
    %152 = math.exp %151 : vector<8x32xf32>
    %cst_42 = arith.constant 1.000000e+00 : f32
    %153 = vector.broadcast %cst_42 : f32 to vector<8x32xf32>
    %154 = arith.addf %153, %152 : vector<8x32xf32>
    %155 = arith.divf %153, %154 : vector<8x32xf32>
    %156 = arith.mulf %143, %125 : vector<8x32xf32>
    %157 = arith.mulf %135, %147 : vector<8x32xf32>
    %158 = arith.addf %156, %157 : vector<8x32xf32>
    %159 = math.tanh %158 : vector<8x32xf32>
    %160 = arith.mulf %155, %159 : vector<8x32xf32>
    %161 = vector.extract_strided_slice %17 {offsets = [32, 0], sizes = [8, 32], strides = [1, 1]} : vector<40x32xf32> to vector<8x32xf32>
    %cst_43 = arith.constant dense<0.000000e+00> : vector<8x32xf32>
    %162 = tpu.matmul %160, %7, %cst_43 {dimension_numbers = #tpu.dot_dimension_numbers<[1], [0], [0], [1], [0, 0, 1, 1], [], []>} : vector<8x32xf32>, vector<32x32xf32>, vector<8x32xf32> -> vector<8x32xf32>
    %163 = arith.addf %161, %162 : vector<8x32xf32>
    %164 = arith.negf %163 : vector<8x32xf32>
    %165 = math.exp %164 : vector<8x32xf32>
    %cst_44 = arith.constant 1.000000e+00 : f32
    %166 = vector.broadcast %cst_44 : f32 to vector<8x32xf32>
    %167 = arith.addf %166, %165 : vector<8x32xf32>
    %168 = arith.divf %166, %167 : vector<8x32xf32>
    %169 = vector.extract_strided_slice %20 {offsets = [32, 0], sizes = [8, 32], strides = [1, 1]} : vector<40x32xf32> to vector<8x32xf32>
    %cst_45 = arith.constant dense<0.000000e+00> : vector<8x32xf32>
    %170 = tpu.matmul %160, %8, %cst_45 {dimension_numbers = #tpu.dot_dimension_numbers<[1], [0], [0], [1], [0, 0, 1, 1], [], []>} : vector<8x32xf32>, vector<32x32xf32>, vector<8x32xf32> -> vector<8x32xf32>
    %171 = arith.addf %169, %170 : vector<8x32xf32>
    %172 = arith.negf %171 : vector<8x32xf32>
    %173 = math.exp %172 : vector<8x32xf32>
    %cst_46 = arith.constant 1.000000e+00 : f32
    %174 = vector.broadcast %cst_46 : f32 to vector<8x32xf32>
    %175 = arith.addf %174, %173 : vector<8x32xf32>
    %176 = arith.divf %174, %175 : vector<8x32xf32>
    %177 = vector.extract_strided_slice %23 {offsets = [32, 0], sizes = [8, 32], strides = [1, 1]} : vector<40x32xf32> to vector<8x32xf32>
    %cst_47 = arith.constant dense<0.000000e+00> : vector<8x32xf32>
    %178 = tpu.matmul %160, %9, %cst_47 {dimension_numbers = #tpu.dot_dimension_numbers<[1], [0], [0], [1], [0, 0, 1, 1], [], []>} : vector<8x32xf32>, vector<32x32xf32>, vector<8x32xf32> -> vector<8x32xf32>
    %179 = arith.addf %177, %178 : vector<8x32xf32>
    %180 = math.tanh %179 : vector<8x32xf32>
    %181 = vector.extract_strided_slice %26 {offsets = [32, 0], sizes = [8, 32], strides = [1, 1]} : vector<40x32xf32> to vector<8x32xf32>
    %cst_48 = arith.constant dense<0.000000e+00> : vector<8x32xf32>
    %182 = tpu.matmul %160, %10, %cst_48 {dimension_numbers = #tpu.dot_dimension_numbers<[1], [0], [0], [1], [0, 0, 1, 1], [], []>} : vector<8x32xf32>, vector<32x32xf32>, vector<8x32xf32> -> vector<8x32xf32>
    %183 = arith.addf %181, %182 : vector<8x32xf32>
    %184 = arith.negf %183 : vector<8x32xf32>
    %185 = math.exp %184 : vector<8x32xf32>
    %cst_49 = arith.constant 1.000000e+00 : f32
    %186 = vector.broadcast %cst_49 : f32 to vector<8x32xf32>
    %187 = arith.addf %186, %185 : vector<8x32xf32>
    %188 = arith.divf %186, %187 : vector<8x32xf32>
    %189 = arith.mulf %176, %158 : vector<8x32xf32>
    %190 = arith.mulf %168, %180 : vector<8x32xf32>
    %191 = arith.addf %189, %190 : vector<8x32xf32>
    %192 = math.tanh %191 : vector<8x32xf32>
    %193 = arith.mulf %188, %192 : vector<8x32xf32>
    %194 = tpu.concatenate %61, %94, %127, %160, %193 in 0 : vector<8x32xf32>, vector<8x32xf32>, vector<8x32xf32>, vector<8x32xf32>, vector<8x32xf32> -> vector<40x32xf32>
    %c0_50 = arith.constant 0 : index
    %c0_51 = arith.constant 0 : index
    %195 = vector.load %arg4[%c0_50, %c0_51] : memref<128x32xf32, #tpu.memory_space<vmem>>, vector<128x32xf32>
    %c0_52 = arith.constant 0 : index
    %c0_53 = arith.constant 0 : index
    %196 = vector.load %arg5[%c0_52, %c0_53] : memref<128x32xf32, #tpu.memory_space<vmem>>, vector<128x32xf32>
    %197 = vector.extract_strided_slice %195 {offsets = [0, 0], sizes = [32, 32], strides = [1, 1]} : vector<128x32xf32> to vector<32x32xf32>
    %198 = vector.extract_strided_slice %195 {offsets = [32, 0], sizes = [32, 32], strides = [1, 1]} : vector<128x32xf32> to vector<32x32xf32>
    %199 = vector.extract_strided_slice %195 {offsets = [64, 0], sizes = [32, 32], strides = [1, 1]} : vector<128x32xf32> to vector<32x32xf32>
    %200 = vector.extract_strided_slice %195 {offsets = [96, 0], sizes = [32, 32], strides = [1, 1]} : vector<128x32xf32> to vector<32x32xf32>
    %201 = vector.extract_strided_slice %196 {offsets = [0, 0], sizes = [32, 32], strides = [1, 1]} : vector<128x32xf32> to vector<32x32xf32>
    %202 = vector.extract_strided_slice %196 {offsets = [32, 0], sizes = [32, 32], strides = [1, 1]} : vector<128x32xf32> to vector<32x32xf32>
    %203 = vector.extract_strided_slice %196 {offsets = [64, 0], sizes = [32, 32], strides = [1, 1]} : vector<128x32xf32> to vector<32x32xf32>
    %204 = vector.extract_strided_slice %196 {offsets = [96, 0], sizes = [32, 32], strides = [1, 1]} : vector<128x32xf32> to vector<32x32xf32>
    %c4 = arith.constant 4 : index
    %c0_54 = arith.constant 0 : index
    %205 = vector.load %arg6[%c4, %c0_54] : memref<8x32xf32, #tpu.memory_space<vmem>>, vector<1x32xf32>
    %c5 = arith.constant 5 : index
    %c0_55 = arith.constant 0 : index
    %206 = vector.load %arg6[%c5, %c0_55] : memref<8x32xf32, #tpu.memory_space<vmem>>, vector<1x32xf32>
    %c6 = arith.constant 6 : index
    %c0_56 = arith.constant 0 : index
    %207 = vector.load %arg6[%c6, %c0_56] : memref<8x32xf32, #tpu.memory_space<vmem>>, vector<1x32xf32>
    %c7 = arith.constant 7 : index
    %c0_57 = arith.constant 0 : index
    %208 = vector.load %arg6[%c7, %c0_57] : memref<8x32xf32, #tpu.memory_space<vmem>>, vector<1x32xf32>
    %cst_58 = arith.constant dense<0.000000e+00> : vector<40x32xf32>
    %209 = tpu.matmul %194, %197, %cst_58 {dimension_numbers = #tpu.dot_dimension_numbers<[1], [0], [0], [1], [0, 0, 1, 1], [], []>} : vector<40x32xf32>, vector<32x32xf32>, vector<40x32xf32> -> vector<40x32xf32>
    %210 = vector.broadcast %205 : vector<1x32xf32> to vector<40x32xf32>
    %211 = arith.addf %209, %210 : vector<40x32xf32>
    %cst_59 = arith.constant dense<0.000000e+00> : vector<40x32xf32>
    %212 = tpu.matmul %194, %198, %cst_59 {dimension_numbers = #tpu.dot_dimension_numbers<[1], [0], [0], [1], [0, 0, 1, 1], [], []>} : vector<40x32xf32>, vector<32x32xf32>, vector<40x32xf32> -> vector<40x32xf32>
    %213 = vector.broadcast %206 : vector<1x32xf32> to vector<40x32xf32>
    %214 = arith.addf %212, %213 : vector<40x32xf32>
    %cst_60 = arith.constant dense<0.000000e+00> : vector<40x32xf32>
    %215 = tpu.matmul %194, %199, %cst_60 {dimension_numbers = #tpu.dot_dimension_numbers<[1], [0], [0], [1], [0, 0, 1, 1], [], []>} : vector<40x32xf32>, vector<32x32xf32>, vector<40x32xf32> -> vector<40x32xf32>
    %216 = vector.broadcast %207 : vector<1x32xf32> to vector<40x32xf32>
    %217 = arith.addf %215, %216 : vector<40x32xf32>
    %cst_61 = arith.constant dense<0.000000e+00> : vector<40x32xf32>
    %218 = tpu.matmul %194, %200, %cst_61 {dimension_numbers = #tpu.dot_dimension_numbers<[1], [0], [0], [1], [0, 0, 1, 1], [], []>} : vector<40x32xf32>, vector<32x32xf32>, vector<40x32xf32> -> vector<40x32xf32>
    %219 = vector.broadcast %208 : vector<1x32xf32> to vector<40x32xf32>
    %220 = arith.addf %218, %219 : vector<40x32xf32>
    %cst_62 = arith.constant 0.000000e+00 : f32
    %221 = vector.broadcast %cst_62 : f32 to vector<8x32xf32>
    %cst_63 = arith.constant 0.000000e+00 : f32
    %222 = vector.broadcast %cst_63 : f32 to vector<8x32xf32>
    %223 = vector.extract_strided_slice %211 {offsets = [0, 0], sizes = [8, 32], strides = [1, 1]} : vector<40x32xf32> to vector<8x32xf32>
    %cst_64 = arith.constant dense<0.000000e+00> : vector<8x32xf32>
    %224 = tpu.matmul %221, %201, %cst_64 {dimension_numbers = #tpu.dot_dimension_numbers<[1], [0], [0], [1], [0, 0, 1, 1], [], []>} : vector<8x32xf32>, vector<32x32xf32>, vector<8x32xf32> -> vector<8x32xf32>
    %225 = arith.addf %223, %224 : vector<8x32xf32>
    %226 = arith.negf %225 : vector<8x32xf32>
    %227 = math.exp %226 : vector<8x32xf32>
    %cst_65 = arith.constant 1.000000e+00 : f32
    %228 = vector.broadcast %cst_65 : f32 to vector<8x32xf32>
    %229 = arith.addf %228, %227 : vector<8x32xf32>
    %230 = arith.divf %228, %229 : vector<8x32xf32>
    %231 = vector.extract_strided_slice %214 {offsets = [0, 0], sizes = [8, 32], strides = [1, 1]} : vector<40x32xf32> to vector<8x32xf32>
    %cst_66 = arith.constant dense<0.000000e+00> : vector<8x32xf32>
    %232 = tpu.matmul %221, %202, %cst_66 {dimension_numbers = #tpu.dot_dimension_numbers<[1], [0], [0], [1], [0, 0, 1, 1], [], []>} : vector<8x32xf32>, vector<32x32xf32>, vector<8x32xf32> -> vector<8x32xf32>
    %233 = arith.addf %231, %232 : vector<8x32xf32>
    %234 = arith.negf %233 : vector<8x32xf32>
    %235 = math.exp %234 : vector<8x32xf32>
    %cst_67 = arith.constant 1.000000e+00 : f32
    %236 = vector.broadcast %cst_67 : f32 to vector<8x32xf32>
    %237 = arith.addf %236, %235 : vector<8x32xf32>
    %238 = arith.divf %236, %237 : vector<8x32xf32>
    %239 = vector.extract_strided_slice %217 {offsets = [0, 0], sizes = [8, 32], strides = [1, 1]} : vector<40x32xf32> to vector<8x32xf32>
    %cst_68 = arith.constant dense<0.000000e+00> : vector<8x32xf32>
    %240 = tpu.matmul %221, %203, %cst_68 {dimension_numbers = #tpu.dot_dimension_numbers<[1], [0], [0], [1], [0, 0, 1, 1], [], []>} : vector<8x32xf32>, vector<32x32xf32>, vector<8x32xf32> -> vector<8x32xf32>
    %241 = arith.addf %239, %240 : vector<8x32xf32>
    %242 = math.tanh %241 : vector<8x32xf32>
    %243 = vector.extract_strided_slice %220 {offsets = [0, 0], sizes = [8, 32], strides = [1, 1]} : vector<40x32xf32> to vector<8x32xf32>
    %cst_69 = arith.constant dense<0.000000e+00> : vector<8x32xf32>
    %244 = tpu.matmul %221, %204, %cst_69 {dimension_numbers = #tpu.dot_dimension_numbers<[1], [0], [0], [1], [0, 0, 1, 1], [], []>} : vector<8x32xf32>, vector<32x32xf32>, vector<8x32xf32> -> vector<8x32xf32>
    %245 = arith.addf %243, %244 : vector<8x32xf32>
    %246 = arith.negf %245 : vector<8x32xf32>
    %247 = math.exp %246 : vector<8x32xf32>
    %cst_70 = arith.constant 1.000000e+00 : f32
    %248 = vector.broadcast %cst_70 : f32 to vector<8x32xf32>
    %249 = arith.addf %248, %247 : vector<8x32xf32>
    %250 = arith.divf %248, %249 : vector<8x32xf32>
    %251 = arith.mulf %238, %222 : vector<8x32xf32>
    %252 = arith.mulf %230, %242 : vector<8x32xf32>
    %253 = arith.addf %251, %252 : vector<8x32xf32>
    %254 = math.tanh %253 : vector<8x32xf32>
    %255 = arith.mulf %250, %254 : vector<8x32xf32>
    %256 = vector.extract_strided_slice %211 {offsets = [8, 0], sizes = [8, 32], strides = [1, 1]} : vector<40x32xf32> to vector<8x32xf32>
    %cst_71 = arith.constant dense<0.000000e+00> : vector<8x32xf32>
    %257 = tpu.matmul %255, %201, %cst_71 {dimension_numbers = #tpu.dot_dimension_numbers<[1], [0], [0], [1], [0, 0, 1, 1], [], []>} : vector<8x32xf32>, vector<32x32xf32>, vector<8x32xf32> -> vector<8x32xf32>
    %258 = arith.addf %256, %257 : vector<8x32xf32>
    %259 = arith.negf %258 : vector<8x32xf32>
    %260 = math.exp %259 : vector<8x32xf32>
    %cst_72 = arith.constant 1.000000e+00 : f32
    %261 = vector.broadcast %cst_72 : f32 to vector<8x32xf32>
    %262 = arith.addf %261, %260 : vector<8x32xf32>
    %263 = arith.divf %261, %262 : vector<8x32xf32>
    %264 = vector.extract_strided_slice %214 {offsets = [8, 0], sizes = [8, 32], strides = [1, 1]} : vector<40x32xf32> to vector<8x32xf32>
    %cst_73 = arith.constant dense<0.000000e+00> : vector<8x32xf32>
    %265 = tpu.matmul %255, %202, %cst_73 {dimension_numbers = #tpu.dot_dimension_numbers<[1], [0], [0], [1], [0, 0, 1, 1], [], []>} : vector<8x32xf32>, vector<32x32xf32>, vector<8x32xf32> -> vector<8x32xf32>
    %266 = arith.addf %264, %265 : vector<8x32xf32>
    %267 = arith.negf %266 : vector<8x32xf32>
    %268 = math.exp %267 : vector<8x32xf32>
    %cst_74 = arith.constant 1.000000e+00 : f32
    %269 = vector.broadcast %cst_74 : f32 to vector<8x32xf32>
    %270 = arith.addf %269, %268 : vector<8x32xf32>
    %271 = arith.divf %269, %270 : vector<8x32xf32>
    %272 = vector.extract_strided_slice %217 {offsets = [8, 0], sizes = [8, 32], strides = [1, 1]} : vector<40x32xf32> to vector<8x32xf32>
    %cst_75 = arith.constant dense<0.000000e+00> : vector<8x32xf32>
    %273 = tpu.matmul %255, %203, %cst_75 {dimension_numbers = #tpu.dot_dimension_numbers<[1], [0], [0], [1], [0, 0, 1, 1], [], []>} : vector<8x32xf32>, vector<32x32xf32>, vector<8x32xf32> -> vector<8x32xf32>
    %274 = arith.addf %272, %273 : vector<8x32xf32>
    %275 = math.tanh %274 : vector<8x32xf32>
    %276 = vector.extract_strided_slice %220 {offsets = [8, 0], sizes = [8, 32], strides = [1, 1]} : vector<40x32xf32> to vector<8x32xf32>
    %cst_76 = arith.constant dense<0.000000e+00> : vector<8x32xf32>
    %277 = tpu.matmul %255, %204, %cst_76 {dimension_numbers = #tpu.dot_dimension_numbers<[1], [0], [0], [1], [0, 0, 1, 1], [], []>} : vector<8x32xf32>, vector<32x32xf32>, vector<8x32xf32> -> vector<8x32xf32>
    %278 = arith.addf %276, %277 : vector<8x32xf32>
    %279 = arith.negf %278 : vector<8x32xf32>
    %280 = math.exp %279 : vector<8x32xf32>
    %cst_77 = arith.constant 1.000000e+00 : f32
    %281 = vector.broadcast %cst_77 : f32 to vector<8x32xf32>
    %282 = arith.addf %281, %280 : vector<8x32xf32>
    %283 = arith.divf %281, %282 : vector<8x32xf32>
    %284 = arith.mulf %271, %253 : vector<8x32xf32>
    %285 = arith.mulf %263, %275 : vector<8x32xf32>
    %286 = arith.addf %284, %285 : vector<8x32xf32>
    %287 = math.tanh %286 : vector<8x32xf32>
    %288 = arith.mulf %283, %287 : vector<8x32xf32>
    %289 = vector.extract_strided_slice %211 {offsets = [16, 0], sizes = [8, 32], strides = [1, 1]} : vector<40x32xf32> to vector<8x32xf32>
    %cst_78 = arith.constant dense<0.000000e+00> : vector<8x32xf32>
    %290 = tpu.matmul %288, %201, %cst_78 {dimension_numbers = #tpu.dot_dimension_numbers<[1], [0], [0], [1], [0, 0, 1, 1], [], []>} : vector<8x32xf32>, vector<32x32xf32>, vector<8x32xf32> -> vector<8x32xf32>
    %291 = arith.addf %289, %290 : vector<8x32xf32>
    %292 = arith.negf %291 : vector<8x32xf32>
    %293 = math.exp %292 : vector<8x32xf32>
    %cst_79 = arith.constant 1.000000e+00 : f32
    %294 = vector.broadcast %cst_79 : f32 to vector<8x32xf32>
    %295 = arith.addf %294, %293 : vector<8x32xf32>
    %296 = arith.divf %294, %295 : vector<8x32xf32>
    %297 = vector.extract_strided_slice %214 {offsets = [16, 0], sizes = [8, 32], strides = [1, 1]} : vector<40x32xf32> to vector<8x32xf32>
    %cst_80 = arith.constant dense<0.000000e+00> : vector<8x32xf32>
    %298 = tpu.matmul %288, %202, %cst_80 {dimension_numbers = #tpu.dot_dimension_numbers<[1], [0], [0], [1], [0, 0, 1, 1], [], []>} : vector<8x32xf32>, vector<32x32xf32>, vector<8x32xf32> -> vector<8x32xf32>
    %299 = arith.addf %297, %298 : vector<8x32xf32>
    %300 = arith.negf %299 : vector<8x32xf32>
    %301 = math.exp %300 : vector<8x32xf32>
    %cst_81 = arith.constant 1.000000e+00 : f32
    %302 = vector.broadcast %cst_81 : f32 to vector<8x32xf32>
    %303 = arith.addf %302, %301 : vector<8x32xf32>
    %304 = arith.divf %302, %303 : vector<8x32xf32>
    %305 = vector.extract_strided_slice %217 {offsets = [16, 0], sizes = [8, 32], strides = [1, 1]} : vector<40x32xf32> to vector<8x32xf32>
    %cst_82 = arith.constant dense<0.000000e+00> : vector<8x32xf32>
    %306 = tpu.matmul %288, %203, %cst_82 {dimension_numbers = #tpu.dot_dimension_numbers<[1], [0], [0], [1], [0, 0, 1, 1], [], []>} : vector<8x32xf32>, vector<32x32xf32>, vector<8x32xf32> -> vector<8x32xf32>
    %307 = arith.addf %305, %306 : vector<8x32xf32>
    %308 = math.tanh %307 : vector<8x32xf32>
    %309 = vector.extract_strided_slice %220 {offsets = [16, 0], sizes = [8, 32], strides = [1, 1]} : vector<40x32xf32> to vector<8x32xf32>
    %cst_83 = arith.constant dense<0.000000e+00> : vector<8x32xf32>
    %310 = tpu.matmul %288, %204, %cst_83 {dimension_numbers = #tpu.dot_dimension_numbers<[1], [0], [0], [1], [0, 0, 1, 1], [], []>} : vector<8x32xf32>, vector<32x32xf32>, vector<8x32xf32> -> vector<8x32xf32>
    %311 = arith.addf %309, %310 : vector<8x32xf32>
    %312 = arith.negf %311 : vector<8x32xf32>
    %313 = math.exp %312 : vector<8x32xf32>
    %cst_84 = arith.constant 1.000000e+00 : f32
    %314 = vector.broadcast %cst_84 : f32 to vector<8x32xf32>
    %315 = arith.addf %314, %313 : vector<8x32xf32>
    %316 = arith.divf %314, %315 : vector<8x32xf32>
    %317 = arith.mulf %304, %286 : vector<8x32xf32>
    %318 = arith.mulf %296, %308 : vector<8x32xf32>
    %319 = arith.addf %317, %318 : vector<8x32xf32>
    %320 = math.tanh %319 : vector<8x32xf32>
    %321 = arith.mulf %316, %320 : vector<8x32xf32>
    %322 = vector.extract_strided_slice %211 {offsets = [24, 0], sizes = [8, 32], strides = [1, 1]} : vector<40x32xf32> to vector<8x32xf32>
    %cst_85 = arith.constant dense<0.000000e+00> : vector<8x32xf32>
    %323 = tpu.matmul %321, %201, %cst_85 {dimension_numbers = #tpu.dot_dimension_numbers<[1], [0], [0], [1], [0, 0, 1, 1], [], []>} : vector<8x32xf32>, vector<32x32xf32>, vector<8x32xf32> -> vector<8x32xf32>
    %324 = arith.addf %322, %323 : vector<8x32xf32>
    %325 = arith.negf %324 : vector<8x32xf32>
    %326 = math.exp %325 : vector<8x32xf32>
    %cst_86 = arith.constant 1.000000e+00 : f32
    %327 = vector.broadcast %cst_86 : f32 to vector<8x32xf32>
    %328 = arith.addf %327, %326 : vector<8x32xf32>
    %329 = arith.divf %327, %328 : vector<8x32xf32>
    %330 = vector.extract_strided_slice %214 {offsets = [24, 0], sizes = [8, 32], strides = [1, 1]} : vector<40x32xf32> to vector<8x32xf32>
    %cst_87 = arith.constant dense<0.000000e+00> : vector<8x32xf32>
    %331 = tpu.matmul %321, %202, %cst_87 {dimension_numbers = #tpu.dot_dimension_numbers<[1], [0], [0], [1], [0, 0, 1, 1], [], []>} : vector<8x32xf32>, vector<32x32xf32>, vector<8x32xf32> -> vector<8x32xf32>
    %332 = arith.addf %330, %331 : vector<8x32xf32>
    %333 = arith.negf %332 : vector<8x32xf32>
    %334 = math.exp %333 : vector<8x32xf32>
    %cst_88 = arith.constant 1.000000e+00 : f32
    %335 = vector.broadcast %cst_88 : f32 to vector<8x32xf32>
    %336 = arith.addf %335, %334 : vector<8x32xf32>
    %337 = arith.divf %335, %336 : vector<8x32xf32>
    %338 = vector.extract_strided_slice %217 {offsets = [24, 0], sizes = [8, 32], strides = [1, 1]} : vector<40x32xf32> to vector<8x32xf32>
    %cst_89 = arith.constant dense<0.000000e+00> : vector<8x32xf32>
    %339 = tpu.matmul %321, %203, %cst_89 {dimension_numbers = #tpu.dot_dimension_numbers<[1], [0], [0], [1], [0, 0, 1, 1], [], []>} : vector<8x32xf32>, vector<32x32xf32>, vector<8x32xf32> -> vector<8x32xf32>
    %340 = arith.addf %338, %339 : vector<8x32xf32>
    %341 = math.tanh %340 : vector<8x32xf32>
    %342 = vector.extract_strided_slice %220 {offsets = [24, 0], sizes = [8, 32], strides = [1, 1]} : vector<40x32xf32> to vector<8x32xf32>
    %cst_90 = arith.constant dense<0.000000e+00> : vector<8x32xf32>
    %343 = tpu.matmul %321, %204, %cst_90 {dimension_numbers = #tpu.dot_dimension_numbers<[1], [0], [0], [1], [0, 0, 1, 1], [], []>} : vector<8x32xf32>, vector<32x32xf32>, vector<8x32xf32> -> vector<8x32xf32>
    %344 = arith.addf %342, %343 : vector<8x32xf32>
    %345 = arith.negf %344 : vector<8x32xf32>
    %346 = math.exp %345 : vector<8x32xf32>
    %cst_91 = arith.constant 1.000000e+00 : f32
    %347 = vector.broadcast %cst_91 : f32 to vector<8x32xf32>
    %348 = arith.addf %347, %346 : vector<8x32xf32>
    %349 = arith.divf %347, %348 : vector<8x32xf32>
    %350 = arith.mulf %337, %319 : vector<8x32xf32>
    %351 = arith.mulf %329, %341 : vector<8x32xf32>
    %352 = arith.addf %350, %351 : vector<8x32xf32>
    %353 = math.tanh %352 : vector<8x32xf32>
    %354 = arith.mulf %349, %353 : vector<8x32xf32>
    %355 = vector.extract_strided_slice %211 {offsets = [32, 0], sizes = [8, 32], strides = [1, 1]} : vector<40x32xf32> to vector<8x32xf32>
    %cst_92 = arith.constant dense<0.000000e+00> : vector<8x32xf32>
    %356 = tpu.matmul %354, %201, %cst_92 {dimension_numbers = #tpu.dot_dimension_numbers<[1], [0], [0], [1], [0, 0, 1, 1], [], []>} : vector<8x32xf32>, vector<32x32xf32>, vector<8x32xf32> -> vector<8x32xf32>
    %357 = arith.addf %355, %356 : vector<8x32xf32>
    %358 = arith.negf %357 : vector<8x32xf32>
    %359 = math.exp %358 : vector<8x32xf32>
    %cst_93 = arith.constant 1.000000e+00 : f32
    %360 = vector.broadcast %cst_93 : f32 to vector<8x32xf32>
    %361 = arith.addf %360, %359 : vector<8x32xf32>
    %362 = arith.divf %360, %361 : vector<8x32xf32>
    %363 = vector.extract_strided_slice %214 {offsets = [32, 0], sizes = [8, 32], strides = [1, 1]} : vector<40x32xf32> to vector<8x32xf32>
    %cst_94 = arith.constant dense<0.000000e+00> : vector<8x32xf32>
    %364 = tpu.matmul %354, %202, %cst_94 {dimension_numbers = #tpu.dot_dimension_numbers<[1], [0], [0], [1], [0, 0, 1, 1], [], []>} : vector<8x32xf32>, vector<32x32xf32>, vector<8x32xf32> -> vector<8x32xf32>
    %365 = arith.addf %363, %364 : vector<8x32xf32>
    %366 = arith.negf %365 : vector<8x32xf32>
    %367 = math.exp %366 : vector<8x32xf32>
    %cst_95 = arith.constant 1.000000e+00 : f32
    %368 = vector.broadcast %cst_95 : f32 to vector<8x32xf32>
    %369 = arith.addf %368, %367 : vector<8x32xf32>
    %370 = arith.divf %368, %369 : vector<8x32xf32>
    %371 = vector.extract_strided_slice %217 {offsets = [32, 0], sizes = [8, 32], strides = [1, 1]} : vector<40x32xf32> to vector<8x32xf32>
    %cst_96 = arith.constant dense<0.000000e+00> : vector<8x32xf32>
    %372 = tpu.matmul %354, %203, %cst_96 {dimension_numbers = #tpu.dot_dimension_numbers<[1], [0], [0], [1], [0, 0, 1, 1], [], []>} : vector<8x32xf32>, vector<32x32xf32>, vector<8x32xf32> -> vector<8x32xf32>
    %373 = arith.addf %371, %372 : vector<8x32xf32>
    %374 = math.tanh %373 : vector<8x32xf32>
    %375 = vector.extract_strided_slice %220 {offsets = [32, 0], sizes = [8, 32], strides = [1, 1]} : vector<40x32xf32> to vector<8x32xf32>
    %cst_97 = arith.constant dense<0.000000e+00> : vector<8x32xf32>
    %376 = tpu.matmul %354, %204, %cst_97 {dimension_numbers = #tpu.dot_dimension_numbers<[1], [0], [0], [1], [0, 0, 1, 1], [], []>} : vector<8x32xf32>, vector<32x32xf32>, vector<8x32xf32> -> vector<8x32xf32>
    %377 = arith.addf %375, %376 : vector<8x32xf32>
    %378 = arith.negf %377 : vector<8x32xf32>
    %379 = math.exp %378 : vector<8x32xf32>
    %cst_98 = arith.constant 1.000000e+00 : f32
    %380 = vector.broadcast %cst_98 : f32 to vector<8x32xf32>
    %381 = arith.addf %380, %379 : vector<8x32xf32>
    %382 = arith.divf %380, %381 : vector<8x32xf32>
    %383 = arith.mulf %370, %352 : vector<8x32xf32>
    %384 = arith.mulf %362, %374 : vector<8x32xf32>
    %385 = arith.addf %383, %384 : vector<8x32xf32>
    %386 = math.tanh %385 : vector<8x32xf32>
    %387 = arith.mulf %382, %386 : vector<8x32xf32>
    %388 = tpu.concatenate %255, %288, %321, %354, %387 in 0 : vector<8x32xf32>, vector<8x32xf32>, vector<8x32xf32>, vector<8x32xf32>, vector<8x32xf32> -> vector<40x32xf32>
    %c0_99 = arith.constant 0 : index
    %c0_100 = arith.constant 0 : index
    %389 = vector.load %arg7[%c0_99, %c0_100] : memref<32x9xf32, #tpu.memory_space<vmem>>, vector<32x9xf32>
    %cst_101 = arith.constant dense<0.000000e+00> : vector<40x9xf32>
    %390 = tpu.matmul %388, %389, %cst_101 {dimension_numbers = #tpu.dot_dimension_numbers<[1], [0], [0], [1], [0, 0, 1, 1], [], []>} : vector<40x32xf32>, vector<32x9xf32>, vector<40x9xf32> -> vector<40x9xf32>
    %c0_102 = arith.constant 0 : index
    %c0_103 = arith.constant 0 : index
    %391 = vector.load %arg8[%c0_102, %c0_103] : memref<1x9xf32, #tpu.memory_space<vmem>>, vector<1x9xf32>
    %392 = vector.broadcast %391 : vector<1x9xf32> to vector<40x9xf32>
    %393 = arith.addf %390, %392 : vector<40x9xf32>
    %394 = vector.extract_strided_slice %393 {offsets = [0, 0], sizes = [40, 8], strides = [1, 1]} : vector<40x9xf32> to vector<40x8xf32>
    %c0_104 = arith.constant 0 : index
    %c0_105 = arith.constant 0 : index
    %395 = vector.load %arg12[%c0_104, %c0_105] : memref<40x8xf32, #tpu.memory_space<vmem>>, vector<40x8xf32>
    tpu.vector_store %arg12[%c0_104, %c0_105], %394 {strides = array<i32>} : memref<40x8xf32, #tpu.memory_space<vmem>>, vector<40x8xf32>,
    %396 = vector.extract_strided_slice %393 {offsets = [0, 8], sizes = [40, 1], strides = [1, 1]} : vector<40x9xf32> to vector<40x1xf32>
    %c0_106 = arith.constant 0 : index
    %c0_107 = arith.constant 0 : index
    %397 = vector.load %arg1[%c0_106, %c0_107] : memref<40x2xf32, #tpu.memory_space<vmem>>, vector<40x1xf32>
    %c0_108 = arith.constant 0 : index
    %c1_109 = arith.constant 1 : index
    %398 = vector.load %arg1[%c0_108, %c1_109] : memref<40x2xf32, #tpu.memory_space<vmem>>, vector<40x1xf32>
    %399 = arith.addf %397, %396 : vector<40x1xf32>
    %400 = arith.negf %399 : vector<40x1xf32>
    %401 = math.exp %400 : vector<40x1xf32>
    %cst_110 = arith.constant 1.000000e+00 : f32
    %402 = vector.broadcast %cst_110 : f32 to vector<40x1xf32>
    %403 = arith.addf %402, %401 : vector<40x1xf32>
    %404 = arith.divf %402, %403 : vector<40x1xf32>
    %405 = arith.mulf %404, %398 : vector<40x1xf32>
    %406 = vector.broadcast %405 : vector<40x1xf32> to vector<40x32xf32>
    %407 = arith.mulf %388, %406 : vector<40x32xf32>
    %cst_111 = arith.constant 0.000000e+00 : f32
    %408 = vector.broadcast %cst_111 : f32 to vector<8x32xf32>
    %409 = vector.extract_strided_slice %407 {offsets = [0, 0], sizes = [8, 32], strides = [1, 1]} : vector<40x32xf32> to vector<8x32xf32>
    %410 = arith.addf %408, %409 : vector<8x32xf32>
    %411 = vector.extract_strided_slice %407 {offsets = [8, 0], sizes = [8, 32], strides = [1, 1]} : vector<40x32xf32> to vector<8x32xf32>
    %412 = arith.addf %410, %411 : vector<8x32xf32>
    %413 = vector.extract_strided_slice %407 {offsets = [16, 0], sizes = [8, 32], strides = [1, 1]} : vector<40x32xf32> to vector<8x32xf32>
    %414 = arith.addf %412, %413 : vector<8x32xf32>
    %415 = vector.extract_strided_slice %407 {offsets = [24, 0], sizes = [8, 32], strides = [1, 1]} : vector<40x32xf32> to vector<8x32xf32>
    %416 = arith.addf %414, %415 : vector<8x32xf32>
    %417 = vector.extract_strided_slice %407 {offsets = [32, 0], sizes = [8, 32], strides = [1, 1]} : vector<40x32xf32> to vector<8x32xf32>
    %418 = arith.addf %416, %417 : vector<8x32xf32>
    %c0_112 = arith.constant 0 : index
    %c0_113 = arith.constant 0 : index
    %419 = vector.load %arg9[%c0_112, %c0_113] : memref<32x2xf32, #tpu.memory_space<vmem>>, vector<32x2xf32>
    %cst_114 = arith.constant dense<0.000000e+00> : vector<8x2xf32>
    %420 = tpu.matmul %418, %419, %cst_114 {dimension_numbers = #tpu.dot_dimension_numbers<[1], [0], [0], [1], [0, 0, 1, 1], [], []>} : vector<8x32xf32>, vector<32x2xf32>, vector<8x2xf32> -> vector<8x2xf32>
    %c0_115 = arith.constant 0 : index
    %c0_116 = arith.constant 0 : index
    %421 = vector.load %arg10[%c0_115, %c0_116] : memref<1x2xf32, #tpu.memory_space<vmem>>, vector<1x2xf32>
    %422 = vector.broadcast %421 : vector<1x2xf32> to vector<8x2xf32>
    %423 = arith.addf %420, %422 : vector<8x2xf32>
    %c0_117 = arith.constant 0 : index
    %c0_118 = arith.constant 0 : index
    %424 = vector.load %arg11[%c0_117, %c0_118] : memref<8x2xf32, #tpu.memory_space<vmem>>, vector<8x2xf32>
    tpu.vector_store %arg11[%c0_117, %c0_118], %423 {strides = array<i32>} : memref<8x2xf32, #tpu.memory_space<vmem>>, vector<8x2xf32>,
    return
  }
}

</mosaic_0001>

<llo_original>
// kernel: tpu_custom_call.1
$region0: #{tpu_custom_call.1}
  #allocation0 [shape = 'u32[]', space=smem, size = 0x4, offset = 0x4, fixed_abs, tag = 'smem constant byte address 0x4 - core index']
  #allocation1 [shape = 'u32[144,128]{1,0:T(1,128)}', space=vmem, size = 0x12000, scoped, tag = 'internal scratch']
  %s0 = inlined_call_operand.vmem [shape: f32[40,8], index: 0, kind: input, shape index: {}]
  %s1 = inlined_call_operand.vmem [shape: f32[40,2], index: 1, kind: input, shape index: {}]
  %s2 = inlined_call_operand.vmem [shape: f32[32,32], index: 2, kind: input, shape index: {}]
  %s3 = inlined_call_operand.vmem [shape: f32[128,32], index: 3, kind: input, shape index: {}]
  %s4 = inlined_call_operand.vmem [shape: f32[128,32], index: 4, kind: input, shape index: {}]
  %s5 = inlined_call_operand.vmem [shape: f32[128,32], index: 5, kind: input, shape index: {}]
  %s6 = inlined_call_operand.vmem [shape: f32[8,32], index: 6, kind: input, shape index: {}]
  %s7 = inlined_call_operand.vmem [shape: f32[32,9], index: 7, kind: input, shape index: {}]
  %s8 = inlined_call_operand.vmem [shape: f32[1,9], index: 8, kind: input, shape index: {}]
  %s9 = inlined_call_operand.vmem [shape: f32[32,2], index: 9, kind: input, shape index: {}]
  %s10 = inlined_call_operand.vmem [shape: f32[1,2], index: 10, kind: input, shape index: {}]
  %s11 = inlined_call_operand.vmem [shape: f32[8,2], index: 11, kind: output, shape index: {0}]
  %s12 = inlined_call_operand.vmem [shape: f32[40,8], index: 12, kind: output, shape index: {1}]
  %13 = xla_tuple %s11, %s12
  %s14 = sld [smem:[#allocation0]]
  $region62: #{tpu_custom_call.1} parent=0
    _
  %s16 = ssub.s32 1, %s14
  %s17 = scalar_select 0, %s16, %s14
  // Predicated region
  $region2: #{tpu_custom_call.1} parent=0 // pred_check
    _
  $region3: #{tpu_custom_call.1} parent=0 // pred_check_branch
    %19 = sbr.rel (0) target = $region5
  $region4: #{tpu_custom_call.1} parent=0 // pred_region
    _
  $region5: #{tpu_custom_call.1} parent=0 // pred_fallthru
    _
  // Predicated region
  $region6: #{tpu_custom_call.1} parent=0 // pred_check
    _
  $region7: #{tpu_custom_call.1} parent=0 // pred_check_branch
    %21 = sbr.rel (0) target = $region9
  $region8: #{tpu_custom_call.1} parent=0 // pred_region
    _
  $region9: #{tpu_custom_call.1} parent=0 // pred_fallthru
    _
  // Predicated region
  $region10: #{tpu_custom_call.1} parent=0 // pred_check
    _
  $region11: #{tpu_custom_call.1} parent=0 // pred_check_branch
    %23 = sbr.rel (0) target = $region13
  $region12: #{tpu_custom_call.1} parent=0 // pred_region
    _
  $region13: #{tpu_custom_call.1} parent=0 // pred_fallthru
    _
  // Predicated region
  $region14: #{tpu_custom_call.1} parent=0 // pred_check
    _
  $region15: #{tpu_custom_call.1} parent=0 // pred_check_branch
    %25 = sbr.rel (0) target = $region17
  $region16: #{tpu_custom_call.1} parent=0 // pred_region
    _
  $region17: #{tpu_custom_call.1} parent=0 // pred_fallthru
    _
  // Predicated region
  $region18: #{tpu_custom_call.1} parent=0 // pred_check
    _
  $region19: #{tpu_custom_call.1} parent=0 // pred_check_branch
    %27 = sbr.rel (0) target = $region21
  $region20: #{tpu_custom_call.1} parent=0 // pred_region
    _
  $region21: #{tpu_custom_call.1} parent=0 // pred_fallthru
    _
  // Predicated region
  $region22: #{tpu_custom_call.1} parent=0 // pred_check
    _
  $region23: #{tpu_custom_call.1} parent=0 // pred_check_branch
    %29 = sbr.rel (0) target = $region25
  $region24: #{tpu_custom_call.1} parent=0 // pred_region
    _
  $region25: #{tpu_custom_call.1} parent=0 // pred_fallthru
    _
  // Predicated region
  $region26: #{tpu_custom_call.1} parent=0 // pred_check
    _
  $region27: #{tpu_custom_call.1} parent=0 // pred_check_branch
    %31 = sbr.rel (0) target = $region29
  $region28: #{tpu_custom_call.1} parent=0 // pred_region
    _
  $region29: #{tpu_custom_call.1} parent=0 // pred_fallthru
    _
  // Predicated region
  $region30: #{tpu_custom_call.1} parent=0 // pred_check
    _
  $region31: #{tpu_custom_call.1} parent=0 // pred_check_branch
    %33 = sbr.rel (0) target = $region33
  $region32: #{tpu_custom_call.1} parent=0 // pred_region
    _
  $region33: #{tpu_custom_call.1} parent=0 // pred_fallthru
    _
  // Predicated region
  $region34: #{tpu_custom_call.1} parent=0 // pred_check
    _
  $region35: #{tpu_custom_call.1} parent=0 // pred_check_branch
    %35 = sbr.rel (0) target = $region37
  $region36: #{tpu_custom_call.1} parent=0 // pred_region
    _
  $region37: #{tpu_custom_call.1} parent=0 // pred_fallthru
    _
  // Predicated region
  $region38: #{tpu_custom_call.1} parent=0 // pred_check
    _
  $region39: #{tpu_custom_call.1} parent=0 // pred_check_branch
    %37 = sbr.rel (0) target = $region41
  $region40: #{tpu_custom_call.1} parent=0 // pred_region
    _
  $region41: #{tpu_custom_call.1} parent=0 // pred_fallthru
    _
  // Predicated region
  $region42: #{tpu_custom_call.1} parent=0 // pred_check
    _
  $region43: #{tpu_custom_call.1} parent=0 // pred_check_branch
    %39 = sbr.rel (0) target = $region45
  $region44: #{tpu_custom_call.1} parent=0 // pred_region
    _
  $region45: #{tpu_custom_call.1} parent=0 // pred_fallthru
    _
  %v40 = vld [vmem:[%s0] sm:$0xff]
  %v41 = vld [vmem:[%s0 + $0x8] sm:$0xff]
  %v42 = vld [vmem:[%s0 + $0x10] sm:$0xff]
  %v43 = vld [vmem:[%s0 + $0x18] sm:$0xff]
  %v44 = vld [vmem:[%s0 + $0x20] sm:$0xff]
  %v45 = vld [vmem:[%s2] sm:$0xff]
  %v46 = vld [vmem:[%s2 + $0x8] sm:$0xff]
  %v47 = vld [vmem:[%s2 + $0x10] sm:$0xff]
  %v48 = vld [vmem:[%s2 + $0x18] sm:$0xff]
  %v49 = vld [vmem:[%s3] sm:$0xff]
  %v50 = vld [vmem:[%s3 + $0x8] sm:$0xff]
  %v51 = vld [vmem:[%s3 + $0x10] sm:$0xff]
  %v52 = vld [vmem:[%s3 + $0x18] sm:$0xff]
  %v53 = vld [vmem:[%s3 + $0x20] sm:$0xff]
  %v54 = vld [vmem:[%s3 + $0x28] sm:$0xff]
  %v55 = vld [vmem:[%s3 + $0x30] sm:$0xff]
  %v56 = vld [vmem:[%s3 + $0x38] sm:$0xff]
  %v57 = vld [vmem:[%s3 + $0x40] sm:$0xff]
  %v58 = vld [vmem:[%s3 + $0x48] sm:$0xff]
  %v59 = vld [vmem:[%s3 + $0x50] sm:$0xff]
  %v60 = vld [vmem:[%s3 + $0x58] sm:$0xff]
  %v61 = vld [vmem:[%s3 + $0x60] sm:$0xff]
  %v62 = vld [vmem:[%s3 + $0x68] sm:$0xff]
  %v63 = vld [vmem:[%s3 + $0x70] sm:$0xff]
  %v64 = vld [vmem:[%s3 + $0x78] sm:$0xff]
  %v65 = vld [vmem:[%s6] sm:$0x1]
  %v66 = vld [vmem:[%s6 + $0x1] sm:$0x1]
  %v67 = vld [vmem:[%s6 + $0x2] sm:$0x1]
  %v68 = vld [vmem:[%s6 + $0x3] sm:$0x1]
  %v69 = vlaneseq
  %v70 = vshrl.u32 %v69, 7
  %v71 = vsub.s32 0, %v70
  %v72 = vrot.slane %v65, %v71
  %vm73 = vcmask 64512
  %v75 = vsel %vm73, %v40, 0
  %v78 = vsel %vm73, %v41, 0
  %v81 = vsel %vm73, %v42, 0
  %v84 = vsel %vm73, %v43, 0
  %v87 = vsel %vm73, %v44, 0
  %89 = vmatprep.subr.mxu0 0.0
  %90 = vmatpush1.msra.mxu0 %v45
  %91 = vmatprep.subr.mxu0 0.0
  %92 = vmatpush1.msra.mxu0 0.0
  %93 = vmatprep.subr.mxu0 0.0
  %94 = vmatpush1.msra.mxu0 0.0
  %95 = vmatprep.subr.mxu0 0.0
  %96 = vmatpush1.msra.mxu0 0.0
  %97 = vmatprep.subr.mxu0 0.0
  %98 = vmatpush1.msra.mxu0 0.0
  %99 = vmatprep.subr.mxu0 0.0
  %100 = vmatpush1.msra.mxu0 0.0
  %101 = vmatprep.subr.mxu0 0.0
  %102 = vmatpush1.msra.mxu0 0.0
  %103 = vmatprep.subr.mxu0 0.0
  %104 = vmatpush1.msra.mxu0 0.0
  %105 = vmatprep.subr.mxu0 0.0
  %106 = vmatpush1.msra.mxu0 0.0
  %107 = vmatprep.subr.mxu0 0.0
  %108 = vmatpush1.msra.mxu0 0.0
  %109 = vmatprep.subr.mxu0 0.0
  %110 = vmatpush1.msra.mxu0 0.0
  %111 = vmatprep.subr.mxu0 0.0
  %112 = vmatpush1.msra.mxu0 0.0
  %113 = vmatprep.subr.mxu0 0.0
  %114 = vmatpush1.msra.mxu0 0.0
  %115 = vmatprep.subr.mxu0 0.0
  %116 = vmatpush1.msra.mxu0 0.0
  %117 = vmatprep.subr.mxu0 0.0
  %118 = vmatpush1.msra.mxu0 0.0
  %119 = vmatprep.subr.mxu0 0.0
  %120 = vmatpush1.msra.mxu0 0.0
  %121 = vmatprep.subr.mxu0 0.0
  %122 = vmatpush1.msra.mxu0 0.0
  %123 = vmatprep.subr.mxu0 0.0
  %124 = vmatpush1.msra.mxu0 0.0
  %125 = vmatprep.subr.mxu0 0.0
  %126 = vmatpush1.msra.mxu0 0.0
  %127 = vmatprep.subr.mxu0 0.0
  %128 = vmatpush1.msra.mxu0 0.0
  %129 = vmatprep.subr.mxu0 0.0
  %130 = vmatpush1.msra.mxu0 0.0
  %131 = vmatprep.subr.mxu0 0.0
  %132 = vmatpush1.msra.mxu0 0.0
  %133 = vmatprep.subr.mxu0 0.0
  %134 = vmatpush1.msra.mxu0 0.0
  %135 = vmatprep.subr.mxu0 0.0
  %136 = vmatpush1.msra.mxu0 0.0
  %137 = vmatprep.subr.mxu0 0.0
  %138 = vmatpush1.msra.mxu0 0.0
  %139 = vmatprep.subr.mxu0 0.0
  %140 = vmatpush1.msra.mxu0 0.0
  %141 = vmatprep.subr.mxu0 0.0
  %142 = vmatpush1.msra.mxu0 0.0
  %143 = vmatprep.subr.mxu0 0.0
  %144 = vmatpush1.msra.mxu0 0.0
  %145 = vmatprep.subr.mxu0 0.0
  %146 = vmatpush1.msra.mxu0 0.0
  %147 = vmatprep.subr.mxu0 0.0
  %148 = vmatpush1.msra.mxu0 0.0
  %149 = vmatprep.subr.mxu0 0.0
  %150 = vmatpush1.msra.mxu0 0.0
  %151 = vmatprep.subr.mxu0 0.0
  %152 = vmatpush1.msra.mxu0 0.0
  %153 = vmatprep.mubr.f32.mxu0 0.0
  %154 = vmatmul.mubr.f32.gmra.mrb[0].mxu0 %v75
  %v155 = vpop.f32.mrb[0].mxu0
  %v156 = vadd.f32 %v72, %v155
  %v157 = vpop.f32.mrb[0].mxu0
  %158 = vmatprep.mubr.f32.mxu0 0.0
  %159 = vmatmul.mubr.f32.gmra.mrb[0].mxu0 %v78
  %v160 = vpop.f32.mrb[0].mxu0
  %v161 = vadd.f32 %v72, %v160
  %v162 = vpop.f32.mrb[0].mxu0
  %163 = vmatprep.mubr.f32.mxu0 0.0
  %164 = vmatmul.mubr.f32.gmra.mrb[0].mxu0 %v81
  %v165 = vpop.f32.mrb[0].mxu0
  %v166 = vadd.f32 %v72, %v165
  %v167 = vpop.f32.mrb[0].mxu0
  %168 = vmatprep.mubr.f32.mxu0 0.0
  %169 = vmatmul.mubr.f32.gmra.mrb[0].mxu0 %v84
  %v170 = vpop.f32.mrb[0].mxu0
  %v171 = vadd.f32 %v72, %v170
  %v172 = vpop.f32.mrb[0].mxu0
  %173 = vmatprep.mubr.f32.mxu0 0.0
  %174 = vmatmul.mubr.f32.gmra.mrb[0].mxu0 %v87
  %v175 = vpop.f32.mrb[0].mxu0
  %v176 = vadd.f32 %v72, %v175
  %v177 = vpop.f32.mrb[0].mxu0
  %178 = vdwg.mxu0
  %v179 = vlaneseq
  %v180 = vshrl.u32 %v179, 7
  %v181 = vsub.s32 0, %v180
  %v182 = vrot.slane %v66, %v181
  %183 = vmatprep.subr.mxu0 0.0
  %184 = vmatpush1.msra.mxu0 %v46
  %185 = vmatprep.subr.mxu0 0.0
  %186 = vmatpush1.msra.mxu0 0.0
  %187 = vmatprep.subr.mxu0 0.0
  %188 = vmatpush1.msra.mxu0 0.0
  %189 = vmatprep.subr.mxu0 0.0
  %190 = vmatpush1.msra.mxu0 0.0
  %191 = vmatprep.subr.mxu0 0.0
  %192 = vmatpush1.msra.mxu0 0.0
  %193 = vmatprep.subr.mxu0 0.0
  %194 = vmatpush1.msra.mxu0 0.0
  %195 = vmatprep.subr.mxu0 0.0
  %196 = vmatpush1.msra.mxu0 0.0
  %197 = vmatprep.subr.mxu0 0.0
  %198 = vmatpush1.msra.mxu0 0.0
  %199 = vmatprep.subr.mxu0 0.0
  %200 = vmatpush1.msra.mxu0 0.0
  %201 = vmatprep.subr.mxu0 0.0
  %202 = vmatpush1.msra.mxu0 0.0
  %203 = vmatprep.subr.mxu0 0.0
  %204 = vmatpush1.msra.mxu0 0.0
  %205 = vmatprep.subr.mxu0 0.0
  %206 = vmatpush1.msra.mxu0 0.0
  %207 = vmatprep.subr.mxu0 0.0
  %208 = vmatpush1.msra.mxu0 0.0
  %209 = vmatprep.subr.mxu0 0.0
  %210 = vmatpush1.msra.mxu0 0.0
  %211 = vmatprep.subr.mxu0 0.0
  %212 = vmatpush1.msra.mxu0 0.0
  %213 = vmatprep.subr.mxu0 0.0
  %214 = vmatpush1.msra.mxu0 0.0
  %215 = vmatprep.subr.mxu0 0.0
  %216 = vmatpush1.msra.mxu0 0.0
  %217 = vmatprep.subr.mxu0 0.0
  %218 = vmatpush1.msra.mxu0 0.0
  %219 = vmatprep.subr.mxu0 0.0
  %220 = vmatpush1.msra.mxu0 0.0
  %221 = vmatprep.subr.mxu0 0.0
  %222 = vmatpush1.msra.mxu0 0.0
  %223 = vmatprep.subr.mxu0 0.0
  %224 = vmatpush1.msra.mxu0 0.0
  %225 = vmatprep.subr.mxu0 0.0
  %226 = vmatpush1.msra.mxu0 0.0
  %227 = vmatprep.subr.mxu0 0.0
  %228 = vmatpush1.msra.mxu0 0.0
  %229 = vmatprep.subr.mxu0 0.0
  %230 = vmatpush1.msra.mxu0 0.0
  %231 = vmatprep.subr.mxu0 0.0
  %232 = vmatpush1.msra.mxu0 0.0
  %233 = vmatprep.subr.mxu0 0.0
  %234 = vmatpush1.msra.mxu0 0.0
  %235 = vmatprep.subr.mxu0 0.0
  %236 = vmatpush1.msra.mxu0 0.0
  %237 = vmatprep.subr.mxu0 0.0
  %238 = vmatpush1.msra.mxu0 0.0
  %239 = vmatprep.subr.mxu0 0.0
  %240 = vmatpush1.msra.mxu0 0.0
  %241 = vmatprep.subr.mxu0 0.0
  %242 = vmatpush1.msra.mxu0 0.0
  %243 = vmatprep.subr.mxu0 0.0
  %244 = vmatpush1.msra.mxu0 0.0
  %245 = vmatprep.subr.mxu0 0.0
  %246 = vmatpush1.msra.mxu0 0.0
  %247 = vmatprep.mubr.f32.mxu0 0.0
  %248 = vmatmul.mubr.f32.gmra.mrb[0].mxu0 %v75
  %v249 = vpop.f32.mrb[0].mxu0
  %v250 = vadd.f32 %v182, %v249
  %v251 = vpop.f32.mrb[0].mxu0
  %252 = vmatprep.mubr.f32.mxu0 0.0
  %253 = vmatmul.mubr.f32.gmra.mrb[0].mxu0 %v78
  %v254 = vpop.f32.mrb[0].mxu0
  %v255 = vadd.f32 %v182, %v254
  %v256 = vpop.f32.mrb[0].mxu0
  %257 = vmatprep.mubr.f32.mxu0 0.0
  %258 = vmatmul.mubr.f32.gmra.mrb[0].mxu0 %v81
  %v259 = vpop.f32.mrb[0].mxu0
  %v260 = vadd.f32 %v182, %v259
  %v261 = vpop.f32.mrb[0].mxu0
  %262 = vmatprep.mubr.f32.mxu0 0.0
  %263 = vmatmul.mubr.f32.gmra.mrb[0].mxu0 %v84
  %v264 = vpop.f32.mrb[0].mxu0
  %v265 = vadd.f32 %v182, %v264
  %v266 = vpop.f32.mrb[0].mxu0
  %267 = vmatprep.mubr.f32.mxu0 0.0
  %268 = vmatmul.mubr.f32.gmra.mrb[0].mxu0 %v87
  %v269 = vpop.f32.mrb[0].mxu0
  %v270 = vadd.f32 %v182, %v269
  %v271 = vpop.f32.mrb[0].mxu0
  %272 = vdwg.mxu0
  %v273 = vlaneseq
  %v274 = vshrl.u32 %v273, 7
  %v275 = vsub.s32 0, %v274
  %v276 = vrot.slane %v67, %v275
  %277 = vmatprep.subr.mxu0 0.0
  %278 = vmatpush1.msra.mxu0 %v47
  %279 = vmatprep.subr.mxu0 0.0
  %280 = vmatpush1.msra.mxu0 0.0
  %281 = vmatprep.subr.mxu0 0.0
  %282 = vmatpush1.msra.mxu0 0.0
  %283 = vmatprep.subr.mxu0 0.0
  %284 = vmatpush1.msra.mxu0 0.0
  %285 = vmatprep.subr.mxu0 0.0
  %286 = vmatpush1.msra.mxu0 0.0
  %287 = vmatprep.subr.mxu0 0.0
  %288 = vmatpush1.msra.mxu0 0.0
  %289 = vmatprep.subr.mxu0 0.0
  %290 = vmatpush1.msra.mxu0 0.0
  %291 = vmatprep.subr.mxu0 0.0
  %292 = vmatpush1.msra.mxu0 0.0
  %293 = vmatprep.subr.mxu0 0.0
  %294 = vmatpush1.msra.mxu0 0.0
  %295 = vmatprep.subr.mxu0 0.0
  %296 = vmatpush1.msra.mxu0 0.0
  %297 = vmatprep.subr.mxu0 0.0
  %298 = vmatpush1.msra.mxu0 0.0
  %299 = vmatprep.subr.mxu0 0.0
  %300 = vmatpush1.msra.mxu0 0.0
  %301 = vmatprep.subr.mxu0 0.0
  %302 = vmatpush1.msra.mxu0 0.0
  %303 = vmatprep.subr.mxu0 0.0
  %304 = vmatpush1.msra.mxu0 0.0
  %305 = vmatprep.subr.mxu0 0.0
  %306 = vmatpush1.msra.mxu0 0.0
  %307 = vmatprep.subr.mxu0 0.0
  %308 = vmatpush1.msra.mxu0 0.0
  %309 = vmatprep.subr.mxu0 0.0
  %310 = vmatpush1.msra.mxu0 0.0
  %311 = vmatprep.subr.mxu0 0.0
  %312 = vmatpush1.msra.mxu0 0.0
  %313 = vmatprep.subr.mxu0 0.0
  %314 = vmatpush1.msra.mxu0 0.0
  %315 = vmatprep.subr.mxu0 0.0
  %316 = vmatpush1.msra.mxu0 0.0
  %317 = vmatprep.subr.mxu0 0.0
  %318 = vmatpush1.msra.mxu0 0.0
  %319 = vmatprep.subr.mxu0 0.0
  %320 = vmatpush1.msra.mxu0 0.0
  %321 = vmatprep.subr.mxu0 0.0
  %322 = vmatpush1.msra.mxu0 0.0
  %323 = vmatprep.subr.mxu0 0.0
  %324 = vmatpush1.msra.mxu0 0.0
  %325 = vmatprep.subr.mxu0 0.0
  %326 = vmatpush1.msra.mxu0 0.0
  %327 = vmatprep.subr.mxu0 0.0
  %328 = vmatpush1.msra.mxu0 0.0
  %329 = vmatprep.subr.mxu0 0.0
  %330 = vmatpush1.msra.mxu0 0.0
  %331 = vmatprep.subr.mxu0 0.0
  %332 = vmatpush1.msra.mxu0 0.0
  %333 = vmatprep.subr.mxu0 0.0
  %334 = vmatpush1.msra.mxu0 0.0
  %335 = vmatprep.subr.mxu0 0.0
  %336 = vmatpush1.msra.mxu0 0.0
  %337 = vmatprep.subr.mxu0 0.0
  %338 = vmatpush1.msra.mxu0 0.0
  %339 = vmatprep.subr.mxu0 0.0
  %340 = vmatpush1.msra.mxu0 0.0
  %341 = vmatprep.mubr.f32.mxu0 0.0
  %342 = vmatmul.mubr.f32.gmra.mrb[0].mxu0 %v75
  %v343 = vpop.f32.mrb[0].mxu0
  %v344 = vadd.f32 %v276, %v343
  %v345 = vpop.f32.mrb[0].mxu0
  %346 = vmatprep.mubr.f32.mxu0 0.0
  %347 = vmatmul.mubr.f32.gmra.mrb[0].mxu0 %v78
  %v348 = vpop.f32.mrb[0].mxu0
  %v349 = vadd.f32 %v276, %v348
  %v350 = vpop.f32.mrb[0].mxu0
  %351 = vmatprep.mubr.f32.mxu0 0.0
  %352 = vmatmul.mubr.f32.gmra.mrb[0].mxu0 %v81
  %v353 = vpop.f32.mrb[0].mxu0
  %v354 = vadd.f32 %v276, %v353
  %v355 = vpop.f32.mrb[0].mxu0
  %356 = vmatprep.mubr.f32.mxu0 0.0
  %357 = vmatmul.mubr.f32.gmra.mrb[0].mxu0 %v84
  %v358 = vpop.f32.mrb[0].mxu0
  %v359 = vadd.f32 %v276, %v358
  %v360 = vpop.f32.mrb[0].mxu0
  %361 = vmatprep.mubr.f32.mxu0 0.0
  %362 = vmatmul.mubr.f32.gmra.mrb[0].mxu0 %v87
  %v363 = vpop.f32.mrb[0].mxu0
  %v364 = vadd.f32 %v276, %v363
  %v365 = vpop.f32.mrb[0].mxu0
  %366 = vdwg.mxu0
  %v367 = vlaneseq
  %v368 = vshrl.u32 %v367, 7
  %v369 = vsub.s32 0, %v368
  %v370 = vrot.slane %v68, %v369
  %371 = vmatprep.subr.mxu0 0.0
  %372 = vmatpush1.msra.mxu0 %v48
  %373 = vmatprep.subr.mxu0 0.0
  %374 = vmatpush1.msra.mxu0 0.0
  %375 = vmatprep.subr.mxu0 0.0
  %376 = vmatpush1.msra.mxu0 0.0
  %377 = vmatprep.subr.mxu0 0.0
  %378 = vmatpush1.msra.mxu0 0.0
  %379 = vmatprep.subr.mxu0 0.0
  %380 = vmatpush1.msra.mxu0 0.0
  %381 = vmatprep.subr.mxu0 0.0
  %382 = vmatpush1.msra.mxu0 0.0
  %383 = vmatprep.subr.mxu0 0.0
  %384 = vmatpush1.msra.mxu0 0.0
  %385 = vmatprep.subr.mxu0 0.0
  %386 = vmatpush1.msra.mxu0 0.0
  %387 = vmatprep.subr.mxu0 0.0
  %388 = vmatpush1.msra.mxu0 0.0
  %389 = vmatprep.subr.mxu0 0.0
  %390 = vmatpush1.msra.mxu0 0.0
  %391 = vmatprep.subr.mxu0 0.0
  %392 = vmatpush1.msra.mxu0 0.0
  %393 = vmatprep.subr.mxu0 0.0
  %394 = vmatpush1.msra.mxu0 0.0
  %395 = vmatprep.subr.mxu0 0.0
  %396 = vmatpush1.msra.mxu0 0.0
  %397 = vmatprep.subr.mxu0 0.0
  %398 = vmatpush1.msra.mxu0 0.0
  %399 = vmatprep.subr.mxu0 0.0
  %400 = vmatpush1.msra.mxu0 0.0
  %401 = vmatprep.subr.mxu0 0.0
  %402 = vmatpush1.msra.mxu0 0.0
  %403 = vmatprep.subr.mxu0 0.0
  %404 = vmatpush1.msra.mxu0 0.0
  %405 = vmatprep.subr.mxu0 0.0
  %406 = vmatpush1.msra.mxu0 0.0
  %407 = vmatprep.subr.mxu0 0.0
  %408 = vmatpush1.msra.mxu0 0.0
  %409 = vmatprep.subr.mxu0 0.0
  %410 = vmatpush1.msra.mxu0 0.0
  %411 = vmatprep.subr.mxu0 0.0
  %412 = vmatpush1.msra.mxu0 0.0
  %413 = vmatprep.subr.mxu0 0.0
  %414 = vmatpush1.msra.mxu0 0.0
  %415 = vmatprep.subr.mxu0 0.0
  %416 = vmatpush1.msra.mxu0 0.0
  %417 = vmatprep.subr.mxu0 0.0
  %418 = vmatpush1.msra.mxu0 0.0
  %419 = vmatprep.subr.mxu0 0.0
  %420 = vmatpush1.msra.mxu0 0.0
  %421 = vmatprep.subr.mxu0 0.0
  %422 = vmatpush1.msra.mxu0 0.0
  %423 = vmatprep.subr.mxu0 0.0
  %424 = vmatpush1.msra.mxu0 0.0
  %425 = vmatprep.subr.mxu0 0.0
  %426 = vmatpush1.msra.mxu0 0.0
  %427 = vmatprep.subr.mxu0 0.0
  %428 = vmatpush1.msra.mxu0 0.0
  %429 = vmatprep.subr.mxu0 0.0
  %430 = vmatpush1.msra.mxu0 0.0
  %431 = vmatprep.subr.mxu0 0.0
  %432 = vmatpush1.msra.mxu0 0.0
  %433 = vmatprep.subr.mxu0 0.0
  %434 = vmatpush1.msra.mxu0 0.0
  %435 = vmatprep.mubr.f32.mxu0 0.0
  %436 = vmatmul.mubr.f32.gmra.mrb[0].mxu0 %v75
  %v437 = vpop.f32.mrb[0].mxu0
  %v438 = vadd.f32 %v370, %v437
  %v439 = vpop.f32.mrb[0].mxu0
  %440 = vmatprep.mubr.f32.mxu0 0.0
  %441 = vmatmul.mubr.f32.gmra.mrb[0].mxu0 %v78
  %v442 = vpop.f32.mrb[0].mxu0
  %v443 = vadd.f32 %v370, %v442
  %v444 = vpop.f32.mrb[0].mxu0
  %445 = vmatprep.mubr.f32.mxu0 0.0
  %446 = vmatmul.mubr.f32.gmra.mrb[0].mxu0 %v81
  %v447 = vpop.f32.mrb[0].mxu0
  %v448 = vadd.f32 %v370, %v447
  %v449 = vpop.f32.mrb[0].mxu0
  %450 = vmatprep.mubr.f32.mxu0 0.0
  %451 = vmatmul.mubr.f32.gmra.mrb[0].mxu0 %v84
  %v452 = vpop.f32.mrb[0].mxu0
  %v453 = vadd.f32 %v370, %v452
  %v454 = vpop.f32.mrb[0].mxu0
  %455 = vmatprep.mubr.f32.mxu0 0.0
  %456 = vmatmul.mubr.f32.gmra.mrb[0].mxu0 %v87
  %v457 = vpop.f32.mrb[0].mxu0
  %v458 = vadd.f32 %v370, %v457
  %v459 = vpop.f32.mrb[0].mxu0
  %460 = vdwg.mxu0
  %vm461 = vcmask 261120
  %v463 = vsel %vm461, 0.0, 0
  %465 = vmatprep.subr.mxu0 0.0
  %466 = vmatpush1.msra.mxu0 %v49
  %467 = vmatprep.subr.mxu0 0.0
  %468 = vmatpush1.msra.mxu0 %v50
  %469 = vmatprep.subr.mxu0 0.0
  %470 = vmatpush1.msra.mxu0 %v51
  %471 = vmatprep.subr.mxu0 0.0
  %472 = vmatpush1.msra.mxu0 %v52
  %473 = vmatprep.subr.mxu0 0.0
  %474 = vmatpush1.msra.mxu0 0.0
  %475 = vmatprep.subr.mxu0 0.0
  %476 = vmatpush1.msra.mxu0 0.0
  %477 = vmatprep.subr.mxu0 0.0
  %478 = vmatpush1.msra.mxu0 0.0
  %479 = vmatprep.subr.mxu0 0.0
  %480 = vmatpush1.msra.mxu0 0.0
  %481 = vmatprep.subr.mxu0 0.0
  %482 = vmatpush1.msra.mxu0 0.0
  %483 = vmatprep.subr.mxu0 0.0
  %484 = vmatpush1.msra.mxu0 0.0
  %485 = vmatprep.subr.mxu0 0.0
  %486 = vmatpush1.msra.mxu0 0.0
  %487 = vmatprep.subr.mxu0 0.0
  %488 = vmatpush1.msra.mxu0 0.0
  %489 = vmatprep.subr.mxu0 0.0
  %490 = vmatpush1.msra.mxu0 0.0
  %491 = vmatprep.subr.mxu0 0.0
  %492 = vmatpush1.msra.mxu0 0.0
  %493 = vmatprep.subr.mxu0 0.0
  %494 = vmatpush1.msra.mxu0 0.0
  %495 = vmatprep.subr.mxu0 0.0
  %496 = vmatpush1.msra.mxu0 0.0
  %497 = vmatprep.subr.mxu0 0.0
  %498 = vmatpush1.msra.mxu0 0.0
  %499 = vmatprep.subr.mxu0 0.0
  %500 = vmatpush1.msra.mxu0 0.0
  %501 = vmatprep.subr.mxu0 0.0
  %502 = vmatpush1.msra.mxu0 0.0
  %503 = vmatprep.subr.mxu0 0.0
  %504 = vmatpush1.msra.mxu0 0.0
  %505 = vmatprep.subr.mxu0 0.0
  %506 = vmatpush1.msra.mxu0 0.0
  %507 = vmatprep.subr.mxu0 0.0
  %508 = vmatpush1.msra.mxu0 0.0
  %509 = vmatprep.subr.mxu0 0.0
  %510 = vmatpush1.msra.mxu0 0.0
  %511 = vmatprep.subr.mxu0 0.0
  %512 = vmatpush1.msra.mxu0 0.0
  %513 = vmatprep.subr.mxu0 0.0
  %514 = vmatpush1.msra.mxu0 0.0
  %515 = vmatprep.subr.mxu0 0.0
  %516 = vmatpush1.msra.mxu0 0.0
  %517 = vmatprep.subr.mxu0 0.0
  %518 = vmatpush1.msra.mxu0 0.0
  %519 = vmatprep.subr.mxu0 0.0
  %520 = vmatpush1.msra.mxu0 0.0
  %521 = vmatprep.subr.mxu0 0.0
  %522 = vmatpush1.msra.mxu0 0.0
  %523 = vmatprep.subr.mxu0 0.0
  %524 = vmatpush1.msra.mxu0 0.0
  %525 = vmatprep.subr.mxu0 0.0
  %526 = vmatpush1.msra.mxu0 0.0
  %527 = vmatprep.subr.mxu0 0.0
  %528 = vmatpush1.msra.mxu0 0.0
  %529 = vmatprep.mubr.f32.mxu0 0.0
  %530 = vmatmul.mubr.f32.gmra.mrb[0].mxu0 %v463
  %v531 = vpop.f32.mrb[0].mxu0
  %v532 = vadd.f32 0.0, %v531
  %v533 = vpop.f32.mrb[0].mxu0
  %534 = vdwg.mxu0
  %v535 = vadd.f32 %v156, %v532
  %v536 = vxor.u32 %v535, 2147483648
  %v537 = vmul.f32 %v536, 1.442695
  %v538 = vpow.pop %v537
  %v539 = vadd.f32 %v538, 1.0
  %v540 = vrcp.pop %v539
  %v541 = vmul.f32 1.0, %v540
  %542 = vmatprep.subr.mxu0 0.0
  %543 = vmatpush1.msra.mxu0 %v53
  %544 = vmatprep.subr.mxu0 0.0
  %545 = vmatpush1.msra.mxu0 %v54
  %546 = vmatprep.subr.mxu0 0.0
  %547 = vmatpush1.msra.mxu0 %v55
  %548 = vmatprep.subr.mxu0 0.0
  %549 = vmatpush1.msra.mxu0 %v56
  %550 = vmatprep.subr.mxu0 0.0
  %551 = vmatpush1.msra.mxu0 0.0
  %552 = vmatprep.subr.mxu0 0.0
  %553 = vmatpush1.msra.mxu0 0.0
  %554 = vmatprep.subr.mxu0 0.0
  %555 = vmatpush1.msra.mxu0 0.0
  %556 = vmatprep.subr.mxu0 0.0
  %557 = vmatpush1.msra.mxu0 0.0
  %558 = vmatprep.subr.mxu0 0.0
  %559 = vmatpush1.msra.mxu0 0.0
  %560 = vmatprep.subr.mxu0 0.0
  %561 = vmatpush1.msra.mxu0 0.0
  %562 = vmatprep.subr.mxu0 0.0
  %563 = vmatpush1.msra.mxu0 0.0
  %564 = vmatprep.subr.mxu0 0.0
  %565 = vmatpush1.msra.mxu0 0.0
  %566 = vmatprep.subr.mxu0 0.0
  %567 = vmatpush1.msra.mxu0 0.0
  %568 = vmatprep.subr.mxu0 0.0
  %569 = vmatpush1.msra.mxu0 0.0
  %570 = vmatprep.subr.mxu0 0.0
  %571 = vmatpush1.msra.mxu0 0.0
  %572 = vmatprep.subr.mxu0 0.0
  %573 = vmatpush1.msra.mxu0 0.0
  %574 = vmatprep.subr.mxu0 0.0
  %575 = vmatpush1.msra.mxu0 0.0
  %576 = vmatprep.subr.mxu0 0.0
  %577 = vmatpush1.msra.mxu0 0.0
  %578 = vmatprep.subr.mxu0 0.0
  %579 = vmatpush1.msra.mxu0 0.0
  %580 = vmatprep.subr.mxu0 0.0
  %581 = vmatpush1.msra.mxu0 0.0
  %582 = vmatprep.subr.mxu0 0.0
  %583 = vmatpush1.msra.mxu0 0.0
  %584 = vmatprep.subr.mxu0 0.0
  %585 = vmatpush1.msra.mxu0 0.0
  %586 = vmatprep.subr.mxu0 0.0
  %587 = vmatpush1.msra.mxu0 0.0
  %588 = vmatprep.subr.mxu0 0.0
  %589 = vmatpush1.msra.mxu0 0.0
  %590 = vmatprep.subr.mxu0 0.0
  %591 = vmatpush1.msra.mxu0 0.0
  %592 = vmatprep.subr.mxu0 0.0
  %593 = vmatpush1.msra.mxu0 0.0
  %594 = vmatprep.subr.mxu0 0.0
  %595 = vmatpush1.msra.mxu0 0.0
  %596 = vmatprep.subr.mxu0 0.0
  %597 = vmatpush1.msra.mxu0 0.0
  %598 = vmatprep.subr.mxu0 0.0
  %599 = vmatpush1.msra.mxu0 0.0
  %600 = vmatprep.subr.mxu0 0.0
  %601 = vmatpush1.msra.mxu0 0.0
  %602 = vmatprep.subr.mxu0 0.0
  %603 = vmatpush1.msra.mxu0 0.0
  %604 = vmatprep.subr.mxu0 0.0
  %605 = vmatpush1.msra.mxu0 0.0
  %606 = vmatprep.mubr.f32.mxu0 0.0
  %607 = vmatmul.mubr.f32.gmra.mrb[0].mxu0 %v463
  %v608 = vpop.f32.mrb[0].mxu0
  %v609 = vadd.f32 0.0, %v608
  %v610 = vpop.f32.mrb[0].mxu0
  %611 = vdwg.mxu0
  %v612 = vadd.f32 %v250, %v609
  %v613 = vxor.u32 %v612, 2147483648
  %v614 = vmul.f32 %v613, 1.442695
  %v615 = vpow.pop %v614
  %v616 = vadd.f32 %v615, 1.0
  %v617 = vrcp.pop %v616
  %v618 = vmul.f32 1.0, %v617
  %619 = vmatprep.subr.mxu0 0.0
  %620 = vmatpush1.msra.mxu0 %v57
  %621 = vmatprep.subr.mxu0 0.0
  %622 = vmatpush1.msra.mxu0 %v58
  %623 = vmatprep.subr.mxu0 0.0
  %624 = vmatpush1.msra.mxu0 %v59
  %625 = vmatprep.subr.mxu0 0.0
  %626 = vmatpush1.msra.mxu0 %v60
  %627 = vmatprep.subr.mxu0 0.0
  %628 = vmatpush1.msra.mxu0 0.0
  %629 = vmatprep.subr.mxu0 0.0
  %630 = vmatpush1.msra.mxu0 0.0
  %631 = vmatprep.subr.mxu0 0.0
  %632 = vmatpush1.msra.mxu0 0.0
  %633 = vmatprep.subr.mxu0 0.0
  %634 = vmatpush1.msra.mxu0 0.0
  %635 = vmatprep.subr.mxu0 0.0
  %636 = vmatpush1.msra.mxu0 0.0
  %637 = vmatprep.subr.mxu0 0.0
  %638 = vmatpush1.msra.mxu0 0.0
  %639 = vmatprep.subr.mxu0 0.0
  %640 = vmatpush1.msra.mxu0 0.0
  %641 = vmatprep.subr.mxu0 0.0
  %642 = vmatpush1.msra.mxu0 0.0
  %643 = vmatprep.subr.mxu0 0.0
  %644 = vmatpush1.msra.mxu0 0.0
  %645 = vmatprep.subr.mxu0 0.0
  %646 = vmatpush1.msra.mxu0 0.0
  %647 = vmatprep.subr.mxu0 0.0
  %648 = vmatpush1.msra.mxu0 0.0
  %649 = vmatprep.subr.mxu0 0.0
  %650 = vmatpush1.msra.mxu0 0.0
  %651 = vmatprep.subr.mxu0 0.0
  %652 = vmatpush1.msra.mxu0 0.0
  %653 = vmatprep.subr.mxu0 0.0
  %654 = vmatpush1.msra.mxu0 0.0
  %655 = vmatprep.subr.mxu0 0.0
  %656 = vmatpush1.msra.mxu0 0.0
  %657 = vmatprep.subr.mxu0 0.0
  %658 = vmatpush1.msra.mxu0 0.0
  %659 = vmatprep.subr.mxu0 0.0
  %660 = vmatpush1.msra.mxu0 0.0
  %661 = vmatprep.subr.mxu0 0.0
  %662 = vmatpush1.msra.mxu0 0.0
  %663 = vmatprep.subr.mxu0 0.0
  %664 = vmatpush1.msra.mxu0 0.0
  %665 = vmatprep.subr.mxu0 0.0
  %666 = vmatpush1.msra.mxu0 0.0
  %667 = vmatprep.subr.mxu0 0.0
  %668 = vmatpush1.msra.mxu0 0.0
  %669 = vmatprep.subr.mxu0 0.0
  %670 = vmatpush1.msra.mxu0 0.0
  %671 = vmatprep.subr.mxu0 0.0
  %672 = vmatpush1.msra.mxu0 0.0
  %673 = vmatprep.subr.mxu0 0.0
  %674 = vmatpush1.msra.mxu0 0.0
  %675 = vmatprep.subr.mxu0 0.0
  %676 = vmatpush1.msra.mxu0 0.0
  %677 = vmatprep.subr.mxu0 0.0
  %678 = vmatpush1.msra.mxu0 0.0
  %679 = vmatprep.subr.mxu0 0.0
  %680 = vmatpush1.msra.mxu0 0.0
  %681 = vmatprep.subr.mxu0 0.0
  %682 = vmatpush1.msra.mxu0 0.0
  %683 = vmatprep.mubr.f32.mxu0 0.0
  %684 = vmatmul.mubr.f32.gmra.mrb[0].mxu0 %v463
  %v685 = vpop.f32.mrb[0].mxu0
  %v686 = vadd.f32 0.0, %v685
  %v687 = vpop.f32.mrb[0].mxu0
  %688 = vdwg.mxu0
  %v689 = vadd.f32 %v344, %v686
  %v690 = vtanh.pop %v689
  %691 = vmatprep.subr.mxu0 0.0
  %692 = vmatpush1.msra.mxu0 %v61
  %693 = vmatprep.subr.mxu0 0.0
  %694 = vmatpush1.msra.mxu0 %v62
  %695 = vmatprep.subr.mxu0 0.0
  %696 = vmatpush1.msra.mxu0 %v63
  %697 = vmatprep.subr.mxu0 0.0
  %698 = vmatpush1.msra.mxu0 %v64
  %699 = vmatprep.subr.mxu0 0.0
  %700 = vmatpush1.msra.mxu0 0.0
  %701 = vmatprep.subr.mxu0 0.0
  %702 = vmatpush1.msra.mxu0 0.0
  %703 = vmatprep.subr.mxu0 0.0
  %704 = vmatpush1.msra.mxu0 0.0
  %705 = vmatprep.subr.mxu0 0.0
  %706 = vmatpush1.msra.mxu0 0.0
  %707 = vmatprep.subr.mxu0 0.0
  %708 = vmatpush1.msra.mxu0 0.0
  %709 = vmatprep.subr.mxu0 0.0
  %710 = vmatpush1.msra.mxu0 0.0
  %711 = vmatprep.subr.mxu0 0.0
  %712 = vmatpush1.msra.mxu0 0.0
  %713 = vmatprep.subr.mxu0 0.0
  %714 = vmatpush1.msra.mxu0 0.0
  %715 = vmatprep.subr.mxu0 0.0
  %716 = vmatpush1.msra.mxu0 0.0
  %717 = vmatprep.subr.mxu0 0.0
  %718 = vmatpush1.msra.mxu0 0.0
  %719 = vmatprep.subr.mxu0 0.0
  %720 = vmatpush1.msra.mxu0 0.0
  %721 = vmatprep.subr.mxu0 0.0
  %722 = vmatpush1.msra.mxu0 0.0
  %723 = vmatprep.subr.mxu0 0.0
  %724 = vmatpush1.msra.mxu0 0.0
  %725 = vmatprep.subr.mxu0 0.0
  %726 = vmatpush1.msra.mxu0 0.0
  %727 = vmatprep.subr.mxu0 0.0
  %728 = vmatpush1.msra.mxu0 0.0
  %729 = vmatprep.subr.mxu0 0.0
  %730 = vmatpush1.msra.mxu0 0.0
  %731 = vmatprep.subr.mxu0 0.0
  %732 = vmatpush1.msra.mxu0 0.0
  %733 = vmatprep.subr.mxu0 0.0
  %734 = vmatpush1.msra.mxu0 0.0
  %735 = vmatprep.subr.mxu0 0.0
  %736 = vmatpush1.msra.mxu0 0.0
  %737 = vmatprep.subr.mxu0 0.0
  %738 = vmatpush1.msra.mxu0 0.0
  %739 = vmatprep.subr.mxu0 0.0
  %740 = vmatpush1.msra.mxu0 0.0
  %741 = vmatprep.subr.mxu0 0.0
  %742 = vmatpush1.msra.mxu0 0.0
  %743 = vmatprep.subr.mxu0 0.0
  %744 = vmatpush1.msra.mxu0 0.0
  %745 = vmatprep.subr.mxu0 0.0
  %746 = vmatpush1.msra.mxu0 0.0
  %747 = vmatprep.subr.mxu0 0.0
  %748 = vmatpush1.msra.mxu0 0.0
  %749 = vmatprep.subr.mxu0 0.0
  %750 = vmatpush1.msra.mxu0 0.0
  %751 = vmatprep.subr.mxu0 0.0
  %752 = vmatpush1.msra.mxu0 0.0
  %753 = vmatprep.subr.mxu0 0.0
  %754 = vmatpush1.msra.mxu0 0.0
  %755 = vmatprep.mubr.f32.mxu0 0.0
  %756 = vmatmul.mubr.f32.gmra.mrb[0].mxu0 %v463
  %v757 = vpop.f32.mrb[0].mxu0
  %v758 = vadd.f32 0.0, %v757
  %v759 = vpop.f32.mrb[0].mxu0
  %760 = vdwg.mxu0
  %v761 = vadd.f32 %v438, %v758
  %v762 = vxor.u32 %v761, 2147483648
  %v763 = vmul.f32 %v762, 1.442695
  %v764 = vpow.pop %v763
  %v765 = vadd.f32 %v764, 1.0
  %v766 = vrcp.pop %v765
  %v767 = vmul.f32 1.0, %v766
  %v768 = vmul.f32 %v618, 0.0
  %v769 = vmul.f32 %v541, %v690
  %v770 = vadd.f32 %v768, %v769
  %v771 = vtanh.pop %v770
  %v772 = vmul.f32 %v767, %v771
  %v774 = vsel %vm461, %v772, 0
  %776 = vmatprep.subr.mxu0 0.0
  %777 = vmatpush1.msra.mxu0 %v49
  %778 = vmatprep.subr.mxu0 0.0
  %779 = vmatpush1.msra.mxu0 %v50
  %780 = vmatprep.subr.mxu0 0.0
  %781 = vmatpush1.msra.mxu0 %v51
  %782 = vmatprep.subr.mxu0 0.0
  %783 = vmatpush1.msra.mxu0 %v52
  %784 = vmatprep.subr.mxu0 0.0
  %785 = vmatpush1.msra.mxu0 0.0
  %786 = vmatprep.subr.mxu0 0.0
  %787 = vmatpush1.msra.mxu0 0.0
  %788 = vmatprep.subr.mxu0 0.0
  %789 = vmatpush1.msra.mxu0 0.0
  %790 = vmatprep.subr.mxu0 0.0
  %791 = vmatpush1.msra.mxu0 0.0
  %792 = vmatprep.subr.mxu0 0.0
  %793 = vmatpush1.msra.mxu0 0.0
  %794 = vmatprep.subr.mxu0 0.0
  %795 = vmatpush1.msra.mxu0 0.0
  %796 = vmatprep.subr.mxu0 0.0
  %797 = vmatpush1.msra.mxu0 0.0
  %798 = vmatprep.subr.mxu0 0.0
  %799 = vmatpush1.msra.mxu0 0.0
  %800 = vmatprep.subr.mxu0 0.0
  %801 = vmatpush1.msra.mxu0 0.0
  %802 = vmatprep.subr.mxu0 0.0
  %803 = vmatpush1.msra.mxu0 0.0
  %804 = vmatprep.subr.mxu0 0.0
  %805 = vmatpush1.msra.mxu0 0.0
  %806 = vmatprep.subr.mxu0 0.0
  %807 = vmatpush1.msra.mxu0 0.0
  %808 = vmatprep.subr.mxu0 0.0
  %809 = vmatpush1.msra.mxu0 0.0
  %810 = vmatprep.subr.mxu0 0.0
  %811 = vmatpush1.msra.mxu0 0.0
  %812 = vmatprep.subr.mxu0 0.0
  %813 = vmatpush1.msra.mxu0 0.0
  %814 = vmatprep.subr.mxu0 0.0
  %815 = vmatpush1.msra.mxu0 0.0
  %816 = vmatprep.subr.mxu0 0.0
  %817 = vmatpush1.msra.mxu0 0.0
  %818 = vmatprep.subr.mxu0 0.0
  %819 = vmatpush1.msra.mxu0 0.0
  %820 = vmatprep.subr.mxu0 0.0
  %821 = vmatpush1.msra.mxu0 0.0
  %822 = vmatprep.subr.mxu0 0.0
  %823 = vmatpush1.msra.mxu0 0.0
  %824 = vmatprep.subr.mxu0 0.0
  %825 = vmatpush1.msra.mxu0 0.0
  %826 = vmatprep.subr.mxu0 0.0
  %827 = vmatpush1.msra.mxu0 0.0
  %828 = vmatprep.subr.mxu0 0.0
  %829 = vmatpush1.msra.mxu0 0.0
  %830 = vmatprep.subr.mxu0 0.0
  %831 = vmatpush1.msra.mxu0 0.0
  %832 = vmatprep.subr.mxu0 0.0
  %833 = vmatpush1.msra.mxu0 0.0
  %834 = vmatprep.subr.mxu0 0.0
  %835 = vmatpush1.msra.mxu0 0.0
  %836 = vmatprep.subr.mxu0 0.0
  %837 = vmatpush1.msra.mxu0 0.0
  %838 = vmatprep.subr.mxu0 0.0
  %839 = vmatpush1.msra.mxu0 0.0
  %840 = vmatprep.mubr.f32.mxu0 0.0
  %841 = vmatmul.mubr.f32.gmra.mrb[0].mxu0 %v774
  %v842 = vpop.f32.mrb[0].mxu0
  %v843 = vadd.f32 0.0, %v842
  %v844 = vpop.f32.mrb[0].mxu0
  %845 = vdwg.mxu0
  %v846 = vadd.f32 %v161, %v843
  %v847 = vxor.u32 %v846, 2147483648
  %v848 = vmul.f32 %v847, 1.442695
  %v849 = vpow.pop %v848
  %v850 = vadd.f32 %v849, 1.0
  %v851 = vrcp.pop %v850
  %v852 = vmul.f32 1.0, %v851
  %853 = vmatprep.subr.mxu0 0.0
  %854 = vmatpush1.msra.mxu0 %v53
  %855 = vmatprep.subr.mxu0 0.0
  %856 = vmatpush1.msra.mxu0 %v54
  %857 = vmatprep.subr.mxu0 0.0
  %858 = vmatpush1.msra.mxu0 %v55
  %859 = vmatprep.subr.mxu0 0.0
  %860 = vmatpush1.msra.mxu0 %v56
  %861 = vmatprep.subr.mxu0 0.0
  %862 = vmatpush1.msra.mxu0 0.0
  %863 = vmatprep.subr.mxu0 0.0
  %864 = vmatpush1.msra.mxu0 0.0
  %865 = vmatprep.subr.mxu0 0.0
  %866 = vmatpush1.msra.mxu0 0.0
  %867 = vmatprep.subr.mxu0 0.0
  %868 = vmatpush1.msra.mxu0 0.0
  %869 = vmatprep.subr.mxu0 0.0
  %870 = vmatpush1.msra.mxu0 0.0
  %871 = vmatprep.subr.mxu0 0.0
  %872 = vmatpush1.msra.mxu0 0.0
  %873 = vmatprep.subr.mxu0 0.0
  %874 = vmatpush1.msra.mxu0 0.0
  %875 = vmatprep.subr.mxu0 0.0
  %876 = vmatpush1.msra.mxu0 0.0
  %877 = vmatprep.subr.mxu0 0.0
  %878 = vmatpush1.msra.mxu0 0.0
  %879 = vmatprep.subr.mxu0 0.0
  %880 = vmatpush1.msra.mxu0 0.0
  %881 = vmatprep.subr.mxu0 0.0
  %882 = vmatpush1.msra.mxu0 0.0
  %883 = vmatprep.subr.mxu0 0.0
  %884 = vmatpush1.msra.mxu0 0.0
  %885 = vmatprep.subr.mxu0 0.0
  %886 = vmatpush1.msra.mxu0 0.0
  %887 = vmatprep.subr.mxu0 0.0
  %888 = vmatpush1.msra.mxu0 0.0
  %889 = vmatprep.subr.mxu0 0.0
  %890 = vmatpush1.msra.mxu0 0.0
  %891 = vmatprep.subr.mxu0 0.0
  %892 = vmatpush1.msra.mxu0 0.0
  %893 = vmatprep.subr.mxu0 0.0
  %894 = vmatpush1.msra.mxu0 0.0
  %895 = vmatprep.subr.mxu0 0.0
  %896 = vmatpush1.msra.mxu0 0.0
  %897 = vmatprep.subr.mxu0 0.0
  %898 = vmatpush1.msra.mxu0 0.0
  %899 = vmatprep.subr.mxu0 0.0
  %900 = vmatpush1.msra.mxu0 0.0
  %901 = vmatprep.subr.mxu0 0.0
  %902 = vmatpush1.msra.mxu0 0.0
  %903 = vmatprep.subr.mxu0 0.0
  %904 = vmatpush1.msra.mxu0 0.0
  %905 = vmatprep.subr.mxu0 0.0
  %906 = vmatpush1.msra.mxu0 0.0
  %907 = vmatprep.subr.mxu0 0.0
  %908 = vmatpush1.msra.mxu0 0.0
  %909 = vmatprep.subr.mxu0 0.0
  %910 = vmatpush1.msra.mxu0 0.0
  %911 = vmatprep.subr.mxu0 0.0
  %912 = vmatpush1.msra.mxu0 0.0
  %913 = vmatprep.subr.mxu0 0.0
  %914 = vmatpush1.msra.mxu0 0.0
  %915 = vmatprep.subr.mxu0 0.0
  %916 = vmatpush1.msra.mxu0 0.0
  %917 = vmatprep.mubr.f32.mxu0 0.0
  %918 = vmatmul.mubr.f32.gmra.mrb[0].mxu0 %v774
  %v919 = vpop.f32.mrb[0].mxu0
  %v920 = vadd.f32 0.0, %v919
  %v921 = vpop.f32.mrb[0].mxu0
  %922 = vdwg.mxu0
  %v923 = vadd.f32 %v255, %v920
  %v924 = vxor.u32 %v923, 2147483648
  %v925 = vmul.f32 %v924, 1.442695
  %v926 = vpow.pop %v925
  %v927 = vadd.f32 %v926, 1.0
  %v928 = vrcp.pop %v927
  %v929 = vmul.f32 1.0, %v928
  %930 = vmatprep.subr.mxu0 0.0
  %931 = vmatpush1.msra.mxu0 %v57
  %932 = vmatprep.subr.mxu0 0.0
  %933 = vmatpush1.msra.mxu0 %v58
  %934 = vmatprep.subr.mxu0 0.0
  %935 = vmatpush1.msra.mxu0 %v59
  %936 = vmatprep.subr.mxu0 0.0
  %937 = vmatpush1.msra.mxu0 %v60
  %938 = vmatprep.subr.mxu0 0.0
  %939 = vmatpush1.msra.mxu0 0.0
  %940 = vmatprep.subr.mxu0 0.0
  %941 = vmatpush1.msra.mxu0 0.0
  %942 = vmatprep.subr.mxu0 0.0
  %943 = vmatpush1.msra.mxu0 0.0
  %944 = vmatprep.subr.mxu0 0.0
  %945 = vmatpush1.msra.mxu0 0.0
  %946 = vmatprep.subr.mxu0 0.0
  %947 = vmatpush1.msra.mxu0 0.0
  %948 = vmatprep.subr.mxu0 0.0
  %949 = vmatpush1.msra.mxu0 0.0
  %950 = vmatprep.subr.mxu0 0.0
  %951 = vmatpush1.msra.mxu0 0.0
  %952 = vmatprep.subr.mxu0 0.0
  %953 = vmatpush1.msra.mxu0 0.0
  %954 = vmatprep.subr.mxu0 0.0
  %955 = vmatpush1.msra.mxu0 0.0
  %956 = vmatprep.subr.mxu0 0.0
  %957 = vmatpush1.msra.mxu0 0.0
  %958 = vmatprep.subr.mxu0 0.0
  %959 = vmatpush1.msra.mxu0 0.0
  %960 = vmatprep.subr.mxu0 0.0
  %961 = vmatpush1.msra.mxu0 0.0
  %962 = vmatprep.subr.mxu0 0.0
  %963 = vmatpush1.msra.mxu0 0.0
  %964 = vmatprep.subr.mxu0 0.0
  %965 = vmatpush1.msra.mxu0 0.0
  %966 = vmatprep.subr.mxu0 0.0
  %967 = vmatpush1.msra.mxu0 0.0
  %968 = vmatprep.subr.mxu0 0.0
  %969 = vmatpush1.msra.mxu0 0.0
  %970 = vmatprep.subr.mxu0 0.0
  %971 = vmatpush1.msra.mxu0 0.0
  %972 = vmatprep.subr.mxu0 0.0
  %973 = vmatpush1.msra.mxu0 0.0
  %974 = vmatprep.subr.mxu0 0.0
  %975 = vmatpush1.msra.mxu0 0.0
  %976 = vmatprep.subr.mxu0 0.0
  %977 = vmatpush1.msra.mxu0 0.0
  %978 = vmatprep.subr.mxu0 0.0
  %979 = vmatpush1.msra.mxu0 0.0
  %980 = vmatprep.subr.mxu0 0.0
  %981 = vmatpush1.msra.mxu0 0.0
  %982 = vmatprep.subr.mxu0 0.0
  %983 = vmatpush1.msra.mxu0 0.0
  %984 = vmatprep.subr.mxu0 0.0
  %985 = vmatpush1.msra.mxu0 0.0
  %986 = vmatprep.subr.mxu0 0.0
  %987 = vmatpush1.msra.mxu0 0.0
  %988 = vmatprep.subr.mxu0 0.0
  %989 = vmatpush1.msra.mxu0 0.0
  %990 = vmatprep.subr.mxu0 0.0
  %991 = vmatpush1.msra.mxu0 0.0
  %992 = vmatprep.subr.mxu0 0.0
  %993 = vmatpush1.msra.mxu0 0.0
  %994 = vmatprep.mubr.f32.mxu0 0.0
  %995 = vmatmul.mubr.f32.gmra.mrb[0].mxu0 %v774
  %v996 = vpop.f32.mrb[0].mxu0
  %v997 = vadd.f32 0.0, %v996
  %v998 = vpop.f32.mrb[0].mxu0
  %999 = vdwg.mxu0
  %v1000 = vadd.f32 %v349, %v997
  %v1001 = vtanh.pop %v1000
  %1002 = vmatprep.subr.mxu0 0.0
  %1003 = vmatpush1.msra.mxu0 %v61
  %1004 = vmatprep.subr.mxu0 0.0
  %1005 = vmatpush1.msra.mxu0 %v62
  %1006 = vmatprep.subr.mxu0 0.0
  %1007 = vmatpush1.msra.mxu0 %v63
  %1008 = vmatprep.subr.mxu0 0.0
  %1009 = vmatpush1.msra.mxu0 %v64
  %1010 = vmatprep.subr.mxu0 0.0
  %1011 = vmatpush1.msra.mxu0 0.0
  %1012 = vmatprep.subr.mxu0 0.0
  %1013 = vmatpush1.msra.mxu0 0.0
  %1014 = vmatprep.subr.mxu0 0.0
  %1015 = vmatpush1.msra.mxu0 0.0
  %1016 = vmatprep.subr.mxu0 0.0
  %1017 = vmatpush1.msra.mxu0 0.0
  %1018 = vmatprep.subr.mxu0 0.0
  %1019 = vmatpush1.msra.mxu0 0.0
  %1020 = vmatprep.subr.mxu0 0.0
  %1021 = vmatpush1.msra.mxu0 0.0
  %1022 = vmatprep.subr.mxu0 0.0
  %1023 = vmatpush1.msra.mxu0 0.0
  %1024 = vmatprep.subr.mxu0 0.0
  %1025 = vmatpush1.msra.mxu0 0.0
  %1026 = vmatprep.subr.mxu0 0.0
  %1027 = vmatpush1.msra.mxu0 0.0
  %1028 = vmatprep.subr.mxu0 0.0
  %1029 = vmatpush1.msra.mxu0 0.0
  %1030 = vmatprep.subr.mxu0 0.0
  %1031 = vmatpush1.msra.mxu0 0.0
  %1032 = vmatprep.subr.mxu0 0.0
  %1033 = vmatpush1.msra.mxu0 0.0
  %1034 = vmatprep.subr.mxu0 0.0
  %1035 = vmatpush1.msra.mxu0 0.0
  %1036 = vmatprep.subr.mxu0 0.0
  %1037 = vmatpush1.msra.mxu0 0.0
  %1038 = vmatprep.subr.mxu0 0.0
  %1039 = vmatpush1.msra.mxu0 0.0
  %1040 = vmatprep.subr.mxu0 0.0
  %1041 = vmatpush1.msra.mxu0 0.0
  %1042 = vmatprep.subr.mxu0 0.0
  %1043 = vmatpush1.msra.mxu0 0.0
  %1044 = vmatprep.subr.mxu0 0.0
  %1045 = vmatpush1.msra.mxu0 0.0
  %1046 = vmatprep.subr.mxu0 0.0
  %1047 = vmatpush1.msra.mxu0 0.0
  %1048 = vmatprep.subr.mxu0 0.0
  %1049 = vmatpush1.msra.mxu0 0.0
  %1050 = vmatprep.subr.mxu0 0.0
  %1051 = vmatpush1.msra.mxu0 0.0
  %1052 = vmatprep.subr.mxu0 0.0
  %1053 = vmatpush1.msra.mxu0 0.0
  %1054 = vmatprep.subr.mxu0 0.0
  %1055 = vmatpush1.msra.mxu0 0.0
  %1056 = vmatprep.subr.mxu0 0.0
  %1057 = vmatpush1.msra.mxu0 0.0
  %1058 = vmatprep.subr.mxu0 0.0
  %1059 = vmatpush1.msra.mxu0 0.0
  %1060 = vmatprep.subr.mxu0 0.0
  %1061 = vmatpush1.msra.mxu0 0.0
  %1062 = vmatprep.subr.mxu0 0.0
  %1063 = vmatpush1.msra.mxu0 0.0
  %1064 = vmatprep.subr.mxu0 0.0
  %1065 = vmatpush1.msra.mxu0 0.0
  %1066 = vmatprep.mubr.f32.mxu0 0.0
  %1067 = vmatmul.mubr.f32.gmra.mrb[0].mxu0 %v774
  %v1068 = vpop.f32.mrb[0].mxu0
  %v1069 = vadd.f32 0.0, %v1068
  %v1070 = vpop.f32.mrb[0].mxu0
  %1071 = vdwg.mxu0
  %v1072 = vadd.f32 %v443, %v1069
  %v1073 = vxor.u32 %v1072, 2147483648
  %v1074 = vmul.f32 %v1073, 1.442695
  %v1075 = vpow.pop %v1074
  %v1076 = vadd.f32 %v1075, 1.0
  %v1077 = vrcp.pop %v1076
  %v1078 = vmul.f32 1.0, %v1077
  %v1079 = vmul.f32 %v929, %v770
  %v1080 = vmul.f32 %v852, %v1001
  %v1081 = vadd.f32 %v1079, %v1080
  %v1082 = vtanh.pop %v1081
  %v1083 = vmul.f32 %v1078, %v1082
  %v1085 = vsel %vm461, %v1083, 0
  %1087 = vmatprep.subr.mxu0 0.0
  %1088 = vmatpush1.msra.mxu0 %v49
  %1089 = vmatprep.subr.mxu0 0.0
  %1090 = vmatpush1.msra.mxu0 %v50
  %1091 = vmatprep.subr.mxu0 0.0
  %1092 = vmatpush1.msra.mxu0 %v51
  %1093 = vmatprep.subr.mxu0 0.0
  %1094 = vmatpush1.msra.mxu0 %v52
  %1095 = vmatprep.subr.mxu0 0.0
  %1096 = vmatpush1.msra.mxu0 0.0
  %1097 = vmatprep.subr.mxu0 0.0
  %1098 = vmatpush1.msra.mxu0 0.0
  %1099 = vmatprep.subr.mxu0 0.0
  %1100 = vmatpush1.msra.mxu0 0.0
  %1101 = vmatprep.subr.mxu0 0.0
  %1102 = vmatpush1.msra.mxu0 0.0
  %1103 = vmatprep.subr.mxu0 0.0
  %1104 = vmatpush1.msra.mxu0 0.0
  %1105 = vmatprep.subr.mxu0 0.0
  %1106 = vmatpush1.msra.mxu0 0.0
  %1107 = vmatprep.subr.mxu0 0.0
  %1108 = vmatpush1.msra.mxu0 0.0
  %1109 = vmatprep.subr.mxu0 0.0
  %1110 = vmatpush1.msra.mxu0 0.0
  %1111 = vmatprep.subr.mxu0 0.0
  %1112 = vmatpush1.msra.mxu0 0.0
  %1113 = vmatprep.subr.mxu0 0.0
  %1114 = vmatpush1.msra.mxu0 0.0
  %1115 = vmatprep.subr.mxu0 0.0
  %1116 = vmatpush1.msra.mxu0 0.0
  %1117 = vmatprep.subr.mxu0 0.0
  %1118 = vmatpush1.msra.mxu0 0.0
  %1119 = vmatprep.subr.mxu0 0.0
  %1120 = vmatpush1.msra.mxu0 0.0
  %1121 = vmatprep.subr.mxu0 0.0
  %1122 = vmatpush1.msra.mxu0 0.0
  %1123 = vmatprep.subr.mxu0 0.0
  %1124 = vmatpush1.msra.mxu0 0.0
  %1125 = vmatprep.subr.mxu0 0.0
  %1126 = vmatpush1.msra.mxu0 0.0
  %1127 = vmatprep.subr.mxu0 0.0
  %1128 = vmatpush1.msra.mxu0 0.0
  %1129 = vmatprep.subr.mxu0 0.0
  %1130 = vmatpush1.msra.mxu0 0.0
  %1131 = vmatprep.subr.mxu0 0.0
  %1132 = vmatpush1.msra.mxu0 0.0
  %1133 = vmatprep.subr.mxu0 0.0
  %1134 = vmatpush1.msra.mxu0 0.0
  %1135 = vmatprep.subr.mxu0 0.0
  %1136 = vmatpush1.msra.mxu0 0.0
  %1137 = vmatprep.subr.mxu0 0.0
  %1138 = vmatpush1.msra.mxu0 0.0
  %1139 = vmatprep.subr.mxu0 0.0
  %1140 = vmatpush1.msra.mxu0 0.0
  %1141 = vmatprep.subr.mxu0 0.0
  %1142 = vmatpush1.msra.mxu0 0.0
  %1143 = vmatprep.subr.mxu0 0.0
  %1144 = vmatpush1.msra.mxu0 0.0
  %1145 = vmatprep.subr.mxu0 0.0
  %1146 = vmatpush1.msra.mxu0 0.0
  %1147 = vmatprep.subr.mxu0 0.0
  %1148 = vmatpush1.msra.mxu0 0.0
  %1149 = vmatprep.subr.mxu0 0.0
  %1150 = vmatpush1.msra.mxu0 0.0
  %1151 = vmatprep.mubr.f32.mxu0 0.0
  %1152 = vmatmul.mubr.f32.gmra.mrb[0].mxu0 %v1085
  %v1153 = vpop.f32.mrb[0].mxu0
  %v1154 = vadd.f32 0.0, %v1153
  %v1155 = vpop.f32.mrb[0].mxu0
  %1156 = vdwg.mxu0
  %v1157 = vadd.f32 %v166, %v1154
  %v1158 = vxor.u32 %v1157, 2147483648
  %v1159 = vmul.f32 %v1158, 1.442695
  %v1160 = vpow.pop %v1159
  %v1161 = vadd.f32 %v1160, 1.0
  %v1162 = vrcp.pop %v1161
  %v1163 = vmul.f32 1.0, %v1162
  %1164 = vmatprep.subr.mxu0 0.0
  %1165 = vmatpush1.msra.mxu0 %v53
  %1166 = vmatprep.subr.mxu0 0.0
  %1167 = vmatpush1.msra.mxu0 %v54
  %1168 = vmatprep.subr.mxu0 0.0
  %1169 = vmatpush1.msra.mxu0 %v55
  %1170 = vmatprep.subr.mxu0 0.0
  %1171 = vmatpush1.msra.mxu0 %v56
  %1172 = vmatprep.subr.mxu0 0.0
  %1173 = vmatpush1.msra.mxu0 0.0
  %1174 = vmatprep.subr.mxu0 0.0
  %1175 = vmatpush1.msra.mxu0 0.0
  %1176 = vmatprep.subr.mxu0 0.0
  %1177 = vmatpush1.msra.mxu0 0.0
  %1178 = vmatprep.subr.mxu0 0.0
  %1179 = vmatpush1.msra.mxu0 0.0
  %1180 = vmatprep.subr.mxu0 0.0
  %1181 = vmatpush1.msra.mxu0 0.0
  %1182 = vmatprep.subr.mxu0 0.0
  %1183 = vmatpush1.msra.mxu0 0.0
  %1184 = vmatprep.subr.mxu0 0.0
  %1185 = vmatpush1.msra.mxu0 0.0
  %1186 = vmatprep.subr.mxu0 0.0
  %1187 = vmatpush1.msra.mxu0 0.0
  %1188 = vmatprep.subr.mxu0 0.0
  %1189 = vmatpush1.msra.mxu0 0.0
  %1190 = vmatprep.subr.mxu0 0.0
  %1191 = vmatpush1.msra.mxu0 0.0
  %1192 = vmatprep.subr.mxu0 0.0
  %1193 = vmatpush1.msra.mxu0 0.0
  %1194 = vmatprep.subr.mxu0 0.0
  %1195 = vmatpush1.msra.mxu0 0.0
  %1196 = vmatprep.subr.mxu0 0.0
  %1197 = vmatpush1.msra.mxu0 0.0
  %1198 = vmatprep.subr.mxu0 0.0
  %1199 = vmatpush1.msra.mxu0 0.0
  %1200 = vmatprep.subr.mxu0 0.0
  %1201 = vmatpush1.msra.mxu0 0.0
  %1202 = vmatprep.subr.mxu0 0.0
  %1203 = vmatpush1.msra.mxu0 0.0
  %1204 = vmatprep.subr.mxu0 0.0
  %1205 = vmatpush1.msra.mxu0 0.0
  %1206 = vmatprep.subr.mxu0 0.0
  %1207 = vmatpush1.msra.mxu0 0.0
  %1208 = vmatprep.subr.mxu0 0.0
  %1209 = vmatpush1.msra.mxu0 0.0
  %1210 = vmatprep.subr.mxu0 0.0
  %1211 = vmatpush1.msra.mxu0 0.0
  %1212 = vmatprep.subr.mxu0 0.0
  %1213 = vmatpush1.msra.mxu0 0.0
  %1214 = vmatprep.subr.mxu0 0.0
  %1215 = vmatpush1.msra.mxu0 0.0
  %1216 = vmatprep.subr.mxu0 0.0
  %1217 = vmatpush1.msra.mxu0 0.0
  %1218 = vmatprep.subr.mxu0 0.0
  %1219 = vmatpush1.msra.mxu0 0.0
  %1220 = vmatprep.subr.mxu0 0.0
  %1221 = vmatpush1.msra.mxu0 0.0
  %1222 = vmatprep.subr.mxu0 0.0
  %1223 = vmatpush1.msra.mxu0 0.0
  %1224 = vmatprep.subr.mxu0 0.0
  %1225 = vmatpush1.msra.mxu0 0.0
  %1226 = vmatprep.subr.mxu0 0.0
  %1227 = vmatpush1.msra.mxu0 0.0
  %1228 = vmatprep.mubr.f32.mxu0 0.0
  %1229 = vmatmul.mubr.f32.gmra.mrb[0].mxu0 %v1085
  %v1230 = vpop.f32.mrb[0].mxu0
  %v1231 = vadd.f32 0.0, %v1230
  %v1232 = vpop.f32.mrb[0].mxu0
  %1233 = vdwg.mxu0
  %v1234 = vadd.f32 %v260, %v1231
  %v1235 = vxor.u32 %v1234, 2147483648
  %v1236 = vmul.f32 %v1235, 1.442695
  %v1237 = vpow.pop %v1236
  %v1238 = vadd.f32 %v1237, 1.0
  %v1239 = vrcp.pop %v1238
  %v1240 = vmul.f32 1.0, %v1239
  %1241 = vmatprep.subr.mxu0 0.0
  %1242 = vmatpush1.msra.mxu0 %v57
  %1243 = vmatprep.subr.mxu0 0.0
  %1244 = vmatpush1.msra.mxu0 %v58
  %1245 = vmatprep.subr.mxu0 0.0
  %1246 = vmatpush1.msra.mxu0 %v59
  %1247 = vmatprep.subr.mxu0 0.0
  %1248 = vmatpush1.msra.mxu0 %v60
  %1249 = vmatprep.subr.mxu0 0.0
  %1250 = vmatpush1.msra.mxu0 0.0
  %1251 = vmatprep.subr.mxu0 0.0
  %1252 = vmatpush1.msra.mxu0 0.0
  %1253 = vmatprep.subr.mxu0 0.0
  %1254 = vmatpush1.msra.mxu0 0.0
  %1255 = vmatprep.subr.mxu0 0.0
  %1256 = vmatpush1.msra.mxu0 0.0
  %1257 = vmatprep.subr.mxu0 0.0
  %1258 = vmatpush1.msra.mxu0 0.0
  %1259 = vmatprep.subr.mxu0 0.0
  %1260 = vmatpush1.msra.mxu0 0.0
  %1261 = vmatprep.subr.mxu0 0.0
  %1262 = vmatpush1.msra.mxu0 0.0
  %1263 = vmatprep.subr.mxu0 0.0
  %1264 = vmatpush1.msra.mxu0 0.0
  %1265 = vmatprep.subr.mxu0 0.0
  %1266 = vmatpush1.msra.mxu0 0.0
  %1267 = vmatprep.subr.mxu0 0.0
  %1268 = vmatpush1.msra.mxu0 0.0
  %1269 = vmatprep.subr.mxu0 0.0
  %1270 = vmatpush1.msra.mxu0 0.0
  %1271 = vmatprep.subr.mxu0 0.0
  %1272 = vmatpush1.msra.mxu0 0.0
  %1273 = vmatprep.subr.mxu0 0.0
  %1274 = vmatpush1.msra.mxu0 0.0
  %1275 = vmatprep.subr.mxu0 0.0
  %1276 = vmatpush1.msra.mxu0 0.0
  %1277 = vmatprep.subr.mxu0 0.0
  %1278 = vmatpush1.msra.mxu0 0.0
  %1279 = vmatprep.subr.mxu0 0.0
  %1280 = vmatpush1.msra.mxu0 0.0
  %1281 = vmatprep.subr.mxu0 0.0
  %1282 = vmatpush1.msra.mxu0 0.0
  %1283 = vmatprep.subr.mxu0 0.0
  %1284 = vmatpush1.msra.mxu0 0.0
  %1285 = vmatprep.subr.mxu0 0.0
  %1286 = vmatpush1.msra.mxu0 0.0
  %1287 = vmatprep.subr.mxu0 0.0
  %1288 = vmatpush1.msra.mxu0 0.0
  %1289 = vmatprep.subr.mxu0 0.0
  %1290 = vmatpush1.msra.mxu0 0.0
  %1291 = vmatprep.subr.mxu0 0.0
  %1292 = vmatpush1.msra.mxu0 0.0
  %1293 = vmatprep.subr.mxu0 0.0
  %1294 = vmatpush1.msra.mxu0 0.0
  %1295 = vmatprep.subr.mxu0 0.0
  %1296 = vmatpush1.msra.mxu0 0.0
  %1297 = vmatprep.subr.mxu0 0.0
  %1298 = vmatpush1.msra.mxu0 0.0
  %1299 = vmatprep.subr.mxu0 0.0
  %1300 = vmatpush1.msra.mxu0 0.0
  %1301 = vmatprep.subr.mxu0 0.0
  %1302 = vmatpush1.msra.mxu0 0.0
  %1303 = vmatprep.subr.mxu0 0.0
  %1304 = vmatpush1.msra.mxu0 0.0
  %1305 = vmatprep.mubr.f32.mxu0 0.0
  %1306 = vmatmul.mubr.f32.gmra.mrb[0].mxu0 %v1085
  %v1307 = vpop.f32.mrb[0].mxu0
  %v1308 = vadd.f32 0.0, %v1307
  %v1309 = vpop.f32.mrb[0].mxu0
  %1310 = vdwg.mxu0
  %v1311 = vadd.f32 %v354, %v1308
  %v1312 = vtanh.pop %v1311
  %1313 = vmatprep.subr.mxu0 0.0
  %1314 = vmatpush1.msra.mxu0 %v61
  %1315 = vmatprep.subr.mxu0 0.0
  %1316 = vmatpush1.msra.mxu0 %v62
  %1317 = vmatprep.subr.mxu0 0.0
  %1318 = vmatpush1.msra.mxu0 %v63
  %1319 = vmatprep.subr.mxu0 0.0
  %1320 = vmatpush1.msra.mxu0 %v64
  %1321 = vmatprep.subr.mxu0 0.0
  %1322 = vmatpush1.msra.mxu0 0.0
  %1323 = vmatprep.subr.mxu0 0.0
  %1324 = vmatpush1.msra.mxu0 0.0
  %1325 = vmatprep.subr.mxu0 0.0
  %1326 = vmatpush1.msra.mxu0 0.0
  %1327 = vmatprep.subr.mxu0 0.0
  %1328 = vmatpush1.msra.mxu0 0.0
  %1329 = vmatprep.subr.mxu0 0.0
  %1330 = vmatpush1.msra.mxu0 0.0
  %1331 = vmatprep.subr.mxu0 0.0
  %1332 = vmatpush1.msra.mxu0 0.0
  %1333 = vmatprep.subr.mxu0 0.0
  %1334 = vmatpush1.msra.mxu0 0.0
  %1335 = vmatprep.subr.mxu0 0.0
  %1336 = vmatpush1.msra.mxu0 0.0
  %1337 = vmatprep.subr.mxu0 0.0
  %1338 = vmatpush1.msra.mxu0 0.0
  %1339 = vmatprep.subr.mxu0 0.0
  %1340 = vmatpush1.msra.mxu0 0.0
  %1341 = vmatprep.subr.mxu0 0.0
  %1342 = vmatpush1.msra.mxu0 0.0
  %1343 = vmatprep.subr.mxu0 0.0
  %1344 = vmatpush1.msra.mxu0 0.0
  %1345 = vmatprep.subr.mxu0 0.0
  %1346 = vmatpush1.msra.mxu0 0.0
  %1347 = vmatprep.subr.mxu0 0.0
  %1348 = vmatpush1.msra.mxu0 0.0
  %1349 = vmatprep.subr.mxu0 0.0
  %1350 = vmatpush1.msra.mxu0 0.0
  %1351 = vmatprep.subr.mxu0 0.0
  %1352 = vmatpush1.msra.mxu0 0.0
  %1353 = vmatprep.subr.mxu0 0.0
  %1354 = vmatpush1.msra.mxu0 0.0
  %1355 = vmatprep.subr.mxu0 0.0
  %1356 = vmatpush1.msra.mxu0 0.0
  %1357 = vmatprep.subr.mxu0 0.0
  %1358 = vmatpush1.msra.mxu0 0.0
  %1359 = vmatprep.subr.mxu0 0.0
  %1360 = vmatpush1.msra.mxu0 0.0
  %1361 = vmatprep.subr.mxu0 0.0
  %1362 = vmatpush1.msra.mxu0 0.0
  %1363 = vmatprep.subr.mxu0 0.0
  %1364 = vmatpush1.msra.mxu0 0.0
  %1365 = vmatprep.subr.mxu0 0.0
  %1366 = vmatpush1.msra.mxu0 0.0
  %1367 = vmatprep.subr.mxu0 0.0
  %1368 = vmatpush1.msra.mxu0 0.0
  %1369 = vmatprep.subr.mxu0 0.0
  %1370 = vmatpush1.msra.mxu0 0.0
  %1371 = vmatprep.subr.mxu0 0.0
  %1372 = vmatpush1.msra.mxu0 0.0
  %1373 = vmatprep.subr.mxu0 0.0
  %1374 = vmatpush1.msra.mxu0 0.0
  %1375 = vmatprep.subr.mxu0 0.0
  %1376 = vmatpush1.msra.mxu0 0.0
  %1377 = vmatprep.mubr.f32.mxu0 0.0
  %1378 = vmatmul.mubr.f32.gmra.mrb[0].mxu0 %v1085
  %v1379 = vpop.f32.mrb[0].mxu0
  %v1380 = vadd.f32 0.0, %v1379
  %v1381 = vpop.f32.mrb[0].mxu0
  %1382 = vdwg.mxu0
  %v1383 = vadd.f32 %v448, %v1380
  %v1384 = vxor.u32 %v1383, 2147483648
  %v1385 = vmul.f32 %v1384, 1.442695
  %v1386 = vpow.pop %v1385
  %v1387 = vadd.f32 %v1386, 1.0
  %v1388 = vrcp.pop %v1387
  %v1389 = vmul.f32 1.0, %v1388
  %v1390 = vmul.f32 %v1240, %v1081
  %v1391 = vmul.f32 %v1163, %v1312
  %v1392 = vadd.f32 %v1390, %v1391
  %v1393 = vtanh.pop %v1392
  %v1394 = vmul.f32 %v1389, %v1393
  %v1396 = vsel %vm461, %v1394, 0
  %1398 = vmatprep.subr.mxu0 0.0
  %1399 = vmatpush1.msra.mxu0 %v49
  %1400 = vmatprep.subr.mxu0 0.0
  %1401 = vmatpush1.msra.mxu0 %v50
  %1402 = vmatprep.subr.mxu0 0.0
  %1403 = vmatpush1.msra.mxu0 %v51
  %1404 = vmatprep.subr.mxu0 0.0
  %1405 = vmatpush1.msra.mxu0 %v52
  %1406 = vmatprep.subr.mxu0 0.0
  %1407 = vmatpush1.msra.mxu0 0.0
  %1408 = vmatprep.subr.mxu0 0.0
  %1409 = vmatpush1.msra.mxu0 0.0
  %1410 = vmatprep.subr.mxu0 0.0
  %1411 = vmatpush1.msra.mxu0 0.0
  %1412 = vmatprep.subr.mxu0 0.0
  %1413 = vmatpush1.msra.mxu0 0.0
  %1414 = vmatprep.subr.mxu0 0.0
  %1415 = vmatpush1.msra.mxu0 0.0
  %1416 = vmatprep.subr.mxu0 0.0
  %1417 = vmatpush1.msra.mxu0 0.0
  %1418 = vmatprep.subr.mxu0 0.0
  %1419 = vmatpush1.msra.mxu0 0.0
  %1420 = vmatprep.subr.mxu0 0.0
  %1421 = vmatpush1.msra.mxu0 0.0
  %1422 = vmatprep.subr.mxu0 0.0
  %1423 = vmatpush1.msra.mxu0 0.0
  %1424 = vmatprep.subr.mxu0 0.0
  %1425 = vmatpush1.msra.mxu0 0.0
  %1426 = vmatprep.subr.mxu0 0.0
  %1427 = vmatpush1.msra.mxu0 0.0
  %1428 = vmatprep.subr.mxu0 0.0
  %1429 = vmatpush1.msra.mxu0 0.0
  %1430 = vmatprep.subr.mxu0 0.0
  %1431 = vmatpush1.msra.mxu0 0.0
  %1432 = vmatprep.subr.mxu0 0.0
  %1433 = vmatpush1.msra.mxu0 0.0
  %1434 = vmatprep.subr.mxu0 0.0
  %1435 = vmatpush1.msra.mxu0 0.0
  %1436 = vmatprep.subr.mxu0 0.0
  %1437 = vmatpush1.msra.mxu0 0.0
  %1438 = vmatprep.subr.mxu0 0.0
  %1439 = vmatpush1.msra.mxu0 0.0
  %1440 = vmatprep.subr.mxu0 0.0
  %1441 = vmatpush1.msra.mxu0 0.0
  %1442 = vmatprep.subr.mxu0 0.0
  %1443 = vmatpush1.msra.mxu0 0.0
  %1444 = vmatprep.subr.mxu0 0.0
  %1445 = vmatpush1.msra.mxu0 0.0
  %1446 = vmatprep.subr.mxu0 0.0
  %1447 = vmatpush1.msra.mxu0 0.0
  %1448 = vmatprep.subr.mxu0 0.0
  %1449 = vmatpush1.msra.mxu0 0.0
  %1450 = vmatprep.subr.mxu0 0.0
  %1451 = vmatpush1.msra.mxu0 0.0
  %1452 = vmatprep.subr.mxu0 0.0
  %1453 = vmatpush1.msra.mxu0 0.0
  %1454 = vmatprep.subr.mxu0 0.0
  %1455 = vmatpush1.msra.mxu0 0.0
  %1456 = vmatprep.subr.mxu0 0.0
  %1457 = vmatpush1.msra.mxu0 0.0
  %1458 = vmatprep.subr.mxu0 0.0
  %1459 = vmatpush1.msra.mxu0 0.0
  %1460 = vmatprep.subr.mxu0 0.0
  %1461 = vmatpush1.msra.mxu0 0.0
  %1462 = vmatprep.mubr.f32.mxu0 0.0
  %1463 = vmatmul.mubr.f32.gmra.mrb[0].mxu0 %v1396
  %v1464 = vpop.f32.mrb[0].mxu0
  %v1465 = vadd.f32 0.0, %v1464
  %v1466 = vpop.f32.mrb[0].mxu0
  %1467 = vdwg.mxu0
  %v1468 = vadd.f32 %v171, %v1465
  %v1469 = vxor.u32 %v1468, 2147483648
  %v1470 = vmul.f32 %v1469, 1.442695
  %v1471 = vpow.pop %v1470
  %v1472 = vadd.f32 %v1471, 1.0
  %v1473 = vrcp.pop %v1472
  %v1474 = vmul.f32 1.0, %v1473
  %1475 = vmatprep.subr.mxu0 0.0
  %1476 = vmatpush1.msra.mxu0 %v53
  %1477 = vmatprep.subr.mxu0 0.0
  %1478 = vmatpush1.msra.mxu0 %v54
  %1479 = vmatprep.subr.mxu0 0.0
  %1480 = vmatpush1.msra.mxu0 %v55
  %1481 = vmatprep.subr.mxu0 0.0
  %1482 = vmatpush1.msra.mxu0 %v56
  %1483 = vmatprep.subr.mxu0 0.0
  %1484 = vmatpush1.msra.mxu0 0.0
  %1485 = vmatprep.subr.mxu0 0.0
  %1486 = vmatpush1.msra.mxu0 0.0
  %1487 = vmatprep.subr.mxu0 0.0
  %1488 = vmatpush1.msra.mxu0 0.0
  %1489 = vmatprep.subr.mxu0 0.0
  %1490 = vmatpush1.msra.mxu0 0.0
  %1491 = vmatprep.subr.mxu0 0.0
  %1492 = vmatpush1.msra.mxu0 0.0
  %1493 = vmatprep.subr.mxu0 0.0
  %1494 = vmatpush1.msra.mxu0 0.0
  %1495 = vmatprep.subr.mxu0 0.0
  %1496 = vmatpush1.msra.mxu0 0.0
  %1497 = vmatprep.subr.mxu0 0.0
  %1498 = vmatpush1.msra.mxu0 0.0
  %1499 = vmatprep.subr.mxu0 0.0
  %1500 = vmatpush1.msra.mxu0 0.0
  %1501 = vmatprep.subr.mxu0 0.0
  %1502 = vmatpush1.msra.mxu0 0.0
  %1503 = vmatprep.subr.mxu0 0.0
  %1504 = vmatpush1.msra.mxu0 0.0
  %1505 = vmatprep.subr.mxu0 0.0
  %1506 = vmatpush1.msra.mxu0 0.0
  %1507 = vmatprep.subr.mxu0 0.0
  %1508 = vmatpush1.msra.mxu0 0.0
  %1509 = vmatprep.subr.mxu0 0.0
  %1510 = vmatpush1.msra.mxu0 0.0
  %1511 = vmatprep.subr.mxu0 0.0
  %1512 = vmatpush1.msra.mxu0 0.0
  %1513 = vmatprep.subr.mxu0 0.0
  %1514 = vmatpush1.msra.mxu0 0.0
  %1515 = vmatprep.subr.mxu0 0.0
  %1516 = vmatpush1.msra.mxu0 0.0
  %1517 = vmatprep.subr.mxu0 0.0
  %1518 = vmatpush1.msra.mxu0 0.0
  %1519 = vmatprep.subr.mxu0 0.0
  %1520 = vmatpush1.msra.mxu0 0.0
  %1521 = vmatprep.subr.mxu0 0.0
  %1522 = vmatpush1.msra.mxu0 0.0
  %1523 = vmatprep.subr.mxu0 0.0
  %1524 = vmatpush1.msra.mxu0 0.0
  %1525 = vmatprep.subr.mxu0 0.0
  %1526 = vmatpush1.msra.mxu0 0.0
  %1527 = vmatprep.subr.mxu0 0.0
  %1528 = vmatpush1.msra.mxu0 0.0
  %1529 = vmatprep.subr.mxu0 0.0
  %1530 = vmatpush1.msra.mxu0 0.0
  %1531 = vmatprep.subr.mxu0 0.0
  %1532 = vmatpush1.msra.mxu0 0.0
  %1533 = vmatprep.subr.mxu0 0.0
  %1534 = vmatpush1.msra.mxu0 0.0
  %1535 = vmatprep.subr.mxu0 0.0
  %1536 = vmatpush1.msra.mxu0 0.0
  %1537 = vmatprep.subr.mxu0 0.0
  %1538 = vmatpush1.msra.mxu0 0.0
  %1539 = vmatprep.mubr.f32.mxu0 0.0
  %1540 = vmatmul.mubr.f32.gmra.mrb[0].mxu0 %v1396
  %v1541 = vpop.f32.mrb[0].mxu0
  %v1542 = vadd.f32 0.0, %v1541
  %v1543 = vpop.f32.mrb[0].mxu0
  %1544 = vdwg.mxu0
  %v1545 = vadd.f32 %v265, %v1542
  %v1546 = vxor.u32 %v1545, 2147483648
  %v1547 = vmul.f32 %v1546, 1.442695
  %v1548 = vpow.pop %v1547
  %v1549 = vadd.f32 %v1548, 1.0
  %v1550 = vrcp.pop %v1549
  %v1551 = vmul.f32 1.0, %v1550
  %1552 = vmatprep.subr.mxu0 0.0
  %1553 = vmatpush1.msra.mxu0 %v57
  %1554 = vmatprep.subr.mxu0 0.0
  %1555 = vmatpush1.msra.mxu0 %v58
  %1556 = vmatprep.subr.mxu0 0.0
  %1557 = vmatpush1.msra.mxu0 %v59
  %1558 = vmatprep.subr.mxu0 0.0
  %1559 = vmatpush1.msra.mxu0 %v60
  %1560 = vmatprep.subr.mxu0 0.0
  %1561 = vmatpush1.msra.mxu0 0.0
  %1562 = vmatprep.subr.mxu0 0.0
  %1563 = vmatpush1.msra.mxu0 0.0
  %1564 = vmatprep.subr.mxu0 0.0
  %1565 = vmatpush1.msra.mxu0 0.0
  %1566 = vmatprep.subr.mxu0 0.0
  %1567 = vmatpush1.msra.mxu0 0.0
  %1568 = vmatprep.subr.mxu0 0.0
  %1569 = vmatpush1.msra.mxu0 0.0
  %1570 = vmatprep.subr.mxu0 0.0
  %1571 = vmatpush1.msra.mxu0 0.0
  %1572 = vmatprep.subr.mxu0 0.0
  %1573 = vmatpush1.msra.mxu0 0.0
  %1574 = vmatprep.subr.mxu0 0.0
  %1575 = vmatpush1.msra.mxu0 0.0
  %1576 = vmatprep.subr.mxu0 0.0
  %1577 = vmatpush1.msra.mxu0 0.0
  %1578 = vmatprep.subr.mxu0 0.0
  %1579 = vmatpush1.msra.mxu0 0.0
  %1580 = vmatprep.subr.mxu0 0.0
  %1581 = vmatpush1.msra.mxu0 0.0
  %1582 = vmatprep.subr.mxu0 0.0
  %1583 = vmatpush1.msra.mxu0 0.0
  %1584 = vmatprep.subr.mxu0 0.0
  %1585 = vmatpush1.msra.mxu0 0.0
  %1586 = vmatprep.subr.mxu0 0.0
  %1587 = vmatpush1.msra.mxu0 0.0
  %1588 = vmatprep.subr.mxu0 0.0
  %1589 = vmatpush1.msra.mxu0 0.0
  %1590 = vmatprep.subr.mxu0 0.0
  %1591 = vmatpush1.msra.mxu0 0.0
  %1592 = vmatprep.subr.mxu0 0.0
  %1593 = vmatpush1.msra.mxu0 0.0
  %1594 = vmatprep.subr.mxu0 0.0
  %1595 = vmatpush1.msra.mxu0 0.0
  %1596 = vmatprep.subr.mxu0 0.0
  %1597 = vmatpush1.msra.mxu0 0.0
  %1598 = vmatprep.subr.mxu0 0.0
  %1599 = vmatpush1.msra.mxu0 0.0
  %1600 = vmatprep.subr.mxu0 0.0
  %1601 = vmatpush1.msra.mxu0 0.0
  %1602 = vmatprep.subr.mxu0 0.0
  %1603 = vmatpush1.msra.mxu0 0.0
  %1604 = vmatprep.subr.mxu0 0.0
  %1605 = vmatpush1.msra.mxu0 0.0
  %1606 = vmatprep.subr.mxu0 0.0
  %1607 = vmatpush1.msra.mxu0 0.0
  %1608 = vmatprep.subr.mxu0 0.0
  %1609 = vmatpush1.msra.mxu0 0.0
  %1610 = vmatprep.subr.mxu0 0.0
  %1611 = vmatpush1.msra.mxu0 0.0
  %1612 = vmatprep.subr.mxu0 0.0
  %1613 = vmatpush1.msra.mxu0 0.0
  %1614 = vmatprep.subr.mxu0 0.0
  %1615 = vmatpush1.msra.mxu0 0.0
  %1616 = vmatprep.mubr.f32.mxu0 0.0
  %1617 = vmatmul.mubr.f32.gmra.mrb[0].mxu0 %v1396
  %v1618 = vpop.f32.mrb[0].mxu0
  %v1619 = vadd.f32 0.0, %v1618
  %v1620 = vpop.f32.mrb[0].mxu0
  %1621 = vdwg.mxu0
  %v1622 = vadd.f32 %v359, %v1619
  %v1623 = vtanh.pop %v1622
  %1624 = vmatprep.subr.mxu0 0.0
  %1625 = vmatpush1.msra.mxu0 %v61
  %1626 = vmatprep.subr.mxu0 0.0
  %1627 = vmatpush1.msra.mxu0 %v62
  %1628 = vmatprep.subr.mxu0 0.0
  %1629 = vmatpush1.msra.mxu0 %v63
  %1630 = vmatprep.subr.mxu0 0.0
  %1631 = vmatpush1.msra.mxu0 %v64
  %1632 = vmatprep.subr.mxu0 0.0
  %1633 = vmatpush1.msra.mxu0 0.0
  %1634 = vmatprep.subr.mxu0 0.0
  %1635 = vmatpush1.msra.mxu0 0.0
  %1636 = vmatprep.subr.mxu0 0.0
  %1637 = vmatpush1.msra.mxu0 0.0
  %1638 = vmatprep.subr.mxu0 0.0
  %1639 = vmatpush1.msra.mxu0 0.0
  %1640 = vmatprep.subr.mxu0 0.0
  %1641 = vmatpush1.msra.mxu0 0.0
  %1642 = vmatprep.subr.mxu0 0.0
  %1643 = vmatpush1.msra.mxu0 0.0
  %1644 = vmatprep.subr.mxu0 0.0
  %1645 = vmatpush1.msra.mxu0 0.0
  %1646 = vmatprep.subr.mxu0 0.0
  %1647 = vmatpush1.msra.mxu0 0.0
  %1648 = vmatprep.subr.mxu0 0.0
  %1649 = vmatpush1.msra.mxu0 0.0
  %1650 = vmatprep.subr.mxu0 0.0
  %1651 = vmatpush1.msra.mxu0 0.0
  %1652 = vmatprep.subr.mxu0 0.0
  %1653 = vmatpush1.msra.mxu0 0.0
  %1654 = vmatprep.subr.mxu0 0.0
  %1655 = vmatpush1.msra.mxu0 0.0
  %1656 = vmatprep.subr.mxu0 0.0
  %1657 = vmatpush1.msra.mxu0 0.0
  %1658 = vmatprep.subr.mxu0 0.0
  %1659 = vmatpush1.msra.mxu0 0.0
  %1660 = vmatprep.subr.mxu0 0.0
  %1661 = vmatpush1.msra.mxu0 0.0
  %1662 = vmatprep.subr.mxu0 0.0
  %1663 = vmatpush1.msra.mxu0 0.0
  %1664 = vmatprep.subr.mxu0 0.0
  %1665 = vmatpush1.msra.mxu0 0.0
  %1666 = vmatprep.subr.mxu0 0.0
  %1667 = vmatpush1.msra.mxu0 0.0
  %1668 = vmatprep.subr.mxu0 0.0
  %1669 = vmatpush1.msra.mxu0 0.0
  %1670 = vmatprep.subr.mxu0 0.0
  %1671 = vmatpush1.msra.mxu0 0.0
  %1672 = vmatprep.subr.mxu0 0.0
  %1673 = vmatpush1.msra.mxu0 0.0
  %1674 = vmatprep.subr.mxu0 0.0
  %1675 = vmatpush1.msra.mxu0 0.0
  %1676 = vmatprep.subr.mxu0 0.0
  %1677 = vmatpush1.msra.mxu0 0.0
  %1678 = vmatprep.subr.mxu0 0.0
  %1679 = vmatpush1.msra.mxu0 0.0
  %1680 = vmatprep.subr.mxu0 0.0
  %1681 = vmatpush1.msra.mxu0 0.0
  %1682 = vmatprep.subr.mxu0 0.0
  %1683 = vmatpush1.msra.mxu0 0.0
  %1684 = vmatprep.subr.mxu0 0.0
  %1685 = vmatpush1.msra.mxu0 0.0
  %1686 = vmatprep.subr.mxu0 0.0
  %1687 = vmatpush1.msra.mxu0 0.0
  %1688 = vmatprep.mubr.f32.mxu0 0.0
  %1689 = vmatmul.mubr.f32.gmra.mrb[0].mxu0 %v1396
  %v1690 = vpop.f32.mrb[0].mxu0
  %v1691 = vadd.f32 0.0, %v1690
  %v1692 = vpop.f32.mrb[0].mxu0
  %1693 = vdwg.mxu0
  %v1694 = vadd.f32 %v453, %v1691
  %v1695 = vxor.u32 %v1694, 2147483648
  %v1696 = vmul.f32 %v1695, 1.442695
  %v1697 = vpow.pop %v1696
  %v1698 = vadd.f32 %v1697, 1.0
  %v1699 = vrcp.pop %v1698
  %v1700 = vmul.f32 1.0, %v1699
  %v1701 = vmul.f32 %v1551, %v1392
  %v1702 = vmul.f32 %v1474, %v1623
  %v1703 = vadd.f32 %v1701, %v1702
  %v1704 = vtanh.pop %v1703
  %v1705 = vmul.f32 %v1700, %v1704
  %v1707 = vsel %vm461, %v1705, 0
  %1709 = vmatprep.subr.mxu0 0.0
  %1710 = vmatpush1.msra.mxu0 %v49
  %1711 = vmatprep.subr.mxu0 0.0
  %1712 = vmatpush1.msra.mxu0 %v50
  %1713 = vmatprep.subr.mxu0 0.0
  %1714 = vmatpush1.msra.mxu0 %v51
  %1715 = vmatprep.subr.mxu0 0.0
  %1716 = vmatpush1.msra.mxu0 %v52
  %1717 = vmatprep.subr.mxu0 0.0
  %1718 = vmatpush1.msra.mxu0 0.0
  %1719 = vmatprep.subr.mxu0 0.0
  %1720 = vmatpush1.msra.mxu0 0.0
  %1721 = vmatprep.subr.mxu0 0.0
  %1722 = vmatpush1.msra.mxu0 0.0
  %1723 = vmatprep.subr.mxu0 0.0
  %1724 = vmatpush1.msra.mxu0 0.0
  %1725 = vmatprep.subr.mxu0 0.0
  %1726 = vmatpush1.msra.mxu0 0.0
  %1727 = vmatprep.subr.mxu0 0.0
  %1728 = vmatpush1.msra.mxu0 0.0
  %1729 = vmatprep.subr.mxu0 0.0
  %1730 = vmatpush1.msra.mxu0 0.0
  %1731 = vmatprep.subr.mxu0 0.0
  %1732 = vmatpush1.msra.mxu0 0.0
  %1733 = vmatprep.subr.mxu0 0.0
  %1734 = vmatpush1.msra.mxu0 0.0
  %1735 = vmatprep.subr.mxu0 0.0
  %1736 = vmatpush1.msra.mxu0 0.0
  %1737 = vmatprep.subr.mxu0 0.0
  %1738 = vmatpush1.msra.mxu0 0.0
  %1739 = vmatprep.subr.mxu0 0.0
  %1740 = vmatpush1.msra.mxu0 0.0
  %1741 = vmatprep.subr.mxu0 0.0
  %1742 = vmatpush1.msra.mxu0 0.0
  %1743 = vmatprep.subr.mxu0 0.0
  %1744 = vmatpush1.msra.mxu0 0.0
  %1745 = vmatprep.subr.mxu0 0.0
  %1746 = vmatpush1.msra.mxu0 0.0
  %1747 = vmatprep.subr.mxu0 0.0
  %1748 = vmatpush1.msra.mxu0 0.0
  %1749 = vmatprep.subr.mxu0 0.0
  %1750 = vmatpush1.msra.mxu0 0.0
  %1751 = vmatprep.subr.mxu0 0.0
  %1752 = vmatpush1.msra.mxu0 0.0
  %1753 = vmatprep.subr.mxu0 0.0
  %1754 = vmatpush1.msra.mxu0 0.0
  %1755 = vmatprep.subr.mxu0 0.0
  %1756 = vmatpush1.msra.mxu0 0.0
  %1757 = vmatprep.subr.mxu0 0.0
  %1758 = vmatpush1.msra.mxu0 0.0
  %1759 = vmatprep.subr.mxu0 0.0
  %1760 = vmatpush1.msra.mxu0 0.0
  %1761 = vmatprep.subr.mxu0 0.0
  %1762 = vmatpush1.msra.mxu0 0.0
  %1763 = vmatprep.subr.mxu0 0.0
  %1764 = vmatpush1.msra.mxu0 0.0
  %1765 = vmatprep.subr.mxu0 0.0
  %1766 = vmatpush1.msra.mxu0 0.0
  %1767 = vmatprep.subr.mxu0 0.0
  %1768 = vmatpush1.msra.mxu0 0.0
  %1769 = vmatprep.subr.mxu0 0.0
  %1770 = vmatpush1.msra.mxu0 0.0
  %1771 = vmatprep.subr.mxu0 0.0
  %1772 = vmatpush1.msra.mxu0 0.0
  %1773 = vmatprep.mubr.f32.mxu0 0.0
  %1774 = vmatmul.mubr.f32.gmra.mrb[0].mxu0 %v1707
  %v1775 = vpop.f32.mrb[0].mxu0
  %v1776 = vadd.f32 0.0, %v1775
  %v1777 = vpop.f32.mrb[0].mxu0
  %1778 = vdwg.mxu0
  %v1779 = vadd.f32 %v176, %v1776
  %v1780 = vxor.u32 %v1779, 2147483648
  %v1781 = vmul.f32 %v1780, 1.442695
  %v1782 = vpow.pop %v1781
  %v1783 = vadd.f32 %v1782, 1.0
  %v1784 = vrcp.pop %v1783
  %v1785 = vmul.f32 1.0, %v1784
  %1786 = vmatprep.subr.mxu0 0.0
  %1787 = vmatpush1.msra.mxu0 %v53
  %1788 = vmatprep.subr.mxu0 0.0
  %1789 = vmatpush1.msra.mxu0 %v54
  %1790 = vmatprep.subr.mxu0 0.0
  %1791 = vmatpush1.msra.mxu0 %v55
  %1792 = vmatprep.subr.mxu0 0.0
  %1793 = vmatpush1.msra.mxu0 %v56
  %1794 = vmatprep.subr.mxu0 0.0
  %1795 = vmatpush1.msra.mxu0 0.0
  %1796 = vmatprep.subr.mxu0 0.0
  %1797 = vmatpush1.msra.mxu0 0.0
  %1798 = vmatprep.subr.mxu0 0.0
  %1799 = vmatpush1.msra.mxu0 0.0
  %1800 = vmatprep.subr.mxu0 0.0
  %1801 = vmatpush1.msra.mxu0 0.0
  %1802 = vmatprep.subr.mxu0 0.0
  %1803 = vmatpush1.msra.mxu0 0.0
  %1804 = vmatprep.subr.mxu0 0.0
  %1805 = vmatpush1.msra.mxu0 0.0
  %1806 = vmatprep.subr.mxu0 0.0
  %1807 = vmatpush1.msra.mxu0 0.0
  %1808 = vmatprep.subr.mxu0 0.0
  %1809 = vmatpush1.msra.mxu0 0.0
  %1810 = vmatprep.subr.mxu0 0.0
  %1811 = vmatpush1.msra.mxu0 0.0
  %1812 = vmatprep.subr.mxu0 0.0
  %1813 = vmatpush1.msra.mxu0 0.0
  %1814 = vmatprep.subr.mxu0 0.0
  %1815 = vmatpush1.msra.mxu0 0.0
  %1816 = vmatprep.subr.mxu0 0.0
  %1817 = vmatpush1.msra.mxu0 0.0
  %1818 = vmatprep.subr.mxu0 0.0
  %1819 = vmatpush1.msra.mxu0 0.0
  %1820 = vmatprep.subr.mxu0 0.0
  %1821 = vmatpush1.msra.mxu0 0.0
  %1822 = vmatprep.subr.mxu0 0.0
  %1823 = vmatpush1.msra.mxu0 0.0
  %1824 = vmatprep.subr.mxu0 0.0
  %1825 = vmatpush1.msra.mxu0 0.0
  %1826 = vmatprep.subr.mxu0 0.0
  %1827 = vmatpush1.msra.mxu0 0.0
  %1828 = vmatprep.subr.mxu0 0.0
  %1829 = vmatpush1.msra.mxu0 0.0
  %1830 = vmatprep.subr.mxu0 0.0
  %1831 = vmatpush1.msra.mxu0 0.0
  %1832 = vmatprep.subr.mxu0 0.0
  %1833 = vmatpush1.msra.mxu0 0.0
  %1834 = vmatprep.subr.mxu0 0.0
  %1835 = vmatpush1.msra.mxu0 0.0
  %1836 = vmatprep.subr.mxu0 0.0
  %1837 = vmatpush1.msra.mxu0 0.0
  %1838 = vmatprep.subr.mxu0 0.0
  %1839 = vmatpush1.msra.mxu0 0.0
  %1840 = vmatprep.subr.mxu0 0.0
  %1841 = vmatpush1.msra.mxu0 0.0
  %1842 = vmatprep.subr.mxu0 0.0
  %1843 = vmatpush1.msra.mxu0 0.0
  %1844 = vmatprep.subr.mxu0 0.0
  %1845 = vmatpush1.msra.mxu0 0.0
  %1846 = vmatprep.subr.mxu0 0.0
  %1847 = vmatpush1.msra.mxu0 0.0
  %1848 = vmatprep.subr.mxu0 0.0
  %1849 = vmatpush1.msra.mxu0 0.0
  %1850 = vmatprep.mubr.f32.mxu0 0.0
  %1851 = vmatmul.mubr.f32.gmra.mrb[0].mxu0 %v1707
  %v1852 = vpop.f32.mrb[0].mxu0
  %v1853 = vadd.f32 0.0, %v1852
  %v1854 = vpop.f32.mrb[0].mxu0
  %1855 = vdwg.mxu0
  %v1856 = vadd.f32 %v270, %v1853
  %v1857 = vxor.u32 %v1856, 2147483648
  %v1858 = vmul.f32 %v1857, 1.442695
  %v1859 = vpow.pop %v1858
  %v1860 = vadd.f32 %v1859, 1.0
  %v1861 = vrcp.pop %v1860
  %v1862 = vmul.f32 1.0, %v1861
  %1863 = vmatprep.subr.mxu0 0.0
  %1864 = vmatpush1.msra.mxu0 %v57
  %1865 = vmatprep.subr.mxu0 0.0
  %1866 = vmatpush1.msra.mxu0 %v58
  %1867 = vmatprep.subr.mxu0 0.0
  %1868 = vmatpush1.msra.mxu0 %v59
  %1869 = vmatprep.subr.mxu0 0.0
  %1870 = vmatpush1.msra.mxu0 %v60
  %1871 = vmatprep.subr.mxu0 0.0
  %1872 = vmatpush1.msra.mxu0 0.0
  %1873 = vmatprep.subr.mxu0 0.0
  %1874 = vmatpush1.msra.mxu0 0.0
  %1875 = vmatprep.subr.mxu0 0.0
  %1876 = vmatpush1.msra.mxu0 0.0
  %1877 = vmatprep.subr.mxu0 0.0
  %1878 = vmatpush1.msra.mxu0 0.0
  %1879 = vmatprep.subr.mxu0 0.0
  %1880 = vmatpush1.msra.mxu0 0.0
  %1881 = vmatprep.subr.mxu0 0.0
  %1882 = vmatpush1.msra.mxu0 0.0
  %1883 = vmatprep.subr.mxu0 0.0
  %1884 = vmatpush1.msra.mxu0 0.0
  %1885 = vmatprep.subr.mxu0 0.0
  %1886 = vmatpush1.msra.mxu0 0.0
  %1887 = vmatprep.subr.mxu0 0.0
  %1888 = vmatpush1.msra.mxu0 0.0
  %1889 = vmatprep.subr.mxu0 0.0
  %1890 = vmatpush1.msra.mxu0 0.0
  %1891 = vmatprep.subr.mxu0 0.0
  %1892 = vmatpush1.msra.mxu0 0.0
  %1893 = vmatprep.subr.mxu0 0.0
  %1894 = vmatpush1.msra.mxu0 0.0
  %1895 = vmatprep.subr.mxu0 0.0
  %1896 = vmatpush1.msra.mxu0 0.0
  %1897 = vmatprep.subr.mxu0 0.0
  %1898 = vmatpush1.msra.mxu0 0.0
  %1899 = vmatprep.subr.mxu0 0.0
  %1900 = vmatpush1.msra.mxu0 0.0
  %1901 = vmatprep.subr.mxu0 0.0
  %1902 = vmatpush1.msra.mxu0 0.0
  %1903 = vmatprep.subr.mxu0 0.0
  %1904 = vmatpush1.msra.mxu0 0.0
  %1905 = vmatprep.subr.mxu0 0.0
  %1906 = vmatpush1.msra.mxu0 0.0
  %1907 = vmatprep.subr.mxu0 0.0
  %1908 = vmatpush1.msra.mxu0 0.0
  %1909 = vmatprep.subr.mxu0 0.0
  %1910 = vmatpush1.msra.mxu0 0.0
  %1911 = vmatprep.subr.mxu0 0.0
  %1912 = vmatpush1.msra.mxu0 0.0
  %1913 = vmatprep.subr.mxu0 0.0
  %1914 = vmatpush1.msra.mxu0 0.0
  %1915 = vmatprep.subr.mxu0 0.0
  %1916 = vmatpush1.msra.mxu0 0.0
  %1917 = vmatprep.subr.mxu0 0.0
  %1918 = vmatpush1.msra.mxu0 0.0
  %1919 = vmatprep.subr.mxu0 0.0
  %1920 = vmatpush1.msra.mxu0 0.0
  %1921 = vmatprep.subr.mxu0 0.0
  %1922 = vmatpush1.msra.mxu0 0.0
  %1923 = vmatprep.subr.mxu0 0.0
  %1924 = vmatpush1.msra.mxu0 0.0
  %1925 = vmatprep.subr.mxu0 0.0
  %1926 = vmatpush1.msra.mxu0 0.0
  %1927 = vmatprep.mubr.f32.mxu0 0.0
  %1928 = vmatmul.mubr.f32.gmra.mrb[0].mxu0 %v1707
  %v1929 = vpop.f32.mrb[0].mxu0
  %v1930 = vadd.f32 0.0, %v1929
  %v1931 = vpop.f32.mrb[0].mxu0
  %1932 = vdwg.mxu0
  %v1933 = vadd.f32 %v364, %v1930
  %v1934 = vtanh.pop %v1933
  %1935 = vmatprep.subr.mxu0 0.0
  %1936 = vmatpush1.msra.mxu0 %v61
  %1937 = vmatprep.subr.mxu0 0.0
  %1938 = vmatpush1.msra.mxu0 %v62
  %1939 = vmatprep.subr.mxu0 0.0
  %1940 = vmatpush1.msra.mxu0 %v63
  %1941 = vmatprep.subr.mxu0 0.0
  %1942 = vmatpush1.msra.mxu0 %v64
  %1943 = vmatprep.subr.mxu0 0.0
  %1944 = vmatpush1.msra.mxu0 0.0
  %1945 = vmatprep.subr.mxu0 0.0
  %1946 = vmatpush1.msra.mxu0 0.0
  %1947 = vmatprep.subr.mxu0 0.0
  %1948 = vmatpush1.msra.mxu0 0.0
  %1949 = vmatprep.subr.mxu0 0.0
  %1950 = vmatpush1.msra.mxu0 0.0
  %1951 = vmatprep.subr.mxu0 0.0
  %1952 = vmatpush1.msra.mxu0 0.0
  %1953 = vmatprep.subr.mxu0 0.0
  %1954 = vmatpush1.msra.mxu0 0.0
  %1955 = vmatprep.subr.mxu0 0.0
  %1956 = vmatpush1.msra.mxu0 0.0
  %1957 = vmatprep.subr.mxu0 0.0
  %1958 = vmatpush1.msra.mxu0 0.0
  %1959 = vmatprep.subr.mxu0 0.0
  %1960 = vmatpush1.msra.mxu0 0.0
  %1961 = vmatprep.subr.mxu0 0.0
  %1962 = vmatpush1.msra.mxu0 0.0
  %1963 = vmatprep.subr.mxu0 0.0
  %1964 = vmatpush1.msra.mxu0 0.0
  %1965 = vmatprep.subr.mxu0 0.0
  %1966 = vmatpush1.msra.mxu0 0.0
  %1967 = vmatprep.subr.mxu0 0.0
  %1968 = vmatpush1.msra.mxu0 0.0
  %1969 = vmatprep.subr.mxu0 0.0
  %1970 = vmatpush1.msra.mxu0 0.0
  %1971 = vmatprep.subr.mxu0 0.0
  %1972 = vmatpush1.msra.mxu0 0.0
  %1973 = vmatprep.subr.mxu0 0.0
  %1974 = vmatpush1.msra.mxu0 0.0
  %1975 = vmatprep.subr.mxu0 0.0
  %1976 = vmatpush1.msra.mxu0 0.0
  %1977 = vmatprep.subr.mxu0 0.0
  %1978 = vmatpush1.msra.mxu0 0.0
  %1979 = vmatprep.subr.mxu0 0.0
  %1980 = vmatpush1.msra.mxu0 0.0
  %1981 = vmatprep.subr.mxu0 0.0
  %1982 = vmatpush1.msra.mxu0 0.0
  %1983 = vmatprep.subr.mxu0 0.0
  %1984 = vmatpush1.msra.mxu0 0.0
  %1985 = vmatprep.subr.mxu0 0.0
  %1986 = vmatpush1.msra.mxu0 0.0
  %1987 = vmatprep.subr.mxu0 0.0
  %1988 = vmatpush1.msra.mxu0 0.0
  %1989 = vmatprep.subr.mxu0 0.0
  %1990 = vmatpush1.msra.mxu0 0.0
  %1991 = vmatprep.subr.mxu0 0.0
  %1992 = vmatpush1.msra.mxu0 0.0
  %1993 = vmatprep.subr.mxu0 0.0
  %1994 = vmatpush1.msra.mxu0 0.0
  %1995 = vmatprep.subr.mxu0 0.0
  %1996 = vmatpush1.msra.mxu0 0.0
  %1997 = vmatprep.subr.mxu0 0.0
  %1998 = vmatpush1.msra.mxu0 0.0
  %1999 = vmatprep.mubr.f32.mxu0 0.0
  %2000 = vmatmul.mubr.f32.gmra.mrb[0].mxu0 %v1707
  %v2001 = vpop.f32.mrb[0].mxu0
  %v2002 = vadd.f32 0.0, %v2001
  %v2003 = vpop.f32.mrb[0].mxu0
  %2004 = vdwg.mxu0
  %v2005 = vadd.f32 %v458, %v2002
  %v2006 = vxor.u32 %v2005, 2147483648
  %v2007 = vmul.f32 %v2006, 1.442695
  %v2008 = vpow.pop %v2007
  %v2009 = vadd.f32 %v2008, 1.0
  %v2010 = vrcp.pop %v2009
  %v2011 = vmul.f32 1.0, %v2010
  %v2012 = vmul.f32 %v1862, %v1703
  %v2013 = vmul.f32 %v1785, %v1934
  %v2014 = vadd.f32 %v2012, %v2013
  %v2015 = vtanh.pop %v2014
  %v2016 = vmul.f32 %v2011, %v2015
  %v2017 = vld [vmem:[%s4] sm:$0xff]
  %v2018 = vld [vmem:[%s4 + $0x8] sm:$0xff]
  %v2019 = vld [vmem:[%s4 + $0x10] sm:$0xff]
  %v2020 = vld [vmem:[%s4 + $0x18] sm:$0xff]
  %v2021 = vld [vmem:[%s4 + $0x20] sm:$0xff]
  %v2022 = vld [vmem:[%s4 + $0x28] sm:$0xff]
  %v2023 = vld [vmem:[%s4 + $0x30] sm:$0xff]
  %v2024 = vld [vmem:[%s4 + $0x38] sm:$0xff]
  %v2025 = vld [vmem:[%s4 + $0x40] sm:$0xff]
  %v2026 = vld [vmem:[%s4 + $0x48] sm:$0xff]
  %v2027 = vld [vmem:[%s4 + $0x50] sm:$0xff]
  %v2028 = vld [vmem:[%s4 + $0x58] sm:$0xff]
  %v2029 = vld [vmem:[%s4 + $0x60] sm:$0xff]
  %v2030 = vld [vmem:[%s4 + $0x68] sm:$0xff]
  %v2031 = vld [vmem:[%s4 + $0x70] sm:$0xff]
  %v2032 = vld [vmem:[%s4 + $0x78] sm:$0xff]
  %v2033 = vld [vmem:[%s5] sm:$0xff]
  %v2034 = vld [vmem:[%s5 + $0x8] sm:$0xff]
  %v2035 = vld [vmem:[%s5 + $0x10] sm:$0xff]
  %v2036 = vld [vmem:[%s5 + $0x18] sm:$0xff]
  %v2037 = vld [vmem:[%s5 + $0x20] sm:$0xff]
  %v2038 = vld [vmem:[%s5 + $0x28] sm:$0xff]
  %v2039 = vld [vmem:[%s5 + $0x30] sm:$0xff]
  %v2040 = vld [vmem:[%s5 + $0x38] sm:$0xff]
  %v2041 = vld [vmem:[%s5 + $0x40] sm:$0xff]
  %v2042 = vld [vmem:[%s5 + $0x48] sm:$0xff]
  %v2043 = vld [vmem:[%s5 + $0x50] sm:$0xff]
  %v2044 = vld [vmem:[%s5 + $0x58] sm:$0xff]
  %v2045 = vld [vmem:[%s5 + $0x60] sm:$0xff]
  %v2046 = vld [vmem:[%s5 + $0x68] sm:$0xff]
  %v2047 = vld [vmem:[%s5 + $0x70] sm:$0xff]
  %v2048 = vld [vmem:[%s5 + $0x78] sm:$0xff]
  %v2049 = vld [vmem:[%s6 + $0x4] sm:$0x1]
  %v2050 = vld [vmem:[%s6 + $0x5] sm:$0x1]
  %v2051 = vld [vmem:[%s6 + $0x6] sm:$0x1]
  %v2052 = vld [vmem:[%s6 + $0x7] sm:$0x1]
  %v2053 = vlaneseq
  %v2054 = vshrl.u32 %v2053, 7
  %v2055 = vsub.s32 0, %v2054
  %v2056 = vrot.slane %v2049, %v2055
  %v2058 = vsel %vm461, %v2016, 0
  %2060 = vmatprep.subr.mxu0 0.0
  %2061 = vmatpush1.msra.mxu0 %v2017
  %2062 = vmatprep.subr.mxu0 0.0
  %2063 = vmatpush1.msra.mxu0 %v2018
  %2064 = vmatprep.subr.mxu0 0.0
  %2065 = vmatpush1.msra.mxu0 %v2019
  %2066 = vmatprep.subr.mxu0 0.0
  %2067 = vmatpush1.msra.mxu0 %v2020
  %2068 = vmatprep.subr.mxu0 0.0
  %2069 = vmatpush1.msra.mxu0 0.0
  %2070 = vmatprep.subr.mxu0 0.0
  %2071 = vmatpush1.msra.mxu0 0.0
  %2072 = vmatprep.subr.mxu0 0.0
  %2073 = vmatpush1.msra.mxu0 0.0
  %2074 = vmatprep.subr.mxu0 0.0
  %2075 = vmatpush1.msra.mxu0 0.0
  %2076 = vmatprep.subr.mxu0 0.0
  %2077 = vmatpush1.msra.mxu0 0.0
  %2078 = vmatprep.subr.mxu0 0.0
  %2079 = vmatpush1.msra.mxu0 0.0
  %2080 = vmatprep.subr.mxu0 0.0
  %2081 = vmatpush1.msra.mxu0 0.0
  %2082 = vmatprep.subr.mxu0 0.0
  %2083 = vmatpush1.msra.mxu0 0.0
  %2084 = vmatprep.subr.mxu0 0.0
  %2085 = vmatpush1.msra.mxu0 0.0
  %2086 = vmatprep.subr.mxu0 0.0
  %2087 = vmatpush1.msra.mxu0 0.0
  %2088 = vmatprep.subr.mxu0 0.0
  %2089 = vmatpush1.msra.mxu0 0.0
  %2090 = vmatprep.subr.mxu0 0.0
  %2091 = vmatpush1.msra.mxu0 0.0
  %2092 = vmatprep.subr.mxu0 0.0
  %2093 = vmatpush1.msra.mxu0 0.0
  %2094 = vmatprep.subr.mxu0 0.0
  %2095 = vmatpush1.msra.mxu0 0.0
  %2096 = vmatprep.subr.mxu0 0.0
  %2097 = vmatpush1.msra.mxu0 0.0
  %2098 = vmatprep.subr.mxu0 0.0
  %2099 = vmatpush1.msra.mxu0 0.0
  %2100 = vmatprep.subr.mxu0 0.0
  %2101 = vmatpush1.msra.mxu0 0.0
  %2102 = vmatprep.subr.mxu0 0.0
  %2103 = vmatpush1.msra.mxu0 0.0
  %2104 = vmatprep.subr.mxu0 0.0
  %2105 = vmatpush1.msra.mxu0 0.0
  %2106 = vmatprep.subr.mxu0 0.0
  %2107 = vmatpush1.msra.mxu0 0.0
  %2108 = vmatprep.subr.mxu0 0.0
  %2109 = vmatpush1.msra.mxu0 0.0
  %2110 = vmatprep.subr.mxu0 0.0
  %2111 = vmatpush1.msra.mxu0 0.0
  %2112 = vmatprep.subr.mxu0 0.0
  %2113 = vmatpush1.msra.mxu0 0.0
  %2114 = vmatprep.subr.mxu0 0.0
  %2115 = vmatpush1.msra.mxu0 0.0
  %2116 = vmatprep.subr.mxu0 0.0
  %2117 = vmatpush1.msra.mxu0 0.0
  %2118 = vmatprep.subr.mxu0 0.0
  %2119 = vmatpush1.msra.mxu0 0.0
  %2120 = vmatprep.subr.mxu0 0.0
  %2121 = vmatpush1.msra.mxu0 0.0
  %2122 = vmatprep.subr.mxu0 0.0
  %2123 = vmatpush1.msra.mxu0 0.0
  %2124 = vmatprep.mubr.f32.mxu0 0.0
  %2125 = vmatmul.mubr.f32.gmra.mrb[0].mxu0 %v774
  %v2126 = vpop.f32.mrb[0].mxu0
  %v2127 = vadd.f32 %v2056, %v2126
  %v2128 = vpop.f32.mrb[0].mxu0
  %2129 = vmatprep.mubr.f32.mxu0 0.0
  %2130 = vmatmul.mubr.f32.gmra.mrb[0].mxu0 %v1085
  %v2131 = vpop.f32.mrb[0].mxu0
  %v2132 = vadd.f32 %v2056, %v2131
  %v2133 = vpop.f32.mrb[0].mxu0
  %2134 = vmatprep.mubr.f32.mxu0 0.0
  %2135 = vmatmul.mubr.f32.gmra.mrb[0].mxu0 %v1396
  %v2136 = vpop.f32.mrb[0].mxu0
  %v2137 = vadd.f32 %v2056, %v2136
  %v2138 = vpop.f32.mrb[0].mxu0
  %2139 = vmatprep.mubr.f32.mxu0 0.0
  %2140 = vmatmul.mubr.f32.gmra.mrb[0].mxu0 %v1707
  %v2141 = vpop.f32.mrb[0].mxu0
  %v2142 = vadd.f32 %v2056, %v2141
  %v2143 = vpop.f32.mrb[0].mxu0
  %2144 = vmatprep.mubr.f32.mxu0 0.0
  %2145 = vmatmul.mubr.f32.gmra.mrb[0].mxu0 %v2058
  %v2146 = vpop.f32.mrb[0].mxu0
  %v2147 = vadd.f32 %v2056, %v2146
  %v2148 = vpop.f32.mrb[0].mxu0
  %2149 = vdwg.mxu0
  %v2150 = vlaneseq
  %v2151 = vshrl.u32 %v2150, 7
  %v2152 = vsub.s32 0, %v2151
  %v2153 = vrot.slane %v2050, %v2152
  %2154 = vmatprep.subr.mxu0 0.0
  %2155 = vmatpush1.msra.mxu0 %v2021
  %2156 = vmatprep.subr.mxu0 0.0
  %2157 = vmatpush1.msra.mxu0 %v2022
  %2158 = vmatprep.subr.mxu0 0.0
  %2159 = vmatpush1.msra.mxu0 %v2023
  %2160 = vmatprep.subr.mxu0 0.0
  %2161 = vmatpush1.msra.mxu0 %v2024
  %2162 = vmatprep.subr.mxu0 0.0
  %2163 = vmatpush1.msra.mxu0 0.0
  %2164 = vmatprep.subr.mxu0 0.0
  %2165 = vmatpush1.msra.mxu0 0.0
  %2166 = vmatprep.subr.mxu0 0.0
  %2167 = vmatpush1.msra.mxu0 0.0
  %2168 = vmatprep.subr.mxu0 0.0
  %2169 = vmatpush1.msra.mxu0 0.0
  %2170 = vmatprep.subr.mxu0 0.0
  %2171 = vmatpush1.msra.mxu0 0.0
  %2172 = vmatprep.subr.mxu0 0.0
  %2173 = vmatpush1.msra.mxu0 0.0
  %2174 = vmatprep.subr.mxu0 0.0
  %2175 = vmatpush1.msra.mxu0 0.0
  %2176 = vmatprep.subr.mxu0 0.0
  %2177 = vmatpush1.msra.mxu0 0.0
  %2178 = vmatprep.subr.mxu0 0.0
  %2179 = vmatpush1.msra.mxu0 0.0
  %2180 = vmatprep.subr.mxu0 0.0
  %2181 = vmatpush1.msra.mxu0 0.0
  %2182 = vmatprep.subr.mxu0 0.0
  %2183 = vmatpush1.msra.mxu0 0.0
  %2184 = vmatprep.subr.mxu0 0.0
  %2185 = vmatpush1.msra.mxu0 0.0
  %2186 = vmatprep.subr.mxu0 0.0
  %2187 = vmatpush1.msra.mxu0 0.0
  %2188 = vmatprep.subr.mxu0 0.0
  %2189 = vmatpush1.msra.mxu0 0.0
  %2190 = vmatprep.subr.mxu0 0.0
  %2191 = vmatpush1.msra.mxu0 0.0
  %2192 = vmatprep.subr.mxu0 0.0
  %2193 = vmatpush1.msra.mxu0 0.0
  %2194 = vmatprep.subr.mxu0 0.0
  %2195 = vmatpush1.msra.mxu0 0.0
  %2196 = vmatprep.subr.mxu0 0.0
  %2197 = vmatpush1.msra.mxu0 0.0
  %2198 = vmatprep.subr.mxu0 0.0
  %2199 = vmatpush1.msra.mxu0 0.0
  %2200 = vmatprep.subr.mxu0 0.0
  %2201 = vmatpush1.msra.mxu0 0.0
  %2202 = vmatprep.subr.mxu0 0.0
  %2203 = vmatpush1.msra.mxu0 0.0
  %2204 = vmatprep.subr.mxu0 0.0
  %2205 = vmatpush1.msra.mxu0 0.0
  %2206 = vmatprep.subr.mxu0 0.0
  %2207 = vmatpush1.msra.mxu0 0.0
  %2208 = vmatprep.subr.mxu0 0.0
  %2209 = vmatpush1.msra.mxu0 0.0
  %2210 = vmatprep.subr.mxu0 0.0
  %2211 = vmatpush1.msra.mxu0 0.0
  %2212 = vmatprep.subr.mxu0 0.0
  %2213 = vmatpush1.msra.mxu0 0.0
  %2214 = vmatprep.subr.mxu0 0.0
  %2215 = vmatpush1.msra.mxu0 0.0
  %2216 = vmatprep.subr.mxu0 0.0
  %2217 = vmatpush1.msra.mxu0 0.0
  %2218 = vmatprep.mubr.f32.mxu0 0.0
  %2219 = vmatmul.mubr.f32.gmra.mrb[0].mxu0 %v774
  %v2220 = vpop.f32.mrb[0].mxu0
  %v2221 = vadd.f32 %v2153, %v2220
  %v2222 = vpop.f32.mrb[0].mxu0
  %2223 = vmatprep.mubr.f32.mxu0 0.0
  %2224 = vmatmul.mubr.f32.gmra.mrb[0].mxu0 %v1085
  %v2225 = vpop.f32.mrb[0].mxu0
  %v2226 = vadd.f32 %v2153, %v2225
  %v2227 = vpop.f32.mrb[0].mxu0
  %2228 = vmatprep.mubr.f32.mxu0 0.0
  %2229 = vmatmul.mubr.f32.gmra.mrb[0].mxu0 %v1396
  %v2230 = vpop.f32.mrb[0].mxu0
  %v2231 = vadd.f32 %v2153, %v2230
  %v2232 = vpop.f32.mrb[0].mxu0
  %2233 = vmatprep.mubr.f32.mxu0 0.0
  %2234 = vmatmul.mubr.f32.gmra.mrb[0].mxu0 %v1707
  %v2235 = vpop.f32.mrb[0].mxu0
  %v2236 = vadd.f32 %v2153, %v2235
  %v2237 = vpop.f32.mrb[0].mxu0
  %2238 = vmatprep.mubr.f32.mxu0 0.0
  %2239 = vmatmul.mubr.f32.gmra.mrb[0].mxu0 %v2058
  %v2240 = vpop.f32.mrb[0].mxu0
  %v2241 = vadd.f32 %v2153, %v2240
  %v2242 = vpop.f32.mrb[0].mxu0
  %2243 = vdwg.mxu0
  %v2244 = vlaneseq
  %v2245 = vshrl.u32 %v2244, 7
  %v2246 = vsub.s32 0, %v2245
  %v2247 = vrot.slane %v2051, %v2246
  %2248 = vmatprep.subr.mxu0 0.0
  %2249 = vmatpush1.msra.mxu0 %v2025
  %2250 = vmatprep.subr.mxu0 0.0
  %2251 = vmatpush1.msra.mxu0 %v2026
  %2252 = vmatprep.subr.mxu0 0.0
  %2253 = vmatpush1.msra.mxu0 %v2027
  %2254 = vmatprep.subr.mxu0 0.0
  %2255 = vmatpush1.msra.mxu0 %v2028
  %2256 = vmatprep.subr.mxu0 0.0
  %2257 = vmatpush1.msra.mxu0 0.0
  %2258 = vmatprep.subr.mxu0 0.0
  %2259 = vmatpush1.msra.mxu0 0.0
  %2260 = vmatprep.subr.mxu0 0.0
  %2261 = vmatpush1.msra.mxu0 0.0
  %2262 = vmatprep.subr.mxu0 0.0
  %2263 = vmatpush1.msra.mxu0 0.0
  %2264 = vmatprep.subr.mxu0 0.0
  %2265 = vmatpush1.msra.mxu0 0.0
  %2266 = vmatprep.subr.mxu0 0.0
  %2267 = vmatpush1.msra.mxu0 0.0
  %2268 = vmatprep.subr.mxu0 0.0
  %2269 = vmatpush1.msra.mxu0 0.0
  %2270 = vmatprep.subr.mxu0 0.0
  %2271 = vmatpush1.msra.mxu0 0.0
  %2272 = vmatprep.subr.mxu0 0.0
  %2273 = vmatpush1.msra.mxu0 0.0
  %2274 = vmatprep.subr.mxu0 0.0
  %2275 = vmatpush1.msra.mxu0 0.0
  %2276 = vmatprep.subr.mxu0 0.0
  %2277 = vmatpush1.msra.mxu0 0.0
  %2278 = vmatprep.subr.mxu0 0.0
  %2279 = vmatpush1.msra.mxu0 0.0
  %2280 = vmatprep.subr.mxu0 0.0
  %2281 = vmatpush1.msra.mxu0 0.0
  %2282 = vmatprep.subr.mxu0 0.0
  %2283 = vmatpush1.msra.mxu0 0.0
  %2284 = vmatprep.subr.mxu0 0.0
  %2285 = vmatpush1.msra.mxu0 0.0
  %2286 = vmatprep.subr.mxu0 0.0
  %2287 = vmatpush1.msra.mxu0 0.0
  %2288 = vmatprep.subr.mxu0 0.0
  %2289 = vmatpush1.msra.mxu0 0.0
  %2290 = vmatprep.subr.mxu0 0.0
  %2291 = vmatpush1.msra.mxu0 0.0
  %2292 = vmatprep.subr.mxu0 0.0
  %2293 = vmatpush1.msra.mxu0 0.0
  %2294 = vmatprep.subr.mxu0 0.0
  %2295 = vmatpush1.msra.mxu0 0.0
  %2296 = vmatprep.subr.mxu0 0.0
  %2297 = vmatpush1.msra.mxu0 0.0
  %2298 = vmatprep.subr.mxu0 0.0
  %2299 = vmatpush1.msra.mxu0 0.0
  %2300 = vmatprep.subr.mxu0 0.0
  %2301 = vmatpush1.msra.mxu0 0.0
  %2302 = vmatprep.subr.mxu0 0.0
  %2303 = vmatpush1.msra.mxu0 0.0
  %2304 = vmatprep.subr.mxu0 0.0
  %2305 = vmatpush1.msra.mxu0 0.0
  %2306 = vmatprep.subr.mxu0 0.0
  %2307 = vmatpush1.msra.mxu0 0.0
  %2308 = vmatprep.subr.mxu0 0.0
  %2309 = vmatpush1.msra.mxu0 0.0
  %2310 = vmatprep.subr.mxu0 0.0
  %2311 = vmatpush1.msra.mxu0 0.0
  %2312 = vmatprep.mubr.f32.mxu0 0.0
  %2313 = vmatmul.mubr.f32.gmra.mrb[0].mxu0 %v774
  %v2314 = vpop.f32.mrb[0].mxu0
  %v2315 = vadd.f32 %v2247, %v2314
  %v2316 = vpop.f32.mrb[0].mxu0
  %2317 = vmatprep.mubr.f32.mxu0 0.0
  %2318 = vmatmul.mubr.f32.gmra.mrb[0].mxu0 %v1085
  %v2319 = vpop.f32.mrb[0].mxu0
  %v2320 = vadd.f32 %v2247, %v2319
  %v2321 = vpop.f32.mrb[0].mxu0
  %2322 = vmatprep.mubr.f32.mxu0 0.0
  %2323 = vmatmul.mubr.f32.gmra.mrb[0].mxu0 %v1396
  %v2324 = vpop.f32.mrb[0].mxu0
  %v2325 = vadd.f32 %v2247, %v2324
  %v2326 = vpop.f32.mrb[0].mxu0
  %2327 = vmatprep.mubr.f32.mxu0 0.0
  %2328 = vmatmul.mubr.f32.gmra.mrb[0].mxu0 %v1707
  %v2329 = vpop.f32.mrb[0].mxu0
  %v2330 = vadd.f32 %v2247, %v2329
  %v2331 = vpop.f32.mrb[0].mxu0
  %2332 = vmatprep.mubr.f32.mxu0 0.0
  %2333 = vmatmul.mubr.f32.gmra.mrb[0].mxu0 %v2058
  %v2334 = vpop.f32.mrb[0].mxu0
  %v2335 = vadd.f32 %v2247, %v2334
  %v2336 = vpop.f32.mrb[0].mxu0
  %2337 = vdwg.mxu0
  %v2338 = vlaneseq
  %v2339 = vshrl.u32 %v2338, 7
  %v2340 = vsub.s32 0, %v2339
  %v2341 = vrot.slane %v2052, %v2340
  %2342 = vmatprep.subr.mxu0 0.0
  %2343 = vmatpush1.msra.mxu0 %v2029
  %2344 = vmatprep.subr.mxu0 0.0
  %2345 = vmatpush1.msra.mxu0 %v2030
  %2346 = vmatprep.subr.mxu0 0.0
  %2347 = vmatpush1.msra.mxu0 %v2031
  %2348 = vmatprep.subr.mxu0 0.0
  %2349 = vmatpush1.msra.mxu0 %v2032
  %2350 = vmatprep.subr.mxu0 0.0
  %2351 = vmatpush1.msra.mxu0 0.0
  %2352 = vmatprep.subr.mxu0 0.0
  %2353 = vmatpush1.msra.mxu0 0.0
  %2354 = vmatprep.subr.mxu0 0.0
  %2355 = vmatpush1.msra.mxu0 0.0
  %2356 = vmatprep.subr.mxu0 0.0
  %2357 = vmatpush1.msra.mxu0 0.0
  %2358 = vmatprep.subr.mxu0 0.0
  %2359 = vmatpush1.msra.mxu0 0.0
  %2360 = vmatprep.subr.mxu0 0.0
  %2361 = vmatpush1.msra.mxu0 0.0
  %2362 = vmatprep.subr.mxu0 0.0
  %2363 = vmatpush1.msra.mxu0 0.0
  %2364 = vmatprep.subr.mxu0 0.0
  %2365 = vmatpush1.msra.mxu0 0.0
  %2366 = vmatprep.subr.mxu0 0.0
  %2367 = vmatpush1.msra.mxu0 0.0
  %2368 = vmatprep.subr.mxu0 0.0
  %2369 = vmatpush1.msra.mxu0 0.0
  %2370 = vmatprep.subr.mxu0 0.0
  %2371 = vmatpush1.msra.mxu0 0.0
  %2372 = vmatprep.subr.mxu0 0.0
  %2373 = vmatpush1.msra.mxu0 0.0
  %2374 = vmatprep.subr.mxu0 0.0
  %2375 = vmatpush1.msra.mxu0 0.0
  %2376 = vmatprep.subr.mxu0 0.0
  %2377 = vmatpush1.msra.mxu0 0.0
  %2378 = vmatprep.subr.mxu0 0.0
  %2379 = vmatpush1.msra.mxu0 0.0
  %2380 = vmatprep.subr.mxu0 0.0
  %2381 = vmatpush1.msra.mxu0 0.0
  %2382 = vmatprep.subr.mxu0 0.0
  %2383 = vmatpush1.msra.mxu0 0.0
  %2384 = vmatprep.subr.mxu0 0.0
  %2385 = vmatpush1.msra.mxu0 0.0
  %2386 = vmatprep.subr.mxu0 0.0
  %2387 = vmatpush1.msra.mxu0 0.0
  %2388 = vmatprep.subr.mxu0 0.0
  %2389 = vmatpush1.msra.mxu0 0.0
  %2390 = vmatprep.subr.mxu0 0.0
  %2391 = vmatpush1.msra.mxu0 0.0
  %2392 = vmatprep.subr.mxu0 0.0
  %2393 = vmatpush1.msra.mxu0 0.0
  %2394 = vmatprep.subr.mxu0 0.0
  %2395 = vmatpush1.msra.mxu0 0.0
  %2396 = vmatprep.subr.mxu0 0.0
  %2397 = vmatpush1.msra.mxu0 0.0
  %2398 = vmatprep.subr.mxu0 0.0
  %2399 = vmatpush1.msra.mxu0 0.0
  %2400 = vmatprep.subr.mxu0 0.0
  %2401 = vmatpush1.msra.mxu0 0.0
  %2402 = vmatprep.subr.mxu0 0.0
  %2403 = vmatpush1.msra.mxu0 0.0
  %2404 = vmatprep.subr.mxu0 0.0
  %2405 = vmatpush1.msra.mxu0 0.0
  %2406 = vmatprep.mubr.f32.mxu0 0.0
  %2407 = vmatmul.mubr.f32.gmra.mrb[0].mxu0 %v774
  %v2408 = vpop.f32.mrb[0].mxu0
  %v2409 = vadd.f32 %v2341, %v2408
  %v2410 = vpop.f32.mrb[0].mxu0
  %2411 = vmatprep.mubr.f32.mxu0 0.0
  %2412 = vmatmul.mubr.f32.gmra.mrb[0].mxu0 %v1085
  %v2413 = vpop.f32.mrb[0].mxu0
  %v2414 = vadd.f32 %v2341, %v2413
  %v2415 = vpop.f32.mrb[0].mxu0
  %2416 = vmatprep.mubr.f32.mxu0 0.0
  %2417 = vmatmul.mubr.f32.gmra.mrb[0].mxu0 %v1396
  %v2418 = vpop.f32.mrb[0].mxu0
  %v2419 = vadd.f32 %v2341, %v2418
  %v2420 = vpop.f32.mrb[0].mxu0
  %2421 = vmatprep.mubr.f32.mxu0 0.0
  %2422 = vmatmul.mubr.f32.gmra.mrb[0].mxu0 %v1707
  %v2423 = vpop.f32.mrb[0].mxu0
  %v2424 = vadd.f32 %v2341, %v2423
  %v2425 = vpop.f32.mrb[0].mxu0
  %2426 = vmatprep.mubr.f32.mxu0 0.0
  %2427 = vmatmul.mubr.f32.gmra.mrb[0].mxu0 %v2058
  %v2428 = vpop.f32.mrb[0].mxu0
  %v2429 = vadd.f32 %v2341, %v2428
  %v2430 = vpop.f32.mrb[0].mxu0
  %2431 = vdwg.mxu0
  %2432 = vmatprep.subr.mxu0 0.0
  %2433 = vmatpush1.msra.mxu0 %v2033
  %2434 = vmatprep.subr.mxu0 0.0
  %2435 = vmatpush1.msra.mxu0 %v2034
  %2436 = vmatprep.subr.mxu0 0.0
  %2437 = vmatpush1.msra.mxu0 %v2035
  %2438 = vmatprep.subr.mxu0 0.0
  %2439 = vmatpush1.msra.mxu0 %v2036
  %2440 = vmatprep.subr.mxu0 0.0
  %2441 = vmatpush1.msra.mxu0 0.0
  %2442 = vmatprep.subr.mxu0 0.0
  %2443 = vmatpush1.msra.mxu0 0.0
  %2444 = vmatprep.subr.mxu0 0.0
  %2445 = vmatpush1.msra.mxu0 0.0
  %2446 = vmatprep.subr.mxu0 0.0
  %2447 = vmatpush1.msra.mxu0 0.0
  %2448 = vmatprep.subr.mxu0 0.0
  %2449 = vmatpush1.msra.mxu0 0.0
  %2450 = vmatprep.subr.mxu0 0.0
  %2451 = vmatpush1.msra.mxu0 0.0
  %2452 = vmatprep.subr.mxu0 0.0
  %2453 = vmatpush1.msra.mxu0 0.0
  %2454 = vmatprep.subr.mxu0 0.0
  %2455 = vmatpush1.msra.mxu0 0.0
  %2456 = vmatprep.subr.mxu0 0.0
  %2457 = vmatpush1.msra.mxu0 0.0
  %2458 = vmatprep.subr.mxu0 0.0
  %2459 = vmatpush1.msra.mxu0 0.0
  %2460 = vmatprep.subr.mxu0 0.0
  %2461 = vmatpush1.msra.mxu0 0.0
  %2462 = vmatprep.subr.mxu0 0.0
  %2463 = vmatpush1.msra.mxu0 0.0
  %2464 = vmatprep.subr.mxu0 0.0
  %2465 = vmatpush1.msra.mxu0 0.0
  %2466 = vmatprep.subr.mxu0 0.0
  %2467 = vmatpush1.msra.mxu0 0.0
  %2468 = vmatprep.subr.mxu0 0.0
  %2469 = vmatpush1.msra.mxu0 0.0
  %2470 = vmatprep.subr.mxu0 0.0
  %2471 = vmatpush1.msra.mxu0 0.0
  %2472 = vmatprep.subr.mxu0 0.0
  %2473 = vmatpush1.msra.mxu0 0.0
  %2474 = vmatprep.subr.mxu0 0.0
  %2475 = vmatpush1.msra.mxu0 0.0
  %2476 = vmatprep.subr.mxu0 0.0
  %2477 = vmatpush1.msra.mxu0 0.0
  %2478 = vmatprep.subr.mxu0 0.0
  %2479 = vmatpush1.msra.mxu0 0.0
  %2480 = vmatprep.subr.mxu0 0.0
  %2481 = vmatpush1.msra.mxu0 0.0
  %2482 = vmatprep.subr.mxu0 0.0
  %2483 = vmatpush1.msra.mxu0 0.0
  %2484 = vmatprep.subr.mxu0 0.0
  %2485 = vmatpush1.msra.mxu0 0.0
  %2486 = vmatprep.subr.mxu0 0.0
  %2487 = vmatpush1.msra.mxu0 0.0
  %2488 = vmatprep.subr.mxu0 0.0
  %2489 = vmatpush1.msra.mxu0 0.0
  %2490 = vmatprep.subr.mxu0 0.0
  %2491 = vmatpush1.msra.mxu0 0.0
  %2492 = vmatprep.subr.mxu0 0.0
  %2493 = vmatpush1.msra.mxu0 0.0
  %2494 = vmatprep.subr.mxu0 0.0
  %2495 = vmatpush1.msra.mxu0 0.0
  %2496 = vmatprep.mubr.f32.mxu0 0.0
  %2497 = vmatmul.mubr.f32.gmra.mrb[0].mxu0 %v463
  %v2498 = vpop.f32.mrb[0].mxu0
  %v2499 = vadd.f32 0.0, %v2498
  %v2500 = vpop.f32.mrb[0].mxu0
  %2501 = vdwg.mxu0
  %v2502 = vadd.f32 %v2127, %v2499
  %v2503 = vxor.u32 %v2502, 2147483648
  %v2504 = vmul.f32 %v2503, 1.442695
  %v2505 = vpow.pop %v2504
  %v2506 = vadd.f32 %v2505, 1.0
  %v2507 = vrcp.pop %v2506
  %v2508 = vmul.f32 1.0, %v2507
  %2509 = vmatprep.subr.mxu0 0.0
  %2510 = vmatpush1.msra.mxu0 %v2037
  %2511 = vmatprep.subr.mxu0 0.0
  %2512 = vmatpush1.msra.mxu0 %v2038
  %2513 = vmatprep.subr.mxu0 0.0
  %2514 = vmatpush1.msra.mxu0 %v2039
  %2515 = vmatprep.subr.mxu0 0.0
  %2516 = vmatpush1.msra.mxu0 %v2040
  %2517 = vmatprep.subr.mxu0 0.0
  %2518 = vmatpush1.msra.mxu0 0.0
  %2519 = vmatprep.subr.mxu0 0.0
  %2520 = vmatpush1.msra.mxu0 0.0
  %2521 = vmatprep.subr.mxu0 0.0
  %2522 = vmatpush1.msra.mxu0 0.0
  %2523 = vmatprep.subr.mxu0 0.0
  %2524 = vmatpush1.msra.mxu0 0.0
  %2525 = vmatprep.subr.mxu0 0.0
  %2526 = vmatpush1.msra.mxu0 0.0
  %2527 = vmatprep.subr.mxu0 0.0
  %2528 = vmatpush1.msra.mxu0 0.0
  %2529 = vmatprep.subr.mxu0 0.0
  %2530 = vmatpush1.msra.mxu0 0.0
  %2531 = vmatprep.subr.mxu0 0.0
  %2532 = vmatpush1.msra.mxu0 0.0
  %2533 = vmatprep.subr.mxu0 0.0
  %2534 = vmatpush1.msra.mxu0 0.0
  %2535 = vmatprep.subr.mxu0 0.0
  %2536 = vmatpush1.msra.mxu0 0.0
  %2537 = vmatprep.subr.mxu0 0.0
  %2538 = vmatpush1.msra.mxu0 0.0
  %2539 = vmatprep.subr.mxu0 0.0
  %2540 = vmatpush1.msra.mxu0 0.0
  %2541 = vmatprep.subr.mxu0 0.0
  %2542 = vmatpush1.msra.mxu0 0.0
  %2543 = vmatprep.subr.mxu0 0.0
  %2544 = vmatpush1.msra.mxu0 0.0
  %2545 = vmatprep.subr.mxu0 0.0
  %2546 = vmatpush1.msra.mxu0 0.0
  %2547 = vmatprep.subr.mxu0 0.0
  %2548 = vmatpush1.msra.mxu0 0.0
  %2549 = vmatprep.subr.mxu0 0.0
  %2550 = vmatpush1.msra.mxu0 0.0
  %2551 = vmatprep.subr.mxu0 0.0
  %2552 = vmatpush1.msra.mxu0 0.0
  %2553 = vmatprep.subr.mxu0 0.0
  %2554 = vmatpush1.msra.mxu0 0.0
  %2555 = vmatprep.subr.mxu0 0.0
  %2556 = vmatpush1.msra.mxu0 0.0
  %2557 = vmatprep.subr.mxu0 0.0
  %2558 = vmatpush1.msra.mxu0 0.0
  %2559 = vmatprep.subr.mxu0 0.0
  %2560 = vmatpush1.msra.mxu0 0.0
  %2561 = vmatprep.subr.mxu0 0.0
  %2562 = vmatpush1.msra.mxu0 0.0
  %2563 = vmatprep.subr.mxu0 0.0
  %2564 = vmatpush1.msra.mxu0 0.0
  %2565 = vmatprep.subr.mxu0 0.0
  %2566 = vmatpush1.msra.mxu0 0.0
  %2567 = vmatprep.subr.mxu0 0.0
  %2568 = vmatpush1.msra.mxu0 0.0
  %2569 = vmatprep.subr.mxu0 0.0
  %2570 = vmatpush1.msra.mxu0 0.0
  %2571 = vmatprep.subr.mxu0 0.0
  %2572 = vmatpush1.msra.mxu0 0.0
  %2573 = vmatprep.mubr.f32.mxu0 0.0
  %2574 = vmatmul.mubr.f32.gmra.mrb[0].mxu0 %v463
  %v2575 = vpop.f32.mrb[0].mxu0
  %v2576 = vadd.f32 0.0, %v2575
  %v2577 = vpop.f32.mrb[0].mxu0
  %2578 = vdwg.mxu0
  %v2579 = vadd.f32 %v2221, %v2576
  %v2580 = vxor.u32 %v2579, 2147483648
  %v2581 = vmul.f32 %v2580, 1.442695
  %v2582 = vpow.pop %v2581
  %v2583 = vadd.f32 %v2582, 1.0
  %v2584 = vrcp.pop %v2583
  %v2585 = vmul.f32 1.0, %v2584
  %2586 = vmatprep.subr.mxu0 0.0
  %2587 = vmatpush1.msra.mxu0 %v2041
  %2588 = vmatprep.subr.mxu0 0.0
  %2589 = vmatpush1.msra.mxu0 %v2042
  %2590 = vmatprep.subr.mxu0 0.0
  %2591 = vmatpush1.msra.mxu0 %v2043
  %2592 = vmatprep.subr.mxu0 0.0
  %2593 = vmatpush1.msra.mxu0 %v2044
  %2594 = vmatprep.subr.mxu0 0.0
  %2595 = vmatpush1.msra.mxu0 0.0
  %2596 = vmatprep.subr.mxu0 0.0
  %2597 = vmatpush1.msra.mxu0 0.0
  %2598 = vmatprep.subr.mxu0 0.0
  %2599 = vmatpush1.msra.mxu0 0.0
  %2600 = vmatprep.subr.mxu0 0.0
  %2601 = vmatpush1.msra.mxu0 0.0
  %2602 = vmatprep.subr.mxu0 0.0
  %2603 = vmatpush1.msra.mxu0 0.0
  %2604 = vmatprep.subr.mxu0 0.0
  %2605 = vmatpush1.msra.mxu0 0.0
  %2606 = vmatprep.subr.mxu0 0.0
  %2607 = vmatpush1.msra.mxu0 0.0
  %2608 = vmatprep.subr.mxu0 0.0
  %2609 = vmatpush1.msra.mxu0 0.0
  %2610 = vmatprep.subr.mxu0 0.0
  %2611 = vmatpush1.msra.mxu0 0.0
  %2612 = vmatprep.subr.mxu0 0.0
  %2613 = vmatpush1.msra.mxu0 0.0
  %2614 = vmatprep.subr.mxu0 0.0
  %2615 = vmatpush1.msra.mxu0 0.0
  %2616 = vmatprep.subr.mxu0 0.0
  %2617 = vmatpush1.msra.mxu0 0.0
  %2618 = vmatprep.subr.mxu0 0.0
  %2619 = vmatpush1.msra.mxu0 0.0
  %2620 = vmatprep.subr.mxu0 0.0
  %2621 = vmatpush1.msra.mxu0 0.0
  %2622 = vmatprep.subr.mxu0 0.0
  %2623 = vmatpush1.msra.mxu0 0.0
  %2624 = vmatprep.subr.mxu0 0.0
  %2625 = vmatpush1.msra.mxu0 0.0
  %2626 = vmatprep.subr.mxu0 0.0
  %2627 = vmatpush1.msra.mxu0 0.0
  %2628 = vmatprep.subr.mxu0 0.0
  %2629 = vmatpush1.msra.mxu0 0.0
  %2630 = vmatprep.subr.mxu0 0.0
  %2631 = vmatpush1.msra.mxu0 0.0
  %2632 = vmatprep.subr.mxu0 0.0
  %2633 = vmatpush1.msra.mxu0 0.0
  %2634 = vmatprep.subr.mxu0 0.0
  %2635 = vmatpush1.msra.mxu0 0.0
  %2636 = vmatprep.subr.mxu0 0.0
  %2637 = vmatpush1.msra.mxu0 0.0
  %2638 = vmatprep.subr.mxu0 0.0
  %2639 = vmatpush1.msra.mxu0 0.0
  %2640 = vmatprep.subr.mxu0 0.0
  %2641 = vmatpush1.msra.mxu0 0.0
  %2642 = vmatprep.subr.mxu0 0.0
  %2643 = vmatpush1.msra.mxu0 0.0
  %2644 = vmatprep.subr.mxu0 0.0
  %2645 = vmatpush1.msra.mxu0 0.0
  %2646 = vmatprep.subr.mxu0 0.0
  %2647 = vmatpush1.msra.mxu0 0.0
  %2648 = vmatprep.subr.mxu0 0.0
  %2649 = vmatpush1.msra.mxu0 0.0
  %2650 = vmatprep.mubr.f32.mxu0 0.0
  %2651 = vmatmul.mubr.f32.gmra.mrb[0].mxu0 %v463
  %v2652 = vpop.f32.mrb[0].mxu0
  %v2653 = vadd.f32 0.0, %v2652
  %v2654 = vpop.f32.mrb[0].mxu0
  %2655 = vdwg.mxu0
  %v2656 = vadd.f32 %v2315, %v2653
  %v2657 = vtanh.pop %v2656
  %2658 = vmatprep.subr.mxu0 0.0
  %2659 = vmatpush1.msra.mxu0 %v2045
  %2660 = vmatprep.subr.mxu0 0.0
  %2661 = vmatpush1.msra.mxu0 %v2046
  %2662 = vmatprep.subr.mxu0 0.0
  %2663 = vmatpush1.msra.mxu0 %v2047
  %2664 = vmatprep.subr.mxu0 0.0
  %2665 = vmatpush1.msra.mxu0 %v2048
  %2666 = vmatprep.subr.mxu0 0.0
  %2667 = vmatpush1.msra.mxu0 0.0
  %2668 = vmatprep.subr.mxu0 0.0
  %2669 = vmatpush1.msra.mxu0 0.0
  %2670 = vmatprep.subr.mxu0 0.0
  %2671 = vmatpush1.msra.mxu0 0.0
  %2672 = vmatprep.subr.mxu0 0.0
  %2673 = vmatpush1.msra.mxu0 0.0
  %2674 = vmatprep.subr.mxu0 0.0
  %2675 = vmatpush1.msra.mxu0 0.0
  %2676 = vmatprep.subr.mxu0 0.0
  %2677 = vmatpush1.msra.mxu0 0.0
  %2678 = vmatprep.subr.mxu0 0.0
  %2679 = vmatpush1.msra.mxu0 0.0
  %2680 = vmatprep.subr.mxu0 0.0
  %2681 = vmatpush1.msra.mxu0 0.0
  %2682 = vmatprep.subr.mxu0 0.0
  %2683 = vmatpush1.msra.mxu0 0.0
  %2684 = vmatprep.subr.mxu0 0.0
  %2685 = vmatpush1.msra.mxu0 0.0
  %2686 = vmatprep.subr.mxu0 0.0
  %2687 = vmatpush1.msra.mxu0 0.0
  %2688 = vmatprep.subr.mxu0 0.0
  %2689 = vmatpush1.msra.mxu0 0.0
  %2690 = vmatprep.subr.mxu0 0.0
  %2691 = vmatpush1.msra.mxu0 0.0
  %2692 = vmatprep.subr.mxu0 0.0
  %2693 = vmatpush1.msra.mxu0 0.0
  %2694 = vmatprep.subr.mxu0 0.0
  %2695 = vmatpush1.msra.mxu0 0.0
  %2696 = vmatprep.subr.mxu0 0.0
  %2697 = vmatpush1.msra.mxu0 0.0
  %2698 = vmatprep.subr.mxu0 0.0
  %2699 = vmatpush1.msra.mxu0 0.0
  %2700 = vmatprep.subr.mxu0 0.0
  %2701 = vmatpush1.msra.mxu0 0.0
  %2702 = vmatprep.subr.mxu0 0.0
  %2703 = vmatpush1.msra.mxu0 0.0
  %2704 = vmatprep.subr.mxu0 0.0
  %2705 = vmatpush1.msra.mxu0 0.0
  %2706 = vmatprep.subr.mxu0 0.0
  %2707 = vmatpush1.msra.mxu0 0.0
  %2708 = vmatprep.subr.mxu0 0.0
  %2709 = vmatpush1.msra.mxu0 0.0
  %2710 = vmatprep.subr.mxu0 0.0
  %2711 = vmatpush1.msra.mxu0 0.0
  %2712 = vmatprep.subr.mxu0 0.0
  %2713 = vmatpush1.msra.mxu0 0.0
  %2714 = vmatprep.subr.mxu0 0.0
  %2715 = vmatpush1.msra.mxu0 0.0
  %2716 = vmatprep.subr.mxu0 0.0
  %2717 = vmatpush1.msra.mxu0 0.0
  %2718 = vmatprep.subr.mxu0 0.0
  %2719 = vmatpush1.msra.mxu0 0.0
  %2720 = vmatprep.subr.mxu0 0.0
  %2721 = vmatpush1.msra.mxu0 0.0
  %2722 = vmatprep.mubr.f32.mxu0 0.0
  %2723 = vmatmul.mubr.f32.gmra.mrb[0].mxu0 %v463
  %v2724 = vpop.f32.mrb[0].mxu0
  %v2725 = vadd.f32 0.0, %v2724
  %v2726 = vpop.f32.mrb[0].mxu0
  %2727 = vdwg.mxu0
  %v2728 = vadd.f32 %v2409, %v2725
  %v2729 = vxor.u32 %v2728, 2147483648
  %v2730 = vmul.f32 %v2729, 1.442695
  %v2731 = vpow.pop %v2730
  %v2732 = vadd.f32 %v2731, 1.0
  %v2733 = vrcp.pop %v2732
  %v2734 = vmul.f32 1.0, %v2733
  %v2735 = vmul.f32 %v2585, 0.0
  %v2736 = vmul.f32 %v2508, %v2657
  %v2737 = vadd.f32 %v2735, %v2736
  %v2738 = vtanh.pop %v2737
  %v2739 = vmul.f32 %v2734, %v2738
  %v2741 = vsel %vm461, %v2739, 0
  %2743 = vmatprep.subr.mxu0 0.0
  %2744 = vmatpush1.msra.mxu0 %v2033
  %2745 = vmatprep.subr.mxu0 0.0
  %2746 = vmatpush1.msra.mxu0 %v2034
  %2747 = vmatprep.subr.mxu0 0.0
  %2748 = vmatpush1.msra.mxu0 %v2035
  %2749 = vmatprep.subr.mxu0 0.0
  %2750 = vmatpush1.msra.mxu0 %v2036
  %2751 = vmatprep.subr.mxu0 0.0
  %2752 = vmatpush1.msra.mxu0 0.0
  %2753 = vmatprep.subr.mxu0 0.0
  %2754 = vmatpush1.msra.mxu0 0.0
  %2755 = vmatprep.subr.mxu0 0.0
  %2756 = vmatpush1.msra.mxu0 0.0
  %2757 = vmatprep.subr.mxu0 0.0
  %2758 = vmatpush1.msra.mxu0 0.0
  %2759 = vmatprep.subr.mxu0 0.0
  %2760 = vmatpush1.msra.mxu0 0.0
  %2761 = vmatprep.subr.mxu0 0.0
  %2762 = vmatpush1.msra.mxu0 0.0
  %2763 = vmatprep.subr.mxu0 0.0
  %2764 = vmatpush1.msra.mxu0 0.0
  %2765 = vmatprep.subr.mxu0 0.0
  %2766 = vmatpush1.msra.mxu0 0.0
  %2767 = vmatprep.subr.mxu0 0.0
  %2768 = vmatpush1.msra.mxu0 0.0
  %2769 = vmatprep.subr.mxu0 0.0
  %2770 = vmatpush1.msra.mxu0 0.0
  %2771 = vmatprep.subr.mxu0 0.0
  %2772 = vmatpush1.msra.mxu0 0.0
  %2773 = vmatprep.subr.mxu0 0.0
  %2774 = vmatpush1.msra.mxu0 0.0
  %2775 = vmatprep.subr.mxu0 0.0
  %2776 = vmatpush1.msra.mxu0 0.0
  %2777 = vmatprep.subr.mxu0 0.0
  %2778 = vmatpush1.msra.mxu0 0.0
  %2779 = vmatprep.subr.mxu0 0.0
  %2780 = vmatpush1.msra.mxu0 0.0
  %2781 = vmatprep.subr.mxu0 0.0
  %2782 = vmatpush1.msra.mxu0 0.0
  %2783 = vmatprep.subr.mxu0 0.0
  %2784 = vmatpush1.msra.mxu0 0.0
  %2785 = vmatprep.subr.mxu0 0.0
  %2786 = vmatpush1.msra.mxu0 0.0
  %2787 = vmatprep.subr.mxu0 0.0
  %2788 = vmatpush1.msra.mxu0 0.0
  %2789 = vmatprep.subr.mxu0 0.0
  %2790 = vmatpush1.msra.mxu0 0.0
  %2791 = vmatprep.subr.mxu0 0.0
  %2792 = vmatpush1.msra.mxu0 0.0
  %2793 = vmatprep.subr.mxu0 0.0
  %2794 = vmatpush1.msra.mxu0 0.0
  %2795 = vmatprep.subr.mxu0 0.0
  %2796 = vmatpush1.msra.mxu0 0.0
  %2797 = vmatprep.subr.mxu0 0.0
  %2798 = vmatpush1.msra.mxu0 0.0
  %2799 = vmatprep.subr.mxu0 0.0
  %2800 = vmatpush1.msra.mxu0 0.0
  %2801 = vmatprep.subr.mxu0 0.0
  %2802 = vmatpush1.msra.mxu0 0.0
  %2803 = vmatprep.subr.mxu0 0.0
  %2804 = vmatpush1.msra.mxu0 0.0
  %2805 = vmatprep.subr.mxu0 0.0
  %2806 = vmatpush1.msra.mxu0 0.0
  %2807 = vmatprep.mubr.f32.mxu0 0.0
  %2808 = vmatmul.mubr.f32.gmra.mrb[0].mxu0 %v2741
  %v2809 = vpop.f32.mrb[0].mxu0
  %v2810 = vadd.f32 0.0, %v2809
  %v2811 = vpop.f32.mrb[0].mxu0
  %2812 = vdwg.mxu0
  %v2813 = vadd.f32 %v2132, %v2810
  %v2814 = vxor.u32 %v2813, 2147483648
  %v2815 = vmul.f32 %v2814, 1.442695
  %v2816 = vpow.pop %v2815
  %v2817 = vadd.f32 %v2816, 1.0
  %v2818 = vrcp.pop %v2817
  %v2819 = vmul.f32 1.0, %v2818
  %2820 = vmatprep.subr.mxu0 0.0
  %2821 = vmatpush1.msra.mxu0 %v2037
  %2822 = vmatprep.subr.mxu0 0.0
  %2823 = vmatpush1.msra.mxu0 %v2038
  %2824 = vmatprep.subr.mxu0 0.0
  %2825 = vmatpush1.msra.mxu0 %v2039
  %2826 = vmatprep.subr.mxu0 0.0
  %2827 = vmatpush1.msra.mxu0 %v2040
  %2828 = vmatprep.subr.mxu0 0.0
  %2829 = vmatpush1.msra.mxu0 0.0
  %2830 = vmatprep.subr.mxu0 0.0
  %2831 = vmatpush1.msra.mxu0 0.0
  %2832 = vmatprep.subr.mxu0 0.0
  %2833 = vmatpush1.msra.mxu0 0.0
  %2834 = vmatprep.subr.mxu0 0.0
  %2835 = vmatpush1.msra.mxu0 0.0
  %2836 = vmatprep.subr.mxu0 0.0
  %2837 = vmatpush1.msra.mxu0 0.0
  %2838 = vmatprep.subr.mxu0 0.0
  %2839 = vmatpush1.msra.mxu0 0.0
  %2840 = vmatprep.subr.mxu0 0.0
  %2841 = vmatpush1.msra.mxu0 0.0
  %2842 = vmatprep.subr.mxu0 0.0
  %2843 = vmatpush1.msra.mxu0 0.0
  %2844 = vmatprep.subr.mxu0 0.0
  %2845 = vmatpush1.msra.mxu0 0.0
  %2846 = vmatprep.subr.mxu0 0.0
  %2847 = vmatpush1.msra.mxu0 0.0
  %2848 = vmatprep.subr.mxu0 0.0
  %2849 = vmatpush1.msra.mxu0 0.0
  %2850 = vmatprep.subr.mxu0 0.0
  %2851 = vmatpush1.msra.mxu0 0.0
  %2852 = vmatprep.subr.mxu0 0.0
  %2853 = vmatpush1.msra.mxu0 0.0
  %2854 = vmatprep.subr.mxu0 0.0
  %2855 = vmatpush1.msra.mxu0 0.0
  %2856 = vmatprep.subr.mxu0 0.0
  %2857 = vmatpush1.msra.mxu0 0.0
  %2858 = vmatprep.subr.mxu0 0.0
  %2859 = vmatpush1.msra.mxu0 0.0
  %2860 = vmatprep.subr.mxu0 0.0
  %2861 = vmatpush1.msra.mxu0 0.0
  %2862 = vmatprep.subr.mxu0 0.0
  %2863 = vmatpush1.msra.mxu0 0.0
  %2864 = vmatprep.subr.mxu0 0.0
  %2865 = vmatpush1.msra.mxu0 0.0
  %2866 = vmatprep.subr.mxu0 0.0
  %2867 = vmatpush1.msra.mxu0 0.0
  %2868 = vmatprep.subr.mxu0 0.0
  %2869 = vmatpush1.msra.mxu0 0.0
  %2870 = vmatprep.subr.mxu0 0.0
  %2871 = vmatpush1.msra.mxu0 0.0
  %2872 = vmatprep.subr.mxu0 0.0
  %2873 = vmatpush1.msra.mxu0 0.0
  %2874 = vmatprep.subr.mxu0 0.0
  %2875 = vmatpush1.msra.mxu0 0.0
  %2876 = vmatprep.subr.mxu0 0.0
  %2877 = vmatpush1.msra.mxu0 0.0
  %2878 = vmatprep.subr.mxu0 0.0
  %2879 = vmatpush1.msra.mxu0 0.0
  %2880 = vmatprep.subr.mxu0 0.0
  %2881 = vmatpush1.msra.mxu0 0.0
  %2882 = vmatprep.subr.mxu0 0.0
  %2883 = vmatpush1.msra.mxu0 0.0
  %2884 = vmatprep.mubr.f32.mxu0 0.0
  %2885 = vmatmul.mubr.f32.gmra.mrb[0].mxu0 %v2741
  %v2886 = vpop.f32.mrb[0].mxu0
  %v2887 = vadd.f32 0.0, %v2886
  %v2888 = vpop.f32.mrb[0].mxu0
  %2889 = vdwg.mxu0
  %v2890 = vadd.f32 %v2226, %v2887
  %v2891 = vxor.u32 %v2890, 2147483648
  %v2892 = vmul.f32 %v2891, 1.442695
  %v2893 = vpow.pop %v2892
  %v2894 = vadd.f32 %v2893, 1.0
  %v2895 = vrcp.pop %v2894
  %v2896 = vmul.f32 1.0, %v2895
  %2897 = vmatprep.subr.mxu0 0.0
  %2898 = vmatpush1.msra.mxu0 %v2041
  %2899 = vmatprep.subr.mxu0 0.0
  %2900 = vmatpush1.msra.mxu0 %v2042
  %2901 = vmatprep.subr.mxu0 0.0
  %2902 = vmatpush1.msra.mxu0 %v2043
  %2903 = vmatprep.subr.mxu0 0.0
  %2904 = vmatpush1.msra.mxu0 %v2044
  %2905 = vmatprep.subr.mxu0 0.0
  %2906 = vmatpush1.msra.mxu0 0.0
  %2907 = vmatprep.subr.mxu0 0.0
  %2908 = vmatpush1.msra.mxu0 0.0
  %2909 = vmatprep.subr.mxu0 0.0
  %2910 = vmatpush1.msra.mxu0 0.0
  %2911 = vmatprep.subr.mxu0 0.0
  %2912 = vmatpush1.msra.mxu0 0.0
  %2913 = vmatprep.subr.mxu0 0.0
  %2914 = vmatpush1.msra.mxu0 0.0
  %2915 = vmatprep.subr.mxu0 0.0
  %2916 = vmatpush1.msra.mxu0 0.0
  %2917 = vmatprep.subr.mxu0 0.0
  %2918 = vmatpush1.msra.mxu0 0.0
  %2919 = vmatprep.subr.mxu0 0.0
  %2920 = vmatpush1.msra.mxu0 0.0
  %2921 = vmatprep.subr.mxu0 0.0
  %2922 = vmatpush1.msra.mxu0 0.0
  %2923 = vmatprep.subr.mxu0 0.0
  %2924 = vmatpush1.msra.mxu0 0.0
  %2925 = vmatprep.subr.mxu0 0.0
  %2926 = vmatpush1.msra.mxu0 0.0
  %2927 = vmatprep.subr.mxu0 0.0
  %2928 = vmatpush1.msra.mxu0 0.0
  %2929 = vmatprep.subr.mxu0 0.0
  %2930 = vmatpush1.msra.mxu0 0.0
  %2931 = vmatprep.subr.mxu0 0.0
  %2932 = vmatpush1.msra.mxu0 0.0
  %2933 = vmatprep.subr.mxu0 0.0
  %2934 = vmatpush1.msra.mxu0 0.0
  %2935 = vmatprep.subr.mxu0 0.0
  %2936 = vmatpush1.msra.mxu0 0.0
  %2937 = vmatprep.subr.mxu0 0.0
  %2938 = vmatpush1.msra.mxu0 0.0
  %2939 = vmatprep.subr.mxu0 0.0
  %2940 = vmatpush1.msra.mxu0 0.0
  %2941 = vmatprep.subr.mxu0 0.0
  %2942 = vmatpush1.msra.mxu0 0.0
  %2943 = vmatprep.subr.mxu0 0.0
  %2944 = vmatpush1.msra.mxu0 0.0
  %2945 = vmatprep.subr.mxu0 0.0
  %2946 = vmatpush1.msra.mxu0 0.0
  %2947 = vmatprep.subr.mxu0 0.0
  %2948 = vmatpush1.msra.mxu0 0.0
  %2949 = vmatprep.subr.mxu0 0.0
  %2950 = vmatpush1.msra.mxu0 0.0
  %2951 = vmatprep.subr.mxu0 0.0
  %2952 = vmatpush1.msra.mxu0 0.0
  %2953 = vmatprep.subr.mxu0 0.0
  %2954 = vmatpush1.msra.mxu0 0.0
  %2955 = vmatprep.subr.mxu0 0.0
  %2956 = vmatpush1.msra.mxu0 0.0
  %2957 = vmatprep.subr.mxu0 0.0
  %2958 = vmatpush1.msra.mxu0 0.0
  %2959 = vmatprep.subr.mxu0 0.0
  %2960 = vmatpush1.msra.mxu0 0.0
  %2961 = vmatprep.mubr.f32.mxu0 0.0
  %2962 = vmatmul.mubr.f32.gmra.mrb[0].mxu0 %v2741
  %v2963 = vpop.f32.mrb[0].mxu0
  %v2964 = vadd.f32 0.0, %v2963
  %v2965 = vpop.f32.mrb[0].mxu0
  %2966 = vdwg.mxu0
  %v2967 = vadd.f32 %v2320, %v2964
  %v2968 = vtanh.pop %v2967
  %2969 = vmatprep.subr.mxu0 0.0
  %2970 = vmatpush1.msra.mxu0 %v2045
  %2971 = vmatprep.subr.mxu0 0.0
  %2972 = vmatpush1.msra.mxu0 %v2046
  %2973 = vmatprep.subr.mxu0 0.0
  %2974 = vmatpush1.msra.mxu0 %v2047
  %2975 = vmatprep.subr.mxu0 0.0
  %2976 = vmatpush1.msra.mxu0 %v2048
  %2977 = vmatprep.subr.mxu0 0.0
  %2978 = vmatpush1.msra.mxu0 0.0
  %2979 = vmatprep.subr.mxu0 0.0
  %2980 = vmatpush1.msra.mxu0 0.0
  %2981 = vmatprep.subr.mxu0 0.0
  %2982 = vmatpush1.msra.mxu0 0.0
  %2983 = vmatprep.subr.mxu0 0.0
  %2984 = vmatpush1.msra.mxu0 0.0
  %2985 = vmatprep.subr.mxu0 0.0
  %2986 = vmatpush1.msra.mxu0 0.0
  %2987 = vmatprep.subr.mxu0 0.0
  %2988 = vmatpush1.msra.mxu0 0.0
  %2989 = vmatprep.subr.mxu0 0.0
  %2990 = vmatpush1.msra.mxu0 0.0
  %2991 = vmatprep.subr.mxu0 0.0
  %2992 = vmatpush1.msra.mxu0 0.0
  %2993 = vmatprep.subr.mxu0 0.0
  %2994 = vmatpush1.msra.mxu0 0.0
  %2995 = vmatprep.subr.mxu0 0.0
  %2996 = vmatpush1.msra.mxu0 0.0
  %2997 = vmatprep.subr.mxu0 0.0
  %2998 = vmatpush1.msra.mxu0 0.0
  %2999 = vmatprep.subr.mxu0 0.0
  %3000 = vmatpush1.msra.mxu0 0.0
  %3001 = vmatprep.subr.mxu0 0.0
  %3002 = vmatpush1.msra.mxu0 0.0
  %3003 = vmatprep.subr.mxu0 0.0
  %3004 = vmatpush1.msra.mxu0 0.0
  %3005 = vmatprep.subr.mxu0 0.0
  %3006 = vmatpush1.msra.mxu0 0.0
  %3007 = vmatprep.subr.mxu0 0.0
  %3008 = vmatpush1.msra.mxu0 0.0
  %3009 = vmatprep.subr.mxu0 0.0
  %3010 = vmatpush1.msra.mxu0 0.0
  %3011 = vmatprep.subr.mxu0 0.0
  %3012 = vmatpush1.msra.mxu0 0.0
  %3013 = vmatprep.subr.mxu0 0.0
  %3014 = vmatpush1.msra.mxu0 0.0
  %3015 = vmatprep.subr.mxu0 0.0
  %3016 = vmatpush1.msra.mxu0 0.0
  %3017 = vmatprep.subr.mxu0 0.0
  %3018 = vmatpush1.msra.mxu0 0.0
  %3019 = vmatprep.subr.mxu0 0.0
  %3020 = vmatpush1.msra.mxu0 0.0
  %3021 = vmatprep.subr.mxu0 0.0
  %3022 = vmatpush1.msra.mxu0 0.0
  %3023 = vmatprep.subr.mxu0 0.0
  %3024 = vmatpush1.msra.mxu0 0.0
  %3025 = vmatprep.subr.mxu0 0.0
  %3026 = vmatpush1.msra.mxu0 0.0
  %3027 = vmatprep.subr.mxu0 0.0
  %3028 = vmatpush1.msra.mxu0 0.0
  %3029 = vmatprep.subr.mxu0 0.0
  %3030 = vmatpush1.msra.mxu0 0.0
  %3031 = vmatprep.subr.mxu0 0.0
  %3032 = vmatpush1.msra.mxu0 0.0
  %3033 = vmatprep.mubr.f32.mxu0 0.0
  %3034 = vmatmul.mubr.f32.gmra.mrb[0].mxu0 %v2741
  %v3035 = vpop.f32.mrb[0].mxu0
  %v3036 = vadd.f32 0.0, %v3035
  %v3037 = vpop.f32.mrb[0].mxu0
  %3038 = vdwg.mxu0
  %v3039 = vadd.f32 %v2414, %v3036
  %v3040 = vxor.u32 %v3039, 2147483648
  %v3041 = vmul.f32 %v3040, 1.442695
  %v3042 = vpow.pop %v3041
  %v3043 = vadd.f32 %v3042, 1.0
  %v3044 = vrcp.pop %v3043
  %v3045 = vmul.f32 1.0, %v3044
  %v3046 = vmul.f32 %v2896, %v2737
  %v3047 = vmul.f32 %v2819, %v2968
  %v3048 = vadd.f32 %v3046, %v3047
  %v3049 = vtanh.pop %v3048
  %v3050 = vmul.f32 %v3045, %v3049
  %v3052 = vsel %vm461, %v3050, 0
  %3054 = vmatprep.subr.mxu0 0.0
  %3055 = vmatpush1.msra.mxu0 %v2033
  %3056 = vmatprep.subr.mxu0 0.0
  %3057 = vmatpush1.msra.mxu0 %v2034
  %3058 = vmatprep.subr.mxu0 0.0
  %3059 = vmatpush1.msra.mxu0 %v2035
  %3060 = vmatprep.subr.mxu0 0.0
  %3061 = vmatpush1.msra.mxu0 %v2036
  %3062 = vmatprep.subr.mxu0 0.0
  %3063 = vmatpush1.msra.mxu0 0.0
  %3064 = vmatprep.subr.mxu0 0.0
  %3065 = vmatpush1.msra.mxu0 0.0
  %3066 = vmatprep.subr.mxu0 0.0
  %3067 = vmatpush1.msra.mxu0 0.0
  %3068 = vmatprep.subr.mxu0 0.0
  %3069 = vmatpush1.msra.mxu0 0.0
  %3070 = vmatprep.subr.mxu0 0.0
  %3071 = vmatpush1.msra.mxu0 0.0
  %3072 = vmatprep.subr.mxu0 0.0
  %3073 = vmatpush1.msra.mxu0 0.0
  %3074 = vmatprep.subr.mxu0 0.0
  %3075 = vmatpush1.msra.mxu0 0.0
  %3076 = vmatprep.subr.mxu0 0.0
  %3077 = vmatpush1.msra.mxu0 0.0
  %3078 = vmatprep.subr.mxu0 0.0
  %3079 = vmatpush1.msra.mxu0 0.0
  %3080 = vmatprep.subr.mxu0 0.0
  %3081 = vmatpush1.msra.mxu0 0.0
  %3082 = vmatprep.subr.mxu0 0.0
  %3083 = vmatpush1.msra.mxu0 0.0
  %3084 = vmatprep.subr.mxu0 0.0
  %3085 = vmatpush1.msra.mxu0 0.0
  %3086 = vmatprep.subr.mxu0 0.0
  %3087 = vmatpush1.msra.mxu0 0.0
  %3088 = vmatprep.subr.mxu0 0.0
  %3089 = vmatpush1.msra.mxu0 0.0
  %3090 = vmatprep.subr.mxu0 0.0
  %3091 = vmatpush1.msra.mxu0 0.0
  %3092 = vmatprep.subr.mxu0 0.0
  %3093 = vmatpush1.msra.mxu0 0.0
  %3094 = vmatprep.subr.mxu0 0.0
  %3095 = vmatpush1.msra.mxu0 0.0
  %3096 = vmatprep.subr.mxu0 0.0
  %3097 = vmatpush1.msra.mxu0 0.0
  %3098 = vmatprep.subr.mxu0 0.0
  %3099 = vmatpush1.msra.mxu0 0.0
  %3100 = vmatprep.subr.mxu0 0.0
  %3101 = vmatpush1.msra.mxu0 0.0
  %3102 = vmatprep.subr.mxu0 0.0
  %3103 = vmatpush1.msra.mxu0 0.0
  %3104 = vmatprep.subr.mxu0 0.0
  %3105 = vmatpush1.msra.mxu0 0.0
  %3106 = vmatprep.subr.mxu0 0.0
  %3107 = vmatpush1.msra.mxu0 0.0
  %3108 = vmatprep.subr.mxu0 0.0
  %3109 = vmatpush1.msra.mxu0 0.0
  %3110 = vmatprep.subr.mxu0 0.0
  %3111 = vmatpush1.msra.mxu0 0.0
  %3112 = vmatprep.subr.mxu0 0.0
  %3113 = vmatpush1.msra.mxu0 0.0
  %3114 = vmatprep.subr.mxu0 0.0
  %3115 = vmatpush1.msra.mxu0 0.0
  %3116 = vmatprep.subr.mxu0 0.0
  %3117 = vmatpush1.msra.mxu0 0.0
  %3118 = vmatprep.mubr.f32.mxu0 0.0
  %3119 = vmatmul.mubr.f32.gmra.mrb[0].mxu0 %v3052
  %v3120 = vpop.f32.mrb[0].mxu0
  %v3121 = vadd.f32 0.0, %v3120
  %v3122 = vpop.f32.mrb[0].mxu0
  %3123 = vdwg.mxu0
  %v3124 = vadd.f32 %v2137, %v3121
  %v3125 = vxor.u32 %v3124, 2147483648
  %v3126 = vmul.f32 %v3125, 1.442695
  %v3127 = vpow.pop %v3126
  %v3128 = vadd.f32 %v3127, 1.0
  %v3129 = vrcp.pop %v3128
  %v3130 = vmul.f32 1.0, %v3129
  %3131 = vmatprep.subr.mxu0 0.0
  %3132 = vmatpush1.msra.mxu0 %v2037
  %3133 = vmatprep.subr.mxu0 0.0
  %3134 = vmatpush1.msra.mxu0 %v2038
  %3135 = vmatprep.subr.mxu0 0.0
  %3136 = vmatpush1.msra.mxu0 %v2039
  %3137 = vmatprep.subr.mxu0 0.0
  %3138 = vmatpush1.msra.mxu0 %v2040
  %3139 = vmatprep.subr.mxu0 0.0
  %3140 = vmatpush1.msra.mxu0 0.0
  %3141 = vmatprep.subr.mxu0 0.0
  %3142 = vmatpush1.msra.mxu0 0.0
  %3143 = vmatprep.subr.mxu0 0.0
  %3144 = vmatpush1.msra.mxu0 0.0
  %3145 = vmatprep.subr.mxu0 0.0
  %3146 = vmatpush1.msra.mxu0 0.0
  %3147 = vmatprep.subr.mxu0 0.0
  %3148 = vmatpush1.msra.mxu0 0.0
  %3149 = vmatprep.subr.mxu0 0.0
  %3150 = vmatpush1.msra.mxu0 0.0
  %3151 = vmatprep.subr.mxu0 0.0
  %3152 = vmatpush1.msra.mxu0 0.0
  %3153 = vmatprep.subr.mxu0 0.0
  %3154 = vmatpush1.msra.mxu0 0.0
  %3155 = vmatprep.subr.mxu0 0.0
  %3156 = vmatpush1.msra.mxu0 0.0
  %3157 = vmatprep.subr.mxu0 0.0
  %3158 = vmatpush1.msra.mxu0 0.0
  %3159 = vmatprep.subr.mxu0 0.0
  %3160 = vmatpush1.msra.mxu0 0.0
  %3161 = vmatprep.subr.mxu0 0.0
  %3162 = vmatpush1.msra.mxu0 0.0
  %3163 = vmatprep.subr.mxu0 0.0
  %3164 = vmatpush1.msra.mxu0 0.0
  %3165 = vmatprep.subr.mxu0 0.0
  %3166 = vmatpush1.msra.mxu0 0.0
  %3167 = vmatprep.subr.mxu0 0.0
  %3168 = vmatpush1.msra.mxu0 0.0
  %3169 = vmatprep.subr.mxu0 0.0
  %3170 = vmatpush1.msra.mxu0 0.0
  %3171 = vmatprep.subr.mxu0 0.0
  %3172 = vmatpush1.msra.mxu0 0.0
  %3173 = vmatprep.subr.mxu0 0.0
  %3174 = vmatpush1.msra.mxu0 0.0
  %3175 = vmatprep.subr.mxu0 0.0
  %3176 = vmatpush1.msra.mxu0 0.0
  %3177 = vmatprep.subr.mxu0 0.0
  %3178 = vmatpush1.msra.mxu0 0.0
  %3179 = vmatprep.subr.mxu0 0.0
  %3180 = vmatpush1.msra.mxu0 0.0
  %3181 = vmatprep.subr.mxu0 0.0
  %3182 = vmatpush1.msra.mxu0 0.0
  %3183 = vmatprep.subr.mxu0 0.0
  %3184 = vmatpush1.msra.mxu0 0.0
  %3185 = vmatprep.subr.mxu0 0.0
  %3186 = vmatpush1.msra.mxu0 0.0
  %3187 = vmatprep.subr.mxu0 0.0
  %3188 = vmatpush1.msra.mxu0 0.0
  %3189 = vmatprep.subr.mxu0 0.0
  %3190 = vmatpush1.msra.mxu0 0.0
  %3191 = vmatprep.subr.mxu0 0.0
  %3192 = vmatpush1.msra.mxu0 0.0
  %3193 = vmatprep.subr.mxu0 0.0
  %3194 = vmatpush1.msra.mxu0 0.0
  %3195 = vmatprep.mubr.f32.mxu0 0.0
  %3196 = vmatmul.mubr.f32.gmra.mrb[0].mxu0 %v3052
  %v3197 = vpop.f32.mrb[0].mxu0
  %v3198 = vadd.f32 0.0, %v3197
  %v3199 = vpop.f32.mrb[0].mxu0
  %3200 = vdwg.mxu0
  %v3201 = vadd.f32 %v2231, %v3198
  %v3202 = vxor.u32 %v3201, 2147483648
  %v3203 = vmul.f32 %v3202, 1.442695
  %v3204 = vpow.pop %v3203
  %v3205 = vadd.f32 %v3204, 1.0
  %v3206 = vrcp.pop %v3205
  %v3207 = vmul.f32 1.0, %v3206
  %3208 = vmatprep.subr.mxu0 0.0
  %3209 = vmatpush1.msra.mxu0 %v2041
  %3210 = vmatprep.subr.mxu0 0.0
  %3211 = vmatpush1.msra.mxu0 %v2042
  %3212 = vmatprep.subr.mxu0 0.0
  %3213 = vmatpush1.msra.mxu0 %v2043
  %3214 = vmatprep.subr.mxu0 0.0
  %3215 = vmatpush1.msra.mxu0 %v2044
  %3216 = vmatprep.subr.mxu0 0.0
  %3217 = vmatpush1.msra.mxu0 0.0
  %3218 = vmatprep.subr.mxu0 0.0
  %3219 = vmatpush1.msra.mxu0 0.0
  %3220 = vmatprep.subr.mxu0 0.0
  %3221 = vmatpush1.msra.mxu0 0.0
  %3222 = vmatprep.subr.mxu0 0.0
  %3223 = vmatpush1.msra.mxu0 0.0
  %3224 = vmatprep.subr.mxu0 0.0
  %3225 = vmatpush1.msra.mxu0 0.0
  %3226 = vmatprep.subr.mxu0 0.0
  %3227 = vmatpush1.msra.mxu0 0.0
  %3228 = vmatprep.subr.mxu0 0.0
  %3229 = vmatpush1.msra.mxu0 0.0
  %3230 = vmatprep.subr.mxu0 0.0
  %3231 = vmatpush1.msra.mxu0 0.0
  %3232 = vmatprep.subr.mxu0 0.0
  %3233 = vmatpush1.msra.mxu0 0.0
  %3234 = vmatprep.subr.mxu0 0.0
  %3235 = vmatpush1.msra.mxu0 0.0
  %3236 = vmatprep.subr.mxu0 0.0
  %3237 = vmatpush1.msra.mxu0 0.0
  %3238 = vmatprep.subr.mxu0 0.0
  %3239 = vmatpush1.msra.mxu0 0.0
  %3240 = vmatprep.subr.mxu0 0.0
  %3241 = vmatpush1.msra.mxu0 0.0
  %3242 = vmatprep.subr.mxu0 0.0
  %3243 = vmatpush1.msra.mxu0 0.0
  %3244 = vmatprep.subr.mxu0 0.0
  %3245 = vmatpush1.msra.mxu0 0.0
  %3246 = vmatprep.subr.mxu0 0.0
  %3247 = vmatpush1.msra.mxu0 0.0
  %3248 = vmatprep.subr.mxu0 0.0
  %3249 = vmatpush1.msra.mxu0 0.0
  %3250 = vmatprep.subr.mxu0 0.0
  %3251 = vmatpush1.msra.mxu0 0.0
  %3252 = vmatprep.subr.mxu0 0.0
  %3253 = vmatpush1.msra.mxu0 0.0
  %3254 = vmatprep.subr.mxu0 0.0
  %3255 = vmatpush1.msra.mxu0 0.0
  %3256 = vmatprep.subr.mxu0 0.0
  %3257 = vmatpush1.msra.mxu0 0.0
  %3258 = vmatprep.subr.mxu0 0.0
  %3259 = vmatpush1.msra.mxu0 0.0
  %3260 = vmatprep.subr.mxu0 0.0
  %3261 = vmatpush1.msra.mxu0 0.0
  %3262 = vmatprep.subr.mxu0 0.0
  %3263 = vmatpush1.msra.mxu0 0.0
  %3264 = vmatprep.subr.mxu0 0.0
  %3265 = vmatpush1.msra.mxu0 0.0
  %3266 = vmatprep.subr.mxu0 0.0
  %3267 = vmatpush1.msra.mxu0 0.0
  %3268 = vmatprep.subr.mxu0 0.0
  %3269 = vmatpush1.msra.mxu0 0.0
  %3270 = vmatprep.subr.mxu0 0.0
  %3271 = vmatpush1.msra.mxu0 0.0
  %3272 = vmatprep.mubr.f32.mxu0 0.0
  %3273 = vmatmul.mubr.f32.gmra.mrb[0].mxu0 %v3052
  %v3274 = vpop.f32.mrb[0].mxu0
  %v3275 = vadd.f32 0.0, %v3274
  %v3276 = vpop.f32.mrb[0].mxu0
  %3277 = vdwg.mxu0
  %v3278 = vadd.f32 %v2325, %v3275
  %v3279 = vtanh.pop %v3278
  %3280 = vmatprep.subr.mxu0 0.0
  %3281 = vmatpush1.msra.mxu0 %v2045
  %3282 = vmatprep.subr.mxu0 0.0
  %3283 = vmatpush1.msra.mxu0 %v2046
  %3284 = vmatprep.subr.mxu0 0.0
  %3285 = vmatpush1.msra.mxu0 %v2047
  %3286 = vmatprep.subr.mxu0 0.0
  %3287 = vmatpush1.msra.mxu0 %v2048
  %3288 = vmatprep.subr.mxu0 0.0
  %3289 = vmatpush1.msra.mxu0 0.0
  %3290 = vmatprep.subr.mxu0 0.0
  %3291 = vmatpush1.msra.mxu0 0.0
  %3292 = vmatprep.subr.mxu0 0.0
  %3293 = vmatpush1.msra.mxu0 0.0
  %3294 = vmatprep.subr.mxu0 0.0
  %3295 = vmatpush1.msra.mxu0 0.0
  %3296 = vmatprep.subr.mxu0 0.0
  %3297 = vmatpush1.msra.mxu0 0.0
  %3298 = vmatprep.subr.mxu0 0.0
  %3299 = vmatpush1.msra.mxu0 0.0
  %3300 = vmatprep.subr.mxu0 0.0
  %3301 = vmatpush1.msra.mxu0 0.0
  %3302 = vmatprep.subr.mxu0 0.0
  %3303 = vmatpush1.msra.mxu0 0.0
  %3304 = vmatprep.subr.mxu0 0.0
  %3305 = vmatpush1.msra.mxu0 0.0
  %3306 = vmatprep.subr.mxu0 0.0
  %3307 = vmatpush1.msra.mxu0 0.0
  %3308 = vmatprep.subr.mxu0 0.0
  %3309 = vmatpush1.msra.mxu0 0.0
  %3310 = vmatprep.subr.mxu0 0.0
  %3311 = vmatpush1.msra.mxu0 0.0
  %3312 = vmatprep.subr.mxu0 0.0
  %3313 = vmatpush1.msra.mxu0 0.0
  %3314 = vmatprep.subr.mxu0 0.0
  %3315 = vmatpush1.msra.mxu0 0.0
  %3316 = vmatprep.subr.mxu0 0.0
  %3317 = vmatpush1.msra.mxu0 0.0
  %3318 = vmatprep.subr.mxu0 0.0
  %3319 = vmatpush1.msra.mxu0 0.0
  %3320 = vmatprep.subr.mxu0 0.0
  %3321 = vmatpush1.msra.mxu0 0.0
  %3322 = vmatprep.subr.mxu0 0.0
  %3323 = vmatpush1.msra.mxu0 0.0
  %3324 = vmatprep.subr.mxu0 0.0
  %3325 = vmatpush1.msra.mxu0 0.0
  %3326 = vmatprep.subr.mxu0 0.0
  %3327 = vmatpush1.msra.mxu0 0.0
  %3328 = vmatprep.subr.mxu0 0.0
  %3329 = vmatpush1.msra.mxu0 0.0
  %3330 = vmatprep.subr.mxu0 0.0
  %3331 = vmatpush1.msra.mxu0 0.0
  %3332 = vmatprep.subr.mxu0 0.0
  %3333 = vmatpush1.msra.mxu0 0.0
  %3334 = vmatprep.subr.mxu0 0.0
  %3335 = vmatpush1.msra.mxu0 0.0
  %3336 = vmatprep.subr.mxu0 0.0
  %3337 = vmatpush1.msra.mxu0 0.0
  %3338 = vmatprep.subr.mxu0 0.0
  %3339 = vmatpush1.msra.mxu0 0.0
  %3340 = vmatprep.subr.mxu0 0.0
  %3341 = vmatpush1.msra.mxu0 0.0
  %3342 = vmatprep.subr.mxu0 0.0
  %3343 = vmatpush1.msra.mxu0 0.0
  %3344 = vmatprep.mubr.f32.mxu0 0.0
  %3345 = vmatmul.mubr.f32.gmra.mrb[0].mxu0 %v3052
  %v3346 = vpop.f32.mrb[0].mxu0
  %v3347 = vadd.f32 0.0, %v3346
  %v3348 = vpop.f32.mrb[0].mxu0
  %3349 = vdwg.mxu0
  %v3350 = vadd.f32 %v2419, %v3347
  %v3351 = vxor.u32 %v3350, 2147483648
  %v3352 = vmul.f32 %v3351, 1.442695
  %v3353 = vpow.pop %v3352
  %v3354 = vadd.f32 %v3353, 1.0
  %v3355 = vrcp.pop %v3354
  %v3356 = vmul.f32 1.0, %v3355
  %v3357 = vmul.f32 %v3207, %v3048
  %v3358 = vmul.f32 %v3130, %v3279
  %v3359 = vadd.f32 %v3357, %v3358
  %v3360 = vtanh.pop %v3359
  %v3361 = vmul.f32 %v3356, %v3360
  %v3363 = vsel %vm461, %v3361, 0
  %3365 = vmatprep.subr.mxu0 0.0
  %3366 = vmatpush1.msra.mxu0 %v2033
  %3367 = vmatprep.subr.mxu0 0.0
  %3368 = vmatpush1.msra.mxu0 %v2034
  %3369 = vmatprep.subr.mxu0 0.0
  %3370 = vmatpush1.msra.mxu0 %v2035
  %3371 = vmatprep.subr.mxu0 0.0
  %3372 = vmatpush1.msra.mxu0 %v2036
  %3373 = vmatprep.subr.mxu0 0.0
  %3374 = vmatpush1.msra.mxu0 0.0
  %3375 = vmatprep.subr.mxu0 0.0
  %3376 = vmatpush1.msra.mxu0 0.0
  %3377 = vmatprep.subr.mxu0 0.0
  %3378 = vmatpush1.msra.mxu0 0.0
  %3379 = vmatprep.subr.mxu0 0.0
  %3380 = vmatpush1.msra.mxu0 0.0
  %3381 = vmatprep.subr.mxu0 0.0
  %3382 = vmatpush1.msra.mxu0 0.0
  %3383 = vmatprep.subr.mxu0 0.0
  %3384 = vmatpush1.msra.mxu0 0.0
  %3385 = vmatprep.subr.mxu0 0.0
  %3386 = vmatpush1.msra.mxu0 0.0
  %3387 = vmatprep.subr.mxu0 0.0
  %3388 = vmatpush1.msra.mxu0 0.0
  %3389 = vmatprep.subr.mxu0 0.0
  %3390 = vmatpush1.msra.mxu0 0.0
  %3391 = vmatprep.subr.mxu0 0.0
  %3392 = vmatpush1.msra.mxu0 0.0
  %3393 = vmatprep.subr.mxu0 0.0
  %3394 = vmatpush1.msra.mxu0 0.0
  %3395 = vmatprep.subr.mxu0 0.0
  %3396 = vmatpush1.msra.mxu0 0.0
  %3397 = vmatprep.subr.mxu0 0.0
  %3398 = vmatpush1.msra.mxu0 0.0
  %3399 = vmatprep.subr.mxu0 0.0
  %3400 = vmatpush1.msra.mxu0 0.0
  %3401 = vmatprep.subr.mxu0 0.0
  %3402 = vmatpush1.msra.mxu0 0.0
  %3403 = vmatprep.subr.mxu0 0.0
  %3404 = vmatpush1.msra.mxu0 0.0
  %3405 = vmatprep.subr.mxu0 0.0
  %3406 = vmatpush1.msra.mxu0 0.0
  %3407 = vmatprep.subr.mxu0 0.0
  %3408 = vmatpush1.msra.mxu0 0.0
  %3409 = vmatprep.subr.mxu0 0.0
  %3410 = vmatpush1.msra.mxu0 0.0
  %3411 = vmatprep.subr.mxu0 0.0
  %3412 = vmatpush1.msra.mxu0 0.0
  %3413 = vmatprep.subr.mxu0 0.0
  %3414 = vmatpush1.msra.mxu0 0.0
  %3415 = vmatprep.subr.mxu0 0.0
  %3416 = vmatpush1.msra.mxu0 0.0
  %3417 = vmatprep.subr.mxu0 0.0
  %3418 = vmatpush1.msra.mxu0 0.0
  %3419 = vmatprep.subr.mxu0 0.0
  %3420 = vmatpush1.msra.mxu0 0.0
  %3421 = vmatprep.subr.mxu0 0.0
  %3422 = vmatpush1.msra.mxu0 0.0
  %3423 = vmatprep.subr.mxu0 0.0
  %3424 = vmatpush1.msra.mxu0 0.0
  %3425 = vmatprep.subr.mxu0 0.0
  %3426 = vmatpush1.msra.mxu0 0.0
  %3427 = vmatprep.subr.mxu0 0.0
  %3428 = vmatpush1.msra.mxu0 0.0
  %3429 = vmatprep.mubr.f32.mxu0 0.0
  %3430 = vmatmul.mubr.f32.gmra.mrb[0].mxu0 %v3363
  %v3431 = vpop.f32.mrb[0].mxu0
  %v3432 = vadd.f32 0.0, %v3431
  %v3433 = vpop.f32.mrb[0].mxu0
  %3434 = vdwg.mxu0
  %v3435 = vadd.f32 %v2142, %v3432
  %v3436 = vxor.u32 %v3435, 2147483648
  %v3437 = vmul.f32 %v3436, 1.442695
  %v3438 = vpow.pop %v3437
  %v3439 = vadd.f32 %v3438, 1.0
  %v3440 = vrcp.pop %v3439
  %v3441 = vmul.f32 1.0, %v3440
  %3442 = vmatprep.subr.mxu0 0.0
  %3443 = vmatpush1.msra.mxu0 %v2037
  %3444 = vmatprep.subr.mxu0 0.0
  %3445 = vmatpush1.msra.mxu0 %v2038
  %3446 = vmatprep.subr.mxu0 0.0
  %3447 = vmatpush1.msra.mxu0 %v2039
  %3448 = vmatprep.subr.mxu0 0.0
  %3449 = vmatpush1.msra.mxu0 %v2040
  %3450 = vmatprep.subr.mxu0 0.0
  %3451 = vmatpush1.msra.mxu0 0.0
  %3452 = vmatprep.subr.mxu0 0.0
  %3453 = vmatpush1.msra.mxu0 0.0
  %3454 = vmatprep.subr.mxu0 0.0
  %3455 = vmatpush1.msra.mxu0 0.0
  %3456 = vmatprep.subr.mxu0 0.0
  %3457 = vmatpush1.msra.mxu0 0.0
  %3458 = vmatprep.subr.mxu0 0.0
  %3459 = vmatpush1.msra.mxu0 0.0
  %3460 = vmatprep.subr.mxu0 0.0
  %3461 = vmatpush1.msra.mxu0 0.0
  %3462 = vmatprep.subr.mxu0 0.0
  %3463 = vmatpush1.msra.mxu0 0.0
  %3464 = vmatprep.subr.mxu0 0.0
  %3465 = vmatpush1.msra.mxu0 0.0
  %3466 = vmatprep.subr.mxu0 0.0
  %3467 = vmatpush1.msra.mxu0 0.0
  %3468 = vmatprep.subr.mxu0 0.0
  %3469 = vmatpush1.msra.mxu0 0.0
  %3470 = vmatprep.subr.mxu0 0.0
  %3471 = vmatpush1.msra.mxu0 0.0
  %3472 = vmatprep.subr.mxu0 0.0
  %3473 = vmatpush1.msra.mxu0 0.0
  %3474 = vmatprep.subr.mxu0 0.0
  %3475 = vmatpush1.msra.mxu0 0.0
  %3476 = vmatprep.subr.mxu0 0.0
  %3477 = vmatpush1.msra.mxu0 0.0
  %3478 = vmatprep.subr.mxu0 0.0
  %3479 = vmatpush1.msra.mxu0 0.0
  %3480 = vmatprep.subr.mxu0 0.0
  %3481 = vmatpush1.msra.mxu0 0.0
  %3482 = vmatprep.subr.mxu0 0.0
  %3483 = vmatpush1.msra.mxu0 0.0
  %3484 = vmatprep.subr.mxu0 0.0
  %3485 = vmatpush1.msra.mxu0 0.0
  %3486 = vmatprep.subr.mxu0 0.0
  %3487 = vmatpush1.msra.mxu0 0.0
  %3488 = vmatprep.subr.mxu0 0.0
  %3489 = vmatpush1.msra.mxu0 0.0
  %3490 = vmatprep.subr.mxu0 0.0
  %3491 = vmatpush1.msra.mxu0 0.0
  %3492 = vmatprep.subr.mxu0 0.0
  %3493 = vmatpush1.msra.mxu0 0.0
  %3494 = vmatprep.subr.mxu0 0.0
  %3495 = vmatpush1.msra.mxu0 0.0
  %3496 = vmatprep.subr.mxu0 0.0
  %3497 = vmatpush1.msra.mxu0 0.0
  %3498 = vmatprep.subr.mxu0 0.0
  %3499 = vmatpush1.msra.mxu0 0.0
  %3500 = vmatprep.subr.mxu0 0.0
  %3501 = vmatpush1.msra.mxu0 0.0
  %3502 = vmatprep.subr.mxu0 0.0
  %3503 = vmatpush1.msra.mxu0 0.0
  %3504 = vmatprep.subr.mxu0 0.0
  %3505 = vmatpush1.msra.mxu0 0.0
  %3506 = vmatprep.mubr.f32.mxu0 0.0
  %3507 = vmatmul.mubr.f32.gmra.mrb[0].mxu0 %v3363
  %v3508 = vpop.f32.mrb[0].mxu0
  %v3509 = vadd.f32 0.0, %v3508
  %v3510 = vpop.f32.mrb[0].mxu0
  %3511 = vdwg.mxu0
  %v3512 = vadd.f32 %v2236, %v3509
  %v3513 = vxor.u32 %v3512, 2147483648
  %v3514 = vmul.f32 %v3513, 1.442695
  %v3515 = vpow.pop %v3514
  %v3516 = vadd.f32 %v3515, 1.0
  %v3517 = vrcp.pop %v3516
  %v3518 = vmul.f32 1.0, %v3517
  %3519 = vmatprep.subr.mxu0 0.0
  %3520 = vmatpush1.msra.mxu0 %v2041
  %3521 = vmatprep.subr.mxu0 0.0
  %3522 = vmatpush1.msra.mxu0 %v2042
  %3523 = vmatprep.subr.mxu0 0.0
  %3524 = vmatpush1.msra.mxu0 %v2043
  %3525 = vmatprep.subr.mxu0 0.0
  %3526 = vmatpush1.msra.mxu0 %v2044
  %3527 = vmatprep.subr.mxu0 0.0
  %3528 = vmatpush1.msra.mxu0 0.0
  %3529 = vmatprep.subr.mxu0 0.0
  %3530 = vmatpush1.msra.mxu0 0.0
  %3531 = vmatprep.subr.mxu0 0.0
  %3532 = vmatpush1.msra.mxu0 0.0
  %3533 = vmatprep.subr.mxu0 0.0
  %3534 = vmatpush1.msra.mxu0 0.0
  %3535 = vmatprep.subr.mxu0 0.0
  %3536 = vmatpush1.msra.mxu0 0.0
  %3537 = vmatprep.subr.mxu0 0.0
  %3538 = vmatpush1.msra.mxu0 0.0
  %3539 = vmatprep.subr.mxu0 0.0
  %3540 = vmatpush1.msra.mxu0 0.0
  %3541 = vmatprep.subr.mxu0 0.0
  %3542 = vmatpush1.msra.mxu0 0.0
  %3543 = vmatprep.subr.mxu0 0.0
  %3544 = vmatpush1.msra.mxu0 0.0
  %3545 = vmatprep.subr.mxu0 0.0
  %3546 = vmatpush1.msra.mxu0 0.0
  %3547 = vmatprep.subr.mxu0 0.0
  %3548 = vmatpush1.msra.mxu0 0.0
  %3549 = vmatprep.subr.mxu0 0.0
  %3550 = vmatpush1.msra.mxu0 0.0
  %3551 = vmatprep.subr.mxu0 0.0
  %3552 = vmatpush1.msra.mxu0 0.0
  %3553 = vmatprep.subr.mxu0 0.0
  %3554 = vmatpush1.msra.mxu0 0.0
  %3555 = vmatprep.subr.mxu0 0.0
  %3556 = vmatpush1.msra.mxu0 0.0
  %3557 = vmatprep.subr.mxu0 0.0
  %3558 = vmatpush1.msra.mxu0 0.0
  %3559 = vmatprep.subr.mxu0 0.0
  %3560 = vmatpush1.msra.mxu0 0.0
  %3561 = vmatprep.subr.mxu0 0.0
  %3562 = vmatpush1.msra.mxu0 0.0
  %3563 = vmatprep.subr.mxu0 0.0
  %3564 = vmatpush1.msra.mxu0 0.0
  %3565 = vmatprep.subr.mxu0 0.0
  %3566 = vmatpush1.msra.mxu0 0.0
  %3567 = vmatprep.subr.mxu0 0.0
  %3568 = vmatpush1.msra.mxu0 0.0
  %3569 = vmatprep.subr.mxu0 0.0
  %3570 = vmatpush1.msra.mxu0 0.0
  %3571 = vmatprep.subr.mxu0 0.0
  %3572 = vmatpush1.msra.mxu0 0.0
  %3573 = vmatprep.subr.mxu0 0.0
  %3574 = vmatpush1.msra.mxu0 0.0
  %3575 = vmatprep.subr.mxu0 0.0
  %3576 = vmatpush1.msra.mxu0 0.0
  %3577 = vmatprep.subr.mxu0 0.0
  %3578 = vmatpush1.msra.mxu0 0.0
  %3579 = vmatprep.subr.mxu0 0.0
  %3580 = vmatpush1.msra.mxu0 0.0
  %3581 = vmatprep.subr.mxu0 0.0
  %3582 = vmatpush1.msra.mxu0 0.0
  %3583 = vmatprep.mubr.f32.mxu0 0.0
  %3584 = vmatmul.mubr.f32.gmra.mrb[0].mxu0 %v3363
  %v3585 = vpop.f32.mrb[0].mxu0
  %v3586 = vadd.f32 0.0, %v3585
  %v3587 = vpop.f32.mrb[0].mxu0
  %3588 = vdwg.mxu0
  %v3589 = vadd.f32 %v2330, %v3586
  %v3590 = vtanh.pop %v3589
  %3591 = vmatprep.subr.mxu0 0.0
  %3592 = vmatpush1.msra.mxu0 %v2045
  %3593 = vmatprep.subr.mxu0 0.0
  %3594 = vmatpush1.msra.mxu0 %v2046
  %3595 = vmatprep.subr.mxu0 0.0
  %3596 = vmatpush1.msra.mxu0 %v2047
  %3597 = vmatprep.subr.mxu0 0.0
  %3598 = vmatpush1.msra.mxu0 %v2048
  %3599 = vmatprep.subr.mxu0 0.0
  %3600 = vmatpush1.msra.mxu0 0.0
  %3601 = vmatprep.subr.mxu0 0.0
  %3602 = vmatpush1.msra.mxu0 0.0
  %3603 = vmatprep.subr.mxu0 0.0
  %3604 = vmatpush1.msra.mxu0 0.0
  %3605 = vmatprep.subr.mxu0 0.0
  %3606 = vmatpush1.msra.mxu0 0.0
  %3607 = vmatprep.subr.mxu0 0.0
  %3608 = vmatpush1.msra.mxu0 0.0
  %3609 = vmatprep.subr.mxu0 0.0
  %3610 = vmatpush1.msra.mxu0 0.0
  %3611 = vmatprep.subr.mxu0 0.0
  %3612 = vmatpush1.msra.mxu0 0.0
  %3613 = vmatprep.subr.mxu0 0.0
  %3614 = vmatpush1.msra.mxu0 0.0
  %3615 = vmatprep.subr.mxu0 0.0
  %3616 = vmatpush1.msra.mxu0 0.0
  %3617 = vmatprep.subr.mxu0 0.0
  %3618 = vmatpush1.msra.mxu0 0.0
  %3619 = vmatprep.subr.mxu0 0.0
  %3620 = vmatpush1.msra.mxu0 0.0
  %3621 = vmatprep.subr.mxu0 0.0
  %3622 = vmatpush1.msra.mxu0 0.0
  %3623 = vmatprep.subr.mxu0 0.0
  %3624 = vmatpush1.msra.mxu0 0.0
  %3625 = vmatprep.subr.mxu0 0.0
  %3626 = vmatpush1.msra.mxu0 0.0
  %3627 = vmatprep.subr.mxu0 0.0
  %3628 = vmatpush1.msra.mxu0 0.0
  %3629 = vmatprep.subr.mxu0 0.0
  %3630 = vmatpush1.msra.mxu0 0.0
  %3631 = vmatprep.subr.mxu0 0.0
  %3632 = vmatpush1.msra.mxu0 0.0
  %3633 = vmatprep.subr.mxu0 0.0
  %3634 = vmatpush1.msra.mxu0 0.0
  %3635 = vmatprep.subr.mxu0 0.0
  %3636 = vmatpush1.msra.mxu0 0.0
  %3637 = vmatprep.subr.mxu0 0.0
  %3638 = vmatpush1.msra.mxu0 0.0
  %3639 = vmatprep.subr.mxu0 0.0
  %3640 = vmatpush1.msra.mxu0 0.0
  %3641 = vmatprep.subr.mxu0 0.0
  %3642 = vmatpush1.msra.mxu0 0.0
  %3643 = vmatprep.subr.mxu0 0.0
  %3644 = vmatpush1.msra.mxu0 0.0
  %3645 = vmatprep.subr.mxu0 0.0
  %3646 = vmatpush1.msra.mxu0 0.0
  %3647 = vmatprep.subr.mxu0 0.0
  %3648 = vmatpush1.msra.mxu0 0.0
  %3649 = vmatprep.subr.mxu0 0.0
  %3650 = vmatpush1.msra.mxu0 0.0
  %3651 = vmatprep.subr.mxu0 0.0
  %3652 = vmatpush1.msra.mxu0 0.0
  %3653 = vmatprep.subr.mxu0 0.0
  %3654 = vmatpush1.msra.mxu0 0.0
  %3655 = vmatprep.mubr.f32.mxu0 0.0
  %3656 = vmatmul.mubr.f32.gmra.mrb[0].mxu0 %v3363
  %v3657 = vpop.f32.mrb[0].mxu0
  %v3658 = vadd.f32 0.0, %v3657
  %v3659 = vpop.f32.mrb[0].mxu0
  %3660 = vdwg.mxu0
  %v3661 = vadd.f32 %v2424, %v3658
  %v3662 = vxor.u32 %v3661, 2147483648
  %v3663 = vmul.f32 %v3662, 1.442695
  %v3664 = vpow.pop %v3663
  %v3665 = vadd.f32 %v3664, 1.0
  %v3666 = vrcp.pop %v3665
  %v3667 = vmul.f32 1.0, %v3666
  %v3668 = vmul.f32 %v3518, %v3359
  %v3669 = vmul.f32 %v3441, %v3590
  %v3670 = vadd.f32 %v3668, %v3669
  %v3671 = vtanh.pop %v3670
  %v3672 = vmul.f32 %v3667, %v3671
  %v3674 = vsel %vm461, %v3672, 0
  %3676 = vmatprep.subr.mxu0 0.0
  %3677 = vmatpush1.msra.mxu0 %v2033
  %3678 = vmatprep.subr.mxu0 0.0
  %3679 = vmatpush1.msra.mxu0 %v2034
  %3680 = vmatprep.subr.mxu0 0.0
  %3681 = vmatpush1.msra.mxu0 %v2035
  %3682 = vmatprep.subr.mxu0 0.0
  %3683 = vmatpush1.msra.mxu0 %v2036
  %3684 = vmatprep.subr.mxu0 0.0
  %3685 = vmatpush1.msra.mxu0 0.0
  %3686 = vmatprep.subr.mxu0 0.0
  %3687 = vmatpush1.msra.mxu0 0.0
  %3688 = vmatprep.subr.mxu0 0.0
  %3689 = vmatpush1.msra.mxu0 0.0
  %3690 = vmatprep.subr.mxu0 0.0
  %3691 = vmatpush1.msra.mxu0 0.0
  %3692 = vmatprep.subr.mxu0 0.0
  %3693 = vmatpush1.msra.mxu0 0.0
  %3694 = vmatprep.subr.mxu0 0.0
  %3695 = vmatpush1.msra.mxu0 0.0
  %3696 = vmatprep.subr.mxu0 0.0
  %3697 = vmatpush1.msra.mxu0 0.0
  %3698 = vmatprep.subr.mxu0 0.0
  %3699 = vmatpush1.msra.mxu0 0.0
  %3700 = vmatprep.subr.mxu0 0.0
  %3701 = vmatpush1.msra.mxu0 0.0
  %3702 = vmatprep.subr.mxu0 0.0
  %3703 = vmatpush1.msra.mxu0 0.0
  %3704 = vmatprep.subr.mxu0 0.0
  %3705 = vmatpush1.msra.mxu0 0.0
  %3706 = vmatprep.subr.mxu0 0.0
  %3707 = vmatpush1.msra.mxu0 0.0
  %3708 = vmatprep.subr.mxu0 0.0
  %3709 = vmatpush1.msra.mxu0 0.0
  %3710 = vmatprep.subr.mxu0 0.0
  %3711 = vmatpush1.msra.mxu0 0.0
  %3712 = vmatprep.subr.mxu0 0.0
  %3713 = vmatpush1.msra.mxu0 0.0
  %3714 = vmatprep.subr.mxu0 0.0
  %3715 = vmatpush1.msra.mxu0 0.0
  %3716 = vmatprep.subr.mxu0 0.0
  %3717 = vmatpush1.msra.mxu0 0.0
  %3718 = vmatprep.subr.mxu0 0.0
  %3719 = vmatpush1.msra.mxu0 0.0
  %3720 = vmatprep.subr.mxu0 0.0
  %3721 = vmatpush1.msra.mxu0 0.0
  %3722 = vmatprep.subr.mxu0 0.0
  %3723 = vmatpush1.msra.mxu0 0.0
  %3724 = vmatprep.subr.mxu0 0.0
  %3725 = vmatpush1.msra.mxu0 0.0
  %3726 = vmatprep.subr.mxu0 0.0
  %3727 = vmatpush1.msra.mxu0 0.0
  %3728 = vmatprep.subr.mxu0 0.0
  %3729 = vmatpush1.msra.mxu0 0.0
  %3730 = vmatprep.subr.mxu0 0.0
  %3731 = vmatpush1.msra.mxu0 0.0
  %3732 = vmatprep.subr.mxu0 0.0
  %3733 = vmatpush1.msra.mxu0 0.0
  %3734 = vmatprep.subr.mxu0 0.0
  %3735 = vmatpush1.msra.mxu0 0.0
  %3736 = vmatprep.subr.mxu0 0.0
  %3737 = vmatpush1.msra.mxu0 0.0
  %3738 = vmatprep.subr.mxu0 0.0
  %3739 = vmatpush1.msra.mxu0 0.0
  %3740 = vmatprep.mubr.f32.mxu0 0.0
  %3741 = vmatmul.mubr.f32.gmra.mrb[0].mxu0 %v3674
  %v3742 = vpop.f32.mrb[0].mxu0
  %v3743 = vadd.f32 0.0, %v3742
  %v3744 = vpop.f32.mrb[0].mxu0
  %3745 = vdwg.mxu0
  %v3746 = vadd.f32 %v2147, %v3743
  %v3747 = vxor.u32 %v3746, 2147483648
  %v3748 = vmul.f32 %v3747, 1.442695
  %v3749 = vpow.pop %v3748
  %v3750 = vadd.f32 %v3749, 1.0
  %v3751 = vrcp.pop %v3750
  %v3752 = vmul.f32 1.0, %v3751
  %3753 = vmatprep.subr.mxu0 0.0
  %3754 = vmatpush1.msra.mxu0 %v2037
  %3755 = vmatprep.subr.mxu0 0.0
  %3756 = vmatpush1.msra.mxu0 %v2038
  %3757 = vmatprep.subr.mxu0 0.0
  %3758 = vmatpush1.msra.mxu0 %v2039
  %3759 = vmatprep.subr.mxu0 0.0
  %3760 = vmatpush1.msra.mxu0 %v2040
  %3761 = vmatprep.subr.mxu0 0.0
  %3762 = vmatpush1.msra.mxu0 0.0
  %3763 = vmatprep.subr.mxu0 0.0
  %3764 = vmatpush1.msra.mxu0 0.0
  %3765 = vmatprep.subr.mxu0 0.0
  %3766 = vmatpush1.msra.mxu0 0.0
  %3767 = vmatprep.subr.mxu0 0.0
  %3768 = vmatpush1.msra.mxu0 0.0
  %3769 = vmatprep.subr.mxu0 0.0
  %3770 = vmatpush1.msra.mxu0 0.0
  %3771 = vmatprep.subr.mxu0 0.0
  %3772 = vmatpush1.msra.mxu0 0.0
  %3773 = vmatprep.subr.mxu0 0.0
  %3774 = vmatpush1.msra.mxu0 0.0
  %3775 = vmatprep.subr.mxu0 0.0
  %3776 = vmatpush1.msra.mxu0 0.0
  %3777 = vmatprep.subr.mxu0 0.0
  %3778 = vmatpush1.msra.mxu0 0.0
  %3779 = vmatprep.subr.mxu0 0.0
  %3780 = vmatpush1.msra.mxu0 0.0
  %3781 = vmatprep.subr.mxu0 0.0
  %3782 = vmatpush1.msra.mxu0 0.0
  %3783 = vmatprep.subr.mxu0 0.0
  %3784 = vmatpush1.msra.mxu0 0.0
  %3785 = vmatprep.subr.mxu0 0.0
  %3786 = vmatpush1.msra.mxu0 0.0
  %3787 = vmatprep.subr.mxu0 0.0
  %3788 = vmatpush1.msra.mxu0 0.0
  %3789 = vmatprep.subr.mxu0 0.0
  %3790 = vmatpush1.msra.mxu0 0.0
  %3791 = vmatprep.subr.mxu0 0.0
  %3792 = vmatpush1.msra.mxu0 0.0
  %3793 = vmatprep.subr.mxu0 0.0
  %3794 = vmatpush1.msra.mxu0 0.0
  %3795 = vmatprep.subr.mxu0 0.0
  %3796 = vmatpush1.msra.mxu0 0.0
  %3797 = vmatprep.subr.mxu0 0.0
  %3798 = vmatpush1.msra.mxu0 0.0
  %3799 = vmatprep.subr.mxu0 0.0
  %3800 = vmatpush1.msra.mxu0 0.0
  %3801 = vmatprep.subr.mxu0 0.0
  %3802 = vmatpush1.msra.mxu0 0.0
  %3803 = vmatprep.subr.mxu0 0.0
  %3804 = vmatpush1.msra.mxu0 0.0
  %3805 = vmatprep.subr.mxu0 0.0
  %3806 = vmatpush1.msra.mxu0 0.0
  %3807 = vmatprep.subr.mxu0 0.0
  %3808 = vmatpush1.msra.mxu0 0.0
  %3809 = vmatprep.subr.mxu0 0.0
  %3810 = vmatpush1.msra.mxu0 0.0
  %3811 = vmatprep.subr.mxu0 0.0
  %3812 = vmatpush1.msra.mxu0 0.0
  %3813 = vmatprep.subr.mxu0 0.0
  %3814 = vmatpush1.msra.mxu0 0.0
  %3815 = vmatprep.subr.mxu0 0.0
  %3816 = vmatpush1.msra.mxu0 0.0
  %3817 = vmatprep.mubr.f32.mxu0 0.0
  %3818 = vmatmul.mubr.f32.gmra.mrb[0].mxu0 %v3674
  %v3819 = vpop.f32.mrb[0].mxu0
  %v3820 = vadd.f32 0.0, %v3819
  %v3821 = vpop.f32.mrb[0].mxu0
  %3822 = vdwg.mxu0
  %v3823 = vadd.f32 %v2241, %v3820
  %v3824 = vxor.u32 %v3823, 2147483648
  %v3825 = vmul.f32 %v3824, 1.442695
  %v3826 = vpow.pop %v3825
  %v3827 = vadd.f32 %v3826, 1.0
  %v3828 = vrcp.pop %v3827
  %v3829 = vmul.f32 1.0, %v3828
  %3830 = vmatprep.subr.mxu0 0.0
  %3831 = vmatpush1.msra.mxu0 %v2041
  %3832 = vmatprep.subr.mxu0 0.0
  %3833 = vmatpush1.msra.mxu0 %v2042
  %3834 = vmatprep.subr.mxu0 0.0
  %3835 = vmatpush1.msra.mxu0 %v2043
  %3836 = vmatprep.subr.mxu0 0.0
  %3837 = vmatpush1.msra.mxu0 %v2044
  %3838 = vmatprep.subr.mxu0 0.0
  %3839 = vmatpush1.msra.mxu0 0.0
  %3840 = vmatprep.subr.mxu0 0.0
  %3841 = vmatpush1.msra.mxu0 0.0
  %3842 = vmatprep.subr.mxu0 0.0
  %3843 = vmatpush1.msra.mxu0 0.0
  %3844 = vmatprep.subr.mxu0 0.0
  %3845 = vmatpush1.msra.mxu0 0.0
  %3846 = vmatprep.subr.mxu0 0.0
  %3847 = vmatpush1.msra.mxu0 0.0
  %3848 = vmatprep.subr.mxu0 0.0
  %3849 = vmatpush1.msra.mxu0 0.0
  %3850 = vmatprep.subr.mxu0 0.0
  %3851 = vmatpush1.msra.mxu0 0.0
  %3852 = vmatprep.subr.mxu0 0.0
  %3853 = vmatpush1.msra.mxu0 0.0
  %3854 = vmatprep.subr.mxu0 0.0
  %3855 = vmatpush1.msra.mxu0 0.0
  %3856 = vmatprep.subr.mxu0 0.0
  %3857 = vmatpush1.msra.mxu0 0.0
  %3858 = vmatprep.subr.mxu0 0.0
  %3859 = vmatpush1.msra.mxu0 0.0
  %3860 = vmatprep.subr.mxu0 0.0
  %3861 = vmatpush1.msra.mxu0 0.0
  %3862 = vmatprep.subr.mxu0 0.0
  %3863 = vmatpush1.msra.mxu0 0.0
  %3864 = vmatprep.subr.mxu0 0.0
  %3865 = vmatpush1.msra.mxu0 0.0
  %3866 = vmatprep.subr.mxu0 0.0
  %3867 = vmatpush1.msra.mxu0 0.0
  %3868 = vmatprep.subr.mxu0 0.0
  %3869 = vmatpush1.msra.mxu0 0.0
  %3870 = vmatprep.subr.mxu0 0.0
  %3871 = vmatpush1.msra.mxu0 0.0
  %3872 = vmatprep.subr.mxu0 0.0
  %3873 = vmatpush1.msra.mxu0 0.0
  %3874 = vmatprep.subr.mxu0 0.0
  %3875 = vmatpush1.msra.mxu0 0.0
  %3876 = vmatprep.subr.mxu0 0.0
  %3877 = vmatpush1.msra.mxu0 0.0
  %3878 = vmatprep.subr.mxu0 0.0
  %3879 = vmatpush1.msra.mxu0 0.0
  %3880 = vmatprep.subr.mxu0 0.0
  %3881 = vmatpush1.msra.mxu0 0.0
  %3882 = vmatprep.subr.mxu0 0.0
  %3883 = vmatpush1.msra.mxu0 0.0
  %3884 = vmatprep.subr.mxu0 0.0
  %3885 = vmatpush1.msra.mxu0 0.0
  %3886 = vmatprep.subr.mxu0 0.0
  %3887 = vmatpush1.msra.mxu0 0.0
  %3888 = vmatprep.subr.mxu0 0.0
  %3889 = vmatpush1.msra.mxu0 0.0
  %3890 = vmatprep.subr.mxu0 0.0
  %3891 = vmatpush1.msra.mxu0 0.0
  %3892 = vmatprep.subr.mxu0 0.0
  %3893 = vmatpush1.msra.mxu0 0.0
  %3894 = vmatprep.mubr.f32.mxu0 0.0
  %3895 = vmatmul.mubr.f32.gmra.mrb[0].mxu0 %v3674
  %v3896 = vpop.f32.mrb[0].mxu0
  %v3897 = vadd.f32 0.0, %v3896
  %v3898 = vpop.f32.mrb[0].mxu0
  %3899 = vdwg.mxu0
  %v3900 = vadd.f32 %v2335, %v3897
  %v3901 = vtanh.pop %v3900
  %3902 = vmatprep.subr.mxu0 0.0
  %3903 = vmatpush1.msra.mxu0 %v2045
  %3904 = vmatprep.subr.mxu0 0.0
  %3905 = vmatpush1.msra.mxu0 %v2046
  %3906 = vmatprep.subr.mxu0 0.0
  %3907 = vmatpush1.msra.mxu0 %v2047
  %3908 = vmatprep.subr.mxu0 0.0
  %3909 = vmatpush1.msra.mxu0 %v2048
  %3910 = vmatprep.subr.mxu0 0.0
  %3911 = vmatpush1.msra.mxu0 0.0
  %3912 = vmatprep.subr.mxu0 0.0
  %3913 = vmatpush1.msra.mxu0 0.0
  %3914 = vmatprep.subr.mxu0 0.0
  %3915 = vmatpush1.msra.mxu0 0.0
  %3916 = vmatprep.subr.mxu0 0.0
  %3917 = vmatpush1.msra.mxu0 0.0
  %3918 = vmatprep.subr.mxu0 0.0
  %3919 = vmatpush1.msra.mxu0 0.0
  %3920 = vmatprep.subr.mxu0 0.0
  %3921 = vmatpush1.msra.mxu0 0.0
  %3922 = vmatprep.subr.mxu0 0.0
  %3923 = vmatpush1.msra.mxu0 0.0
  %3924 = vmatprep.subr.mxu0 0.0
  %3925 = vmatpush1.msra.mxu0 0.0
  %3926 = vmatprep.subr.mxu0 0.0
  %3927 = vmatpush1.msra.mxu0 0.0
  %3928 = vmatprep.subr.mxu0 0.0
  %3929 = vmatpush1.msra.mxu0 0.0
  %3930 = vmatprep.subr.mxu0 0.0
  %3931 = vmatpush1.msra.mxu0 0.0
  %3932 = vmatprep.subr.mxu0 0.0
  %3933 = vmatpush1.msra.mxu0 0.0
  %3934 = vmatprep.subr.mxu0 0.0
  %3935 = vmatpush1.msra.mxu0 0.0
  %3936 = vmatprep.subr.mxu0 0.0
  %3937 = vmatpush1.msra.mxu0 0.0
  %3938 = vmatprep.subr.mxu0 0.0
  %3939 = vmatpush1.msra.mxu0 0.0
  %3940 = vmatprep.subr.mxu0 0.0
  %3941 = vmatpush1.msra.mxu0 0.0
  %3942 = vmatprep.subr.mxu0 0.0
  %3943 = vmatpush1.msra.mxu0 0.0
  %3944 = vmatprep.subr.mxu0 0.0
  %3945 = vmatpush1.msra.mxu0 0.0
  %3946 = vmatprep.subr.mxu0 0.0
  %3947 = vmatpush1.msra.mxu0 0.0
  %3948 = vmatprep.subr.mxu0 0.0
  %3949 = vmatpush1.msra.mxu0 0.0
  %3950 = vmatprep.subr.mxu0 0.0
  %3951 = vmatpush1.msra.mxu0 0.0
  %3952 = vmatprep.subr.mxu0 0.0
  %3953 = vmatpush1.msra.mxu0 0.0
  %3954 = vmatprep.subr.mxu0 0.0
  %3955 = vmatpush1.msra.mxu0 0.0
  %3956 = vmatprep.subr.mxu0 0.0
  %3957 = vmatpush1.msra.mxu0 0.0
  %3958 = vmatprep.subr.mxu0 0.0
  %3959 = vmatpush1.msra.mxu0 0.0
  %3960 = vmatprep.subr.mxu0 0.0
  %3961 = vmatpush1.msra.mxu0 0.0
  %3962 = vmatprep.subr.mxu0 0.0
  %3963 = vmatpush1.msra.mxu0 0.0
  %3964 = vmatprep.subr.mxu0 0.0
  %3965 = vmatpush1.msra.mxu0 0.0
  %3966 = vmatprep.mubr.f32.mxu0 0.0
  %3967 = vmatmul.mubr.f32.gmra.mrb[0].mxu0 %v3674
  %v3968 = vpop.f32.mrb[0].mxu0
  %v3969 = vadd.f32 0.0, %v3968
  %v3970 = vpop.f32.mrb[0].mxu0
  %3971 = vdwg.mxu0
  %v3972 = vadd.f32 %v2429, %v3969
  %v3973 = vxor.u32 %v3972, 2147483648
  %v3974 = vmul.f32 %v3973, 1.442695
  %v3975 = vpow.pop %v3974
  %v3976 = vadd.f32 %v3975, 1.0
  %v3977 = vrcp.pop %v3976
  %v3978 = vmul.f32 1.0, %v3977
  %v3979 = vmul.f32 %v3829, %v3670
  %v3980 = vmul.f32 %v3752, %v3901
  %v3981 = vadd.f32 %v3979, %v3980
  %v3982 = vtanh.pop %v3981
  %v3983 = vmul.f32 %v3978, %v3982
  %v3984 = vld [vmem:[%s7] sm:$0xff]
  %v3985 = vld [vmem:[%s7 + $0x8] sm:$0xff]
  %v3986 = vld [vmem:[%s7 + $0x10] sm:$0xff]
  %v3987 = vld [vmem:[%s7 + $0x18] sm:$0xff]
  %v3988 = vld [vmem:[%s8] sm:$0x1]
  %v3990 = vlaneseq
  %v3991 = vshrl.u32 %v3990, 7
  %v3992 = vsub.s32 0, %v3991
  %v3993 = vrot.slane %v3988, %v3992
  %v3996 = vsel %vm461, %v3983, 0
  %3998 = vmatprep.subr.mxu0 0.0
  %3999 = vmatpush1.msra.mxu0 %v3984
  %4000 = vmatprep.subr.mxu0 0.0
  %4001 = vmatpush1.msra.mxu0 %v3985
  %4002 = vmatprep.subr.mxu0 0.0
  %4003 = vmatpush1.msra.mxu0 %v3986
  %4004 = vmatprep.subr.mxu0 0.0
  %4005 = vmatpush1.msra.mxu0 %v3987
  %4006 = vmatprep.subr.mxu0 0.0
  %4007 = vmatpush1.msra.mxu0 0.0
  %4008 = vmatprep.subr.mxu0 0.0
  %4009 = vmatpush1.msra.mxu0 0.0
  %4010 = vmatprep.subr.mxu0 0.0
  %4011 = vmatpush1.msra.mxu0 0.0
  %4012 = vmatprep.subr.mxu0 0.0
  %4013 = vmatpush1.msra.mxu0 0.0
  %4014 = vmatprep.subr.mxu0 0.0
  %4015 = vmatpush1.msra.mxu0 0.0
  %4016 = vmatprep.subr.mxu0 0.0
  %4017 = vmatpush1.msra.mxu0 0.0
  %4018 = vmatprep.subr.mxu0 0.0
  %4019 = vmatpush1.msra.mxu0 0.0
  %4020 = vmatprep.subr.mxu0 0.0
  %4021 = vmatpush1.msra.mxu0 0.0
  %4022 = vmatprep.subr.mxu0 0.0
  %4023 = vmatpush1.msra.mxu0 0.0
  %4024 = vmatprep.subr.mxu0 0.0
  %4025 = vmatpush1.msra.mxu0 0.0
  %4026 = vmatprep.subr.mxu0 0.0
  %4027 = vmatpush1.msra.mxu0 0.0
  %4028 = vmatprep.subr.mxu0 0.0
  %4029 = vmatpush1.msra.mxu0 0.0
  %4030 = vmatprep.subr.mxu0 0.0
  %4031 = vmatpush1.msra.mxu0 0.0
  %4032 = vmatprep.subr.mxu0 0.0
  %4033 = vmatpush1.msra.mxu0 0.0
  %4034 = vmatprep.subr.mxu0 0.0
  %4035 = vmatpush1.msra.mxu0 0.0
  %4036 = vmatprep.subr.mxu0 0.0
  %4037 = vmatpush1.msra.mxu0 0.0
  %4038 = vmatprep.subr.mxu0 0.0
  %4039 = vmatpush1.msra.mxu0 0.0
  %4040 = vmatprep.subr.mxu0 0.0
  %4041 = vmatpush1.msra.mxu0 0.0
  %4042 = vmatprep.subr.mxu0 0.0
  %4043 = vmatpush1.msra.mxu0 0.0
  %4044 = vmatprep.subr.mxu0 0.0
  %4045 = vmatpush1.msra.mxu0 0.0
  %4046 = vmatprep.subr.mxu0 0.0
  %4047 = vmatpush1.msra.mxu0 0.0
  %4048 = vmatprep.subr.mxu0 0.0
  %4049 = vmatpush1.msra.mxu0 0.0
  %4050 = vmatprep.subr.mxu0 0.0
  %4051 = vmatpush1.msra.mxu0 0.0
  %4052 = vmatprep.subr.mxu0 0.0
  %4053 = vmatpush1.msra.mxu0 0.0
  %4054 = vmatprep.subr.mxu0 0.0
  %4055 = vmatpush1.msra.mxu0 0.0
  %4056 = vmatprep.subr.mxu0 0.0
  %4057 = vmatpush1.msra.mxu0 0.0
  %4058 = vmatprep.subr.mxu0 0.0
  %4059 = vmatpush1.msra.mxu0 0.0
  %4060 = vmatprep.subr.mxu0 0.0
  %4061 = vmatpush1.msra.mxu0 0.0
  %4062 = vmatprep.mubr.f32.mxu0 0.0
  %4063 = vmatmul.mubr.f32.gmra.mrb[0].mxu0 %v2741
  %v4064 = vpop.f32.mrb[0].mxu0
  %v4065 = vadd.f32 %v3993, %v4064
  %v4066 = vpop.f32.mrb[0].mxu0
  %4067 = vmatprep.mubr.f32.mxu0 0.0
  %4068 = vmatmul.mubr.f32.gmra.mrb[0].mxu0 %v3052
  %v4069 = vpop.f32.mrb[0].mxu0
  %v4070 = vadd.f32 %v3993, %v4069
  %v4071 = vpop.f32.mrb[0].mxu0
  %4072 = vmatprep.mubr.f32.mxu0 0.0
  %4073 = vmatmul.mubr.f32.gmra.mrb[0].mxu0 %v3363
  %v4074 = vpop.f32.mrb[0].mxu0
  %v4075 = vadd.f32 %v3993, %v4074
  %v4076 = vpop.f32.mrb[0].mxu0
  %4077 = vmatprep.mubr.f32.mxu0 0.0
  %4078 = vmatmul.mubr.f32.gmra.mrb[0].mxu0 %v3674
  %v4079 = vpop.f32.mrb[0].mxu0
  %v4080 = vadd.f32 %v3993, %v4079
  %v4081 = vpop.f32.mrb[0].mxu0
  %4082 = vmatprep.mubr.f32.mxu0 0.0
  %4083 = vmatmul.mubr.f32.gmra.mrb[0].mxu0 %v3996
  %v4084 = vpop.f32.mrb[0].mxu0
  %v4085 = vadd.f32 %v3993, %v4084
  %v4086 = vpop.f32.mrb[0].mxu0
  %4087 = vdwg.mxu0
  %4088 = vst.msk [vmem:[%s12] sm:$0xff] %vm73, %v4065
  %4089 = vst.msk [vmem:[%s12 + $0x8] sm:$0xff] %vm73, %v4070
  %4090 = vst.msk [vmem:[%s12 + $0x10] sm:$0xff] %vm73, %v4075
  %4091 = vst.msk [vmem:[%s12 + $0x18] sm:$0xff] %vm73, %v4080
  %4092 = vst.msk [vmem:[%s12 + $0x20] sm:$0xff] %vm73, %v4085
  %v4093 = vld [vmem:[%s1] sm:$0xff]
  %v4094 = vld [vmem:[%s1 + $0x8] sm:$0xff]
  %v4095 = vld [vmem:[%s1 + $0x10] sm:$0xff]
  %v4096 = vld [vmem:[%s1 + $0x18] sm:$0xff]
  %v4097 = vld [vmem:[%s1 + $0x20] sm:$0xff]
  %4103 = vrot.lane.b32.xlu0 %v4065, 120
  %v4104 = vpop.permute.xlu0 %4103
  %4105 = vrot.lane.b32.xlu0 %v4070, 120
  %v4106 = vpop.permute.xlu0 %4105
  %4107 = vrot.lane.b32.xlu0 %v4075, 120
  %v4108 = vpop.permute.xlu0 %4107
  %4109 = vrot.lane.b32.xlu0 %v4080, 120
  %v4110 = vpop.permute.xlu0 %4109
  %4111 = vrot.lane.b32.xlu0 %v4085, 120
  %v4112 = vpop.permute.xlu0 %4111
  %v4118 = vadd.f32 %v4093, %v4104
  %v4119 = vadd.f32 %v4094, %v4106
  %v4120 = vadd.f32 %v4095, %v4108
  %v4121 = vadd.f32 %v4096, %v4110
  %v4122 = vadd.f32 %v4097, %v4112
  %v4123 = vxor.u32 %v4118, 2147483648
  %v4124 = vxor.u32 %v4119, 2147483648
  %v4125 = vxor.u32 %v4120, 2147483648
  %v4126 = vxor.u32 %v4121, 2147483648
  %v4127 = vxor.u32 %v4122, 2147483648
  %v4128 = vmul.f32 %v4123, 1.442695
  %v4129 = vpow.pop %v4128
  %v4130 = vmul.f32 %v4124, 1.442695
  %v4131 = vpow.pop %v4130
  %v4132 = vmul.f32 %v4125, 1.442695
  %v4133 = vpow.pop %v4132
  %v4134 = vmul.f32 %v4126, 1.442695
  %v4135 = vpow.pop %v4134
  %v4136 = vmul.f32 %v4127, 1.442695
  %v4137 = vpow.pop %v4136
  %v4138 = vadd.f32 %v4129, 1.0
  %v4139 = vadd.f32 %v4131, 1.0
  %v4140 = vadd.f32 %v4133, 1.0
  %v4141 = vadd.f32 %v4135, 1.0
  %v4142 = vadd.f32 %v4137, 1.0
  %v4143 = vrcp.pop %v4138
  %v4144 = vmul.f32 1.0, %v4143
  %v4145 = vrcp.pop %v4139
  %v4146 = vmul.f32 1.0, %v4145
  %v4147 = vrcp.pop %v4140
  %v4148 = vmul.f32 1.0, %v4147
  %v4149 = vrcp.pop %v4141
  %v4150 = vmul.f32 1.0, %v4149
  %v4151 = vrcp.pop %v4142
  %v4152 = vmul.f32 1.0, %v4151
  %4158 = vrot.lane.b32.xlu0 %v4093, 127
  %v4159 = vpop.permute.xlu0 %4158
  %4160 = vrot.lane.b32.xlu0 %v4094, 127
  %v4161 = vpop.permute.xlu0 %4160
  %4162 = vrot.lane.b32.xlu0 %v4095, 127
  %v4163 = vpop.permute.xlu0 %4162
  %4164 = vrot.lane.b32.xlu0 %v4096, 127
  %v4165 = vpop.permute.xlu0 %4164
  %4166 = vrot.lane.b32.xlu0 %v4097, 127
  %v4167 = vpop.permute.xlu0 %4166
  %v4173 = vmul.f32 %v4144, %v4159
  %v4174 = vmul.f32 %v4146, %v4161
  %v4175 = vmul.f32 %v4148, %v4163
  %v4176 = vmul.f32 %v4150, %v4165
  %v4177 = vmul.f32 %v4152, %v4167
  %4179 = vset.pattern.permute.xlu0 0
  %4180 = vperm.xlu0 %4179, %v4173
  %v4181 = vpop.permute.xlu0 %4180
  %4184 = vset.pattern.permute.xlu0 0
  %4185 = vperm.xlu0 %4184, %v4174
  %v4186 = vpop.permute.xlu0 %4185
  %4189 = vset.pattern.permute.xlu0 0
  %4190 = vperm.xlu0 %4189, %v4175
  %v4191 = vpop.permute.xlu0 %4190
  %4194 = vset.pattern.permute.xlu0 0
  %4195 = vperm.xlu0 %4194, %v4176
  %v4196 = vpop.permute.xlu0 %4195
  %4199 = vset.pattern.permute.xlu0 0
  %4200 = vperm.xlu0 %4199, %v4177
  %v4201 = vpop.permute.xlu0 %4200
  %v4203 = vmul.f32 %v2739, %v4181
  %v4204 = vmul.f32 %v3050, %v4186
  %v4205 = vmul.f32 %v3361, %v4191
  %v4206 = vmul.f32 %v3672, %v4196
  %v4207 = vmul.f32 %v3983, %v4201
  %v4208 = vadd.f32 %v4203, 0.0
  %v4209 = vadd.f32 %v4208, %v4204
  %v4210 = vadd.f32 %v4209, %v4205
  %v4211 = vadd.f32 %v4210, %v4206
  %v4212 = vadd.f32 %v4211, %v4207
  %v4213 = vld [vmem:[%s9] sm:$0xff]
  %v4214 = vld [vmem:[%s9 + $0x8] sm:$0xff]
  %v4215 = vld [vmem:[%s9 + $0x10] sm:$0xff]
  %v4216 = vld [vmem:[%s9 + $0x18] sm:$0xff]
  %v4217 = vld [vmem:[%s10] sm:$0x1]
  %v4219 = vlaneseq
  %v4220 = vshrl.u32 %v4219, 7
  %v4221 = vsub.s32 0, %v4220
  %v4222 = vrot.slane %v4217, %v4221
  %v4225 = vsel %vm461, %v4212, 0
  %4227 = vmatprep.subr.mxu0 0.0
  %4228 = vmatpush1.msra.mxu0 %v4213
  %4229 = vmatprep.subr.mxu0 0.0
  %4230 = vmatpush1.msra.mxu0 %v4214
  %4231 = vmatprep.subr.mxu0 0.0
  %4232 = vmatpush1.msra.mxu0 %v4215
  %4233 = vmatprep.subr.mxu0 0.0
  %4234 = vmatpush1.msra.mxu0 %v4216
  %4235 = vmatprep.subr.mxu0 0.0
  %4236 = vmatpush1.msra.mxu0 0.0
  %4237 = vmatprep.subr.mxu0 0.0
  %4238 = vmatpush1.msra.mxu0 0.0
  %4239 = vmatprep.subr.mxu0 0.0
  %4240 = vmatpush1.msra.mxu0 0.0
  %4241 = vmatprep.subr.mxu0 0.0
  %4242 = vmatpush1.msra.mxu0 0.0
  %4243 = vmatprep.subr.mxu0 0.0
  %4244 = vmatpush1.msra.mxu0 0.0
  %4245 = vmatprep.subr.mxu0 0.0
  %4246 = vmatpush1.msra.mxu0 0.0
  %4247 = vmatprep.subr.mxu0 0.0
  %4248 = vmatpush1.msra.mxu0 0.0
  %4249 = vmatprep.subr.mxu0 0.0
  %4250 = vmatpush1.msra.mxu0 0.0
  %4251 = vmatprep.subr.mxu0 0.0
  %4252 = vmatpush1.msra.mxu0 0.0
  %4253 = vmatprep.subr.mxu0 0.0
  %4254 = vmatpush1.msra.mxu0 0.0
  %4255 = vmatprep.subr.mxu0 0.0
  %4256 = vmatpush1.msra.mxu0 0.0
  %4257 = vmatprep.subr.mxu0 0.0
  %4258 = vmatpush1.msra.mxu0 0.0
  %4259 = vmatprep.subr.mxu0 0.0
  %4260 = vmatpush1.msra.mxu0 0.0
  %4261 = vmatprep.subr.mxu0 0.0
  %4262 = vmatpush1.msra.mxu0 0.0
  %4263 = vmatprep.subr.mxu0 0.0
  %4264 = vmatpush1.msra.mxu0 0.0
  %4265 = vmatprep.subr.mxu0 0.0
  %4266 = vmatpush1.msra.mxu0 0.0
  %4267 = vmatprep.subr.mxu0 0.0
  %4268 = vmatpush1.msra.mxu0 0.0
  %4269 = vmatprep.subr.mxu0 0.0
  %4270 = vmatpush1.msra.mxu0 0.0
  %4271 = vmatprep.subr.mxu0 0.0
  %4272 = vmatpush1.msra.mxu0 0.0
  %4273 = vmatprep.subr.mxu0 0.0
  %4274 = vmatpush1.msra.mxu0 0.0
  %4275 = vmatprep.subr.mxu0 0.0
  %4276 = vmatpush1.msra.mxu0 0.0
  %4277 = vmatprep.subr.mxu0 0.0
  %4278 = vmatpush1.msra.mxu0 0.0
  %4279 = vmatprep.subr.mxu0 0.0
  %4280 = vmatpush1.msra.mxu0 0.0
  %4281 = vmatprep.subr.mxu0 0.0
  %4282 = vmatpush1.msra.mxu0 0.0
  %4283 = vmatprep.subr.mxu0 0.0
  %4284 = vmatpush1.msra.mxu0 0.0
  %4285 = vmatprep.subr.mxu0 0.0
  %4286 = vmatpush1.msra.mxu0 0.0
  %4287 = vmatprep.subr.mxu0 0.0
  %4288 = vmatpush1.msra.mxu0 0.0
  %4289 = vmatprep.subr.mxu0 0.0
  %4290 = vmatpush1.msra.mxu0 0.0
  %4291 = vmatprep.mubr.f32.mxu0 0.0
  %4292 = vmatmul.mubr.f32.gmra.mrb[0].mxu0 %v4225
  %v4293 = vpop.f32.mrb[0].mxu0
  %v4294 = vadd.f32 %v4222, %v4293
  %v4295 = vpop.f32.mrb[0].mxu0
  %4296 = vdwg.mxu0
  %vm4297 = vcmask 15360
  %4298 = vst.msk [vmem:[%s11] sm:$0xff] %vm4297, %v4294
  // Predicated region
  $region46: #{tpu_custom_call.1} parent=0 // pred_check
    _
  $region47: #{tpu_custom_call.1} parent=0 // pred_check_branch
    %4300 = sbr.rel (0) target = $region49
  $region48: #{tpu_custom_call.1} parent=0 // pred_region
    _
  $region49: #{tpu_custom_call.1} parent=0 // pred_fallthru
    _
  // Predicated region
  $region50: #{tpu_custom_call.1} parent=0 // pred_check
    _
  $region51: #{tpu_custom_call.1} parent=0 // pred_check_branch
    %4302 = sbr.rel (0) target = $region53
  $region52: #{tpu_custom_call.1} parent=0 // pred_region
    _
  $region53: #{tpu_custom_call.1} parent=0 // pred_fallthru
    _
  // Predicated region
  $region54: #{tpu_custom_call.1} parent=0 // pred_check
    _
  $region55: #{tpu_custom_call.1} parent=0 // pred_check_branch
    %4304 = sbr.rel (0) target = $region57
  $region56: #{tpu_custom_call.1} parent=0 // pred_region
    _
  $region57: #{tpu_custom_call.1} parent=0 // pred_fallthru
    _
  // Predicated region
  $region58: #{tpu_custom_call.1} parent=0 // pred_check
    _
  $region59: #{tpu_custom_call.1} parent=0 // pred_check_branch
    %4306 = sbr.rel (0) target = $region61
  $region60: #{tpu_custom_call.1} parent=0 // pred_region
    _
  $region61: #{tpu_custom_call.1} parent=0 // pred_fallthru
    _

</llo_original>
